<compile_context>
chip_gen: v6e
topology: v6e:2x2x1
jax: 0.10.0
libtpu: 0.0.40
codegen_flags: <defaults>
</compile_context>

<pallas_src>
import functools

import jax
import jax.numpy as jnp
from jax.experimental import pallas as pl
from jax.experimental.pallas import tpu as pltpu


def _round_up(x, m):
    return (x + m - 1) // m * m


# ---------------------------------------------------------------------------
# Kernel
# ---------------------------------------------------------------------------
def _siren_net_kernel(x_ref, w_in_ref, b_in_ref, wh_ref, wx_ref, bh_ref,
                      w_out_ref, b_out_ref, o_ref, *,
                      omega_0, omega_0_out, n_hidden):
    # x_ref    : (tm, D_in)          VMEM   (pipelined over the grid)
    # w_in_ref : (D_in, H)           VMEM   (resident)
    # b_in_ref : (1, H)              VMEM   (resident)
    # wh_ref   : (Lp, H, H)          VMEM   (resident)  hidden weights, h-part, transposed
    # wx_ref   : (Lp, D_in, H)       VMEM   (resident)  hidden weights, skip(x)-part, transposed
    # bh_ref   : (Lp, 1, H)          VMEM   (resident)
    # w_out_ref: (H, N_pad)          VMEM   (resident)  output weight, transposed + lane-padded
    # b_out_ref: (1, N_pad)          VMEM   (resident)
    # o_ref    : (tm, N_pad)         VMEM   (pipelined over the grid)
    x = x_ref[...]

    # Input layer: sin(w0 * (x @ W_in^T + b_in))
    acc = jnp.dot(x, w_in_ref[...], preferred_element_type=jnp.float32)
    h = jnp.sin(omega_0 * (acc + b_in_ref[...]))

    # Hidden layers with skip concat, split into two MXU matmuls.
    for l in range(n_hidden):
        acc = jnp.dot(h, wh_ref[l], preferred_element_type=jnp.float32)
        acc = acc + jnp.dot(x, wx_ref[l], preferred_element_type=jnp.float32)
        h = jnp.sin(omega_0 * (acc + bh_ref[l]))

    # Output layer (lane-dense padded N); sin applied to padded lanes too (sliced away
    # in the wrapper).
    acc = jnp.dot(h, w_out_ref[...], preferred_element_type=jnp.float32)
    o_ref[...] = jnp.sin(omega_0_out * (acc + b_out_ref[...])).astype(o_ref.dtype)


# ---------------------------------------------------------------------------
# Parameter packing (done once: pre-transposed / pre-padded kernel layout)
# ---------------------------------------------------------------------------
def pack_siren_params(w_in, b_in, w_hidden, b_hidden, w_out, b_out):
    """Convert PyTorch-layout params into the fused-kernel layout.

    w_in:     (H, D_in)            b_in:     (H,)
    w_hidden: list of (H, H+D_in)  b_hidden: list of (H,)
    w_out:    (D_out, H)           b_out:    (D_out,)
    """
    H, D_in = w_in.shape
    D_out = w_out.shape[0]
    L = len(w_hidden)

    w_in_t = jnp.asarray(w_in).T                       # (D_in, H)
    b_in2 = jnp.asarray(b_in).reshape(1, H)

    if L > 0:
        wh_t = jnp.stack([jnp.asarray(w)[:, :H].T for w in w_hidden])    # (L, H, H)
        wx_t = jnp.stack([jnp.asarray(w)[:, H:].T for w in w_hidden])    # (L, D_in, H)
        bh = jnp.stack([jnp.asarray(b).reshape(1, H) for b in b_hidden]) # (L, 1, H)
    else:
        # Dummy (unread) stacks so the pallas_call signature is static.
        wh_t = jnp.zeros((1, H, H), jnp.float32)
        wx_t = jnp.zeros((1, D_in, H), jnp.float32)
        bh = jnp.zeros((1, 1, H), jnp.float32)

    n_pad = _round_up(max(D_out, 1), 128)              # lane-dense output width
    w_out_t = jnp.zeros((H, n_pad), jnp.float32).at[:, :D_out].set(jnp.asarray(w_out).T)
    b_out2 = jnp.zeros((1, n_pad), jnp.float32).at[:, :D_out].set(jnp.asarray(b_out))

    return dict(
        w_in_t=w_in_t, b_in=b_in2,
        wh_t=wh_t, wx_t=wx_t, bh=bh,
        w_out_t=w_out_t, b_out=b_out2,
        n_hidden=L, d_in=D_in, hidden=H, d_out=D_out, n_pad=n_pad,
    )


# ---------------------------------------------------------------------------
# Wrapper
# ---------------------------------------------------------------------------
def siren_network_forward(x, packed, omega_0=30.0, omega_0_out=30.0, tm=None):
    """Fused SIREN network forward.

    x: (M, D_in) float32  ->  (M, D_out) float32
    """
    M, D_in = x.shape
    H = packed["hidden"]
    L = packed["n_hidden"]
    D_out = packed["d_out"]
    N_pad = packed["n_pad"]
    Lp = packed["wh_t"].shape[0]
    assert D_in == packed["d_in"]

    # M-tile: big enough to pipeline DMA against compute, small enough to sit
    # comfortably inside v7x's 32 MiB scoped VMEM (x tile + out tile double-buffered
    # + resident weights is well under 1-2 MiB for typical SIREN widths).
    if tm is None:
        tm = 1024
    tm = max(8, min(tm, _round_up(M, 8)))
    tm = _round_up(tm, 8)

    M_pad = _round_up(M, tm)
    x_p = x if M_pad == M else jnp.pad(x, ((0, M_pad - M), (0, 0)))
    grid = (M_pad // tm,)

    kernel = functools.partial(
        _siren_net_kernel,
        omega_0=float(omega_0),
        omega_0_out=float(omega_0_out),
        n_hidden=L,
    )

    # Advisory cost estimate for XLA's scheduler.
    flops = 2 * M_pad * (D_in * H + L * (H + D_in) * H + H * N_pad)
    transcendentals = M_pad * ((L + 1) * H + N_pad)
    weight_bytes = 4 * (D_in * H + H + Lp * (H * H + D_in * H + H) + H * N_pad + N_pad)
    bytes_accessed = 4 * (M_pad * D_in + M_pad * N_pad) + weight_bytes

    out = pl.pallas_call(
        kernel,
        out_shape=jax.ShapeDtypeStruct((M_pad, N_pad), x.dtype),
        grid_spec=pltpu.PrefetchScalarGridSpec(
            num_scalar_prefetch=0,
            grid=grid,
            in_specs=[
                pl.BlockSpec((tm, D_in), lambda i: (i, 0)),     # x tile (pipelined)
                pl.BlockSpec((D_in, H), lambda i: (0, 0)),      # W_in^T   (resident)
                pl.BlockSpec((1, H), lambda i: (0, 0)),         # b_in     (resident)
                pl.BlockSpec((Lp, H, H), lambda i: (0, 0, 0)),  # Wh^T stack
                pl.BlockSpec((Lp, D_in, H), lambda i: (0, 0, 0)),  # Wx^T stack
                pl.BlockSpec((Lp, 1, H), lambda i: (0, 0, 0)),  # b_hidden stack
                pl.BlockSpec((H, N_pad), lambda i: (0, 0)),     # W_out^T (lane padded)
                pl.BlockSpec((1, N_pad), lambda i: (0, 0)),     # b_out   (lane padded)
            ],
            out_specs=pl.BlockSpec((tm, N_pad), lambda i: (i, 0)),
        ),
        compiler_params=pltpu.CompilerParams(
            dimension_semantics=("parallel",),
        ),
        cost_estimate=pl.CostEstimate(
            flops=int(flops),
            transcendentals=int(transcendentals),
            bytes_accessed=int(bytes_accessed),
        ),
    )(x_p, packed["w_in_t"], packed["b_in"], packed["wh_t"], packed["wx_t"],
      packed["bh"], packed["w_out_t"], packed["b_out"])

    return out[:M, :D_out]


# ---------------------------------------------------------------------------
# Pure-JAX reference + deterministic init (matches PyTorch SIREN init scheme)
# ---------------------------------------------------------------------------
def siren_network_ref(x, w_in, b_in, w_hidden, b_hidden, w_out, b_out,
                      omega_0=30.0, omega_0_out=30.0):
    h = jnp.sin(omega_0 * (x @ w_in.T + b_in))
    for w, b in zip(w_hidden, b_hidden):
        h = jnp.sin(omega_0 * (jnp.concatenate([h, x], axis=-1) @ w.T + b))
    return jnp.sin(omega_0_out * (h @ w_out.T + b_out))


def init_siren_params(key, input_dim, output_dim, hidden_dim, n_layers, omega_0=30.0):
    def linear_init(k, out_f, in_f, w_bound):
        kw, kb = jax.random.split(k)
        w = jax.random.uniform(kw, (out_f, in_f), jnp.float32, -w_bound, w_bound)
        b_bound = 1.0 / (in_f ** 0.5)   # PyTorch nn.Linear default bias init
        b = jax.random.uniform(kb, (out_f,), jnp.float32, -b_bound, b_bound)
        return w, b

    keys = jax.random.split(key, n_layers + 1)
    # input layer: is_first=True -> uniform(-1/in_features, 1/in_features)
    w_in, b_in = linear_init(keys[0], hidden_dim, input_dim, 1.0 / input_dim)
    # hidden layers: in_features = hidden_dim + input_dim (skip concat)
    hid_in = hidden_dim + input_dim
    hb = (6.0 / hid_in) ** 0.5 / omega_0
    w_hidden, b_hidden = [], []
    for l in range(n_layers - 1):
        w, b = linear_init(keys[1 + l], hidden_dim, hid_in, hb)
        w_hidden.append(w)
        b_hidden.append(b)
    # output layer: plain nn.Linear default (kaiming-uniform-ish bound)
    w_out, b_out = linear_init(keys[-1], output_dim, hidden_dim, 1.0 / (hidden_dim ** 0.5))
    return w_in, b_in, w_hidden, b_hidden, w_out, b_out


# ---------------------------------------------------------------------------
# Self-test
# ---------------------------------------------------------------------------
if __name__ == "__main__":
    key = jax.random.PRNGKey(0)
    k_params, k_x = jax.random.split(key)

    # Small shapes consistent with the module: 2-D coords -> 3-channel output.
    batch = 77            # deliberately not a multiple of 8 to exercise padding
    input_dim = 2
    hidden_dim = 32
    output_dim = 3
    n_layers = 3          # 1 input layer + 2 skip-concat hidden layers + output linear
    omega_0 = 30.0
    omega_0_out = 30.0

    w_in, b_in, w_hidden, b_hidden, w_out, b_out = init_siren_params(
        k_params, input_dim, output_dim, hidden_dim, n_layers, omega_0)

    x = jax.random.uniform(k_x, (batch, input_dim), jnp.float32, -1.0, 1.0)

    packed = pack_siren_params(w_in, b_in, w_hidden, b_hidden, w_out, b_out)

    y = siren_network_forward(x, packed, omega_0, omega_0_out)
    y = jax.block_until_ready(y)

    y_ref = siren_network_ref(x, w_in, b_in, w_hidden, b_hidden, w_out, b_out,
                              omega_0, omega_0_out)

    assert y.shape == (batch, output_dim), y.shape
    assert jnp.allclose(y, y_ref, atol=1e-4, rtol=1e-4), "mismatch vs reference"

    print("KERNEL_OK")
</pallas_src>

<mosaic_0001>
module attributes {stable_mosaic.version = 11 : i64} {
  func.func @_siren_net_kernel(%arg0: i32, %arg1: memref<80x2xf32, #tpu.memory_space<vmem>>, %arg2: memref<2x32xf32, #tpu.memory_space<vmem>>, %arg3: memref<1x32xf32, #tpu.memory_space<vmem>>, %arg4: memref<2x32x32xf32, #tpu.memory_space<vmem>>, %arg5: memref<2x2x32xf32, #tpu.memory_space<vmem>>, %arg6: memref<2x1x32xf32, #tpu.memory_space<vmem>>, %arg7: memref<32x128xf32, #tpu.memory_space<vmem>>, %arg8: memref<1x128xf32, #tpu.memory_space<vmem>>, %arg9: memref<80x128xf32, #tpu.memory_space<vmem>>) attributes {dimension_semantics = [#tpu.dimension_semantics<parallel>], iteration_bounds = array<i64: 1>, scalar_prefetch = 0 : i64, scratch_operands = 0 : i64, tpu.core_type = #tpu.core_type<tc>, window_params = [{transform_indices = @transform_0, window_bounds = array<i64: 80, 2>}, {pipeline_mode = #tpu.pipeline_mode<synchronous>, transform_indices = @transform_1, window_bounds = array<i64: 2, 32>}, {pipeline_mode = #tpu.pipeline_mode<synchronous>, transform_indices = @transform_2, window_bounds = array<i64: 1, 32>}, {pipeline_mode = #tpu.pipeline_mode<synchronous>, transform_indices = @transform_3, window_bounds = array<i64: 2, 32, 32>}, {pipeline_mode = #tpu.pipeline_mode<synchronous>, transform_indices = @transform_4, window_bounds = array<i64: 2, 2, 32>}, {pipeline_mode = #tpu.pipeline_mode<synchronous>, transform_indices = @transform_5, window_bounds = array<i64: 2, 1, 32>}, {pipeline_mode = #tpu.pipeline_mode<synchronous>, transform_indices = @transform_6, window_bounds = array<i64: 32, 128>}, {pipeline_mode = #tpu.pipeline_mode<synchronous>, transform_indices = @transform_7, window_bounds = array<i64: 1, 128>}, {transform_indices = @transform_8, window_bounds = array<i64: 80, 128>}]} {
    %c0 = arith.constant 0 : index
    %c0_0 = arith.constant 0 : index
    %0 = vector.load %arg1[%c0, %c0_0] : memref<80x2xf32, #tpu.memory_space<vmem>>, vector<80x2xf32>
    %c0_1 = arith.constant 0 : index
    %c0_2 = arith.constant 0 : index
    %1 = vector.load %arg2[%c0_1, %c0_2] : memref<2x32xf32, #tpu.memory_space<vmem>>, vector<2x32xf32>
    %cst = arith.constant dense<0.000000e+00> : vector<80x32xf32>
    %2 = tpu.matmul %0, %1, %cst {dimension_numbers = #tpu.dot_dimension_numbers<[1], [0], [0], [1], [0, 0, 1, 1], [], []>} : vector<80x2xf32>, vector<2x32xf32>, vector<80x32xf32> -> vector<80x32xf32>
    %c0_3 = arith.constant 0 : index
    %c0_4 = arith.constant 0 : index
    %3 = vector.load %arg3[%c0_3, %c0_4] : memref<1x32xf32, #tpu.memory_space<vmem>>, vector<1x32xf32>
    %4 = vector.broadcast %3 : vector<1x32xf32> to vector<80x32xf32>
    %5 = arith.addf %2, %4 : vector<80x32xf32>
    %cst_5 = arith.constant 3.000000e+01 : f32
    %6 = vector.broadcast %cst_5 : f32 to vector<80x32xf32>
    %7 = arith.mulf %6, %5 : vector<80x32xf32>
    %8 = math.sin %7 : vector<80x32xf32>
    %c0_6 = arith.constant 0 : index
    %c0_7 = arith.constant 0 : index
    %c0_8 = arith.constant 0 : index
    %9 = vector.load %arg4[%c0_6, %c0_7, %c0_8] : memref<2x32x32xf32, #tpu.memory_space<vmem>>, vector<1x32x32xf32>
    %10 = vector.shape_cast %9 : vector<1x32x32xf32> to vector<32x32xf32>
    %cst_9 = arith.constant dense<0.000000e+00> : vector<80x32xf32>
    %11 = tpu.matmul %8, %10, %cst_9 {dimension_numbers = #tpu.dot_dimension_numbers<[1], [0], [0], [1], [0, 0, 1, 1], [], []>} : vector<80x32xf32>, vector<32x32xf32>, vector<80x32xf32> -> vector<80x32xf32>
    %c0_10 = arith.constant 0 : index
    %c0_11 = arith.constant 0 : index
    %c0_12 = arith.constant 0 : index
    %12 = vector.load %arg5[%c0_10, %c0_11, %c0_12] : memref<2x2x32xf32, #tpu.memory_space<vmem>>, vector<1x2x32xf32>
    %13 = vector.shape_cast %12 : vector<1x2x32xf32> to vector<2x32xf32>
    %cst_13 = arith.constant dense<0.000000e+00> : vector<80x32xf32>
    %14 = tpu.matmul %0, %13, %cst_13 {dimension_numbers = #tpu.dot_dimension_numbers<[1], [0], [0], [1], [0, 0, 1, 1], [], []>} : vector<80x2xf32>, vector<2x32xf32>, vector<80x32xf32> -> vector<80x32xf32>
    %15 = arith.addf %11, %14 : vector<80x32xf32>
    %c0_14 = arith.constant 0 : index
    %c0_15 = arith.constant 0 : index
    %c0_16 = arith.constant 0 : index
    %16 = vector.load %arg6[%c0_14, %c0_15, %c0_16] : memref<2x1x32xf32, #tpu.memory_space<vmem>>, vector<1x1x32xf32>
    %17 = vector.shape_cast %16 : vector<1x1x32xf32> to vector<1x32xf32>
    %18 = vector.broadcast %17 : vector<1x32xf32> to vector<80x32xf32>
    %19 = arith.addf %15, %18 : vector<80x32xf32>
    %cst_17 = arith.constant 3.000000e+01 : f32
    %20 = vector.broadcast %cst_17 : f32 to vector<80x32xf32>
    %21 = arith.mulf %20, %19 : vector<80x32xf32>
    %22 = math.sin %21 : vector<80x32xf32>
    %c1 = arith.constant 1 : index
    %c0_18 = arith.constant 0 : index
    %c0_19 = arith.constant 0 : index
    %23 = vector.load %arg4[%c1, %c0_18, %c0_19] : memref<2x32x32xf32, #tpu.memory_space<vmem>>, vector<1x32x32xf32>
    %24 = vector.shape_cast %23 : vector<1x32x32xf32> to vector<32x32xf32>
    %cst_20 = arith.constant dense<0.000000e+00> : vector<80x32xf32>
    %25 = tpu.matmul %22, %24, %cst_20 {dimension_numbers = #tpu.dot_dimension_numbers<[1], [0], [0], [1], [0, 0, 1, 1], [], []>} : vector<80x32xf32>, vector<32x32xf32>, vector<80x32xf32> -> vector<80x32xf32>
    %c1_21 = arith.constant 1 : index
    %c0_22 = arith.constant 0 : index
    %c0_23 = arith.constant 0 : index
    %26 = vector.load %arg5[%c1_21, %c0_22, %c0_23] : memref<2x2x32xf32, #tpu.memory_space<vmem>>, vector<1x2x32xf32>
    %27 = vector.shape_cast %26 : vector<1x2x32xf32> to vector<2x32xf32>
    %cst_24 = arith.constant dense<0.000000e+00> : vector<80x32xf32>
    %28 = tpu.matmul %0, %27, %cst_24 {dimension_numbers = #tpu.dot_dimension_numbers<[1], [0], [0], [1], [0, 0, 1, 1], [], []>} : vector<80x2xf32>, vector<2x32xf32>, vector<80x32xf32> -> vector<80x32xf32>
    %29 = arith.addf %25, %28 : vector<80x32xf32>
    %c1_25 = arith.constant 1 : index
    %c0_26 = arith.constant 0 : index
    %c0_27 = arith.constant 0 : index
    %30 = vector.load %arg6[%c1_25, %c0_26, %c0_27] : memref<2x1x32xf32, #tpu.memory_space<vmem>>, vector<1x1x32xf32>
    %31 = vector.shape_cast %30 : vector<1x1x32xf32> to vector<1x32xf32>
    %32 = vector.broadcast %31 : vector<1x32xf32> to vector<80x32xf32>
    %33 = arith.addf %29, %32 : vector<80x32xf32>
    %cst_28 = arith.constant 3.000000e+01 : f32
    %34 = vector.broadcast %cst_28 : f32 to vector<80x32xf32>
    %35 = arith.mulf %34, %33 : vector<80x32xf32>
    %36 = math.sin %35 : vector<80x32xf32>
    %c0_29 = arith.constant 0 : index
    %c0_30 = arith.constant 0 : index
    %37 = vector.load %arg7[%c0_29, %c0_30] : memref<32x128xf32, #tpu.memory_space<vmem>>, vector<32x128xf32>
    %cst_31 = arith.constant dense<0.000000e+00> : vector<80x128xf32>
    %38 = tpu.matmul %36, %37, %cst_31 {dimension_numbers = #tpu.dot_dimension_numbers<[1], [0], [0], [1], [0, 0, 1, 1], [], []>} : vector<80x32xf32>, vector<32x128xf32>, vector<80x128xf32> -> vector<80x128xf32>
    %c0_32 = arith.constant 0 : index
    %c0_33 = arith.constant 0 : index
    %39 = vector.load %arg8[%c0_32, %c0_33] : memref<1x128xf32, #tpu.memory_space<vmem>>, vector<1x128xf32>
    %40 = vector.broadcast %39 : vector<1x128xf32> to vector<80x128xf32>
    %41 = arith.addf %38, %40 : vector<80x128xf32>
    %cst_34 = arith.constant 3.000000e+01 : f32
    %42 = vector.broadcast %cst_34 : f32 to vector<80x128xf32>
    %43 = arith.mulf %42, %41 : vector<80x128xf32>
    %44 = math.sin %43 : vector<80x128xf32>
    %c0_35 = arith.constant 0 : index
    %c0_36 = arith.constant 0 : index
    %45 = vector.load %arg9[%c0_35, %c0_36] : memref<80x128xf32, #tpu.memory_space<vmem>>, vector<80x128xf32>
    tpu.vector_store %arg9[%c0_35, %c0_36], %44 {strides = array<i32>} : memref<80x128xf32, #tpu.memory_space<vmem>>, vector<80x128xf32>,
    return
  }
  func.func @transform_0(%arg0: i32) -> (i32, i32) {
    %c0_i32 = arith.constant 0 : i32
    %c0_i32_0 = arith.constant 0 : i32
    return %arg0, %c0_i32 : i32, i32
  }
  func.func @transform_1(%arg0: i32) -> (i32, i32) {
    %c0_i32 = arith.constant 0 : i32
    %c0_i32_0 = arith.constant 0 : i32
    %c0_i32_1 = arith.constant 0 : i32
    return %c0_i32, %c0_i32_0 : i32, i32
  }
  func.func @transform_2(%arg0: i32) -> (i32, i32) {
    %c0_i32 = arith.constant 0 : i32
    %c0_i32_0 = arith.constant 0 : i32
    %c0_i32_1 = arith.constant 0 : i32
    return %c0_i32, %c0_i32_0 : i32, i32
  }
  func.func @transform_3(%arg0: i32) -> (i32, i32, i32) {
    %c0_i32 = arith.constant 0 : i32
    %c0_i32_0 = arith.constant 0 : i32
    %c0_i32_1 = arith.constant 0 : i32
    %c0_i32_2 = arith.constant 0 : i32
    return %c0_i32, %c0_i32_0, %c0_i32_1 : i32, i32, i32
  }
  func.func @transform_4(%arg0: i32) -> (i32, i32, i32) {
    %c0_i32 = arith.constant 0 : i32
    %c0_i32_0 = arith.constant 0 : i32
    %c0_i32_1 = arith.constant 0 : i32
    %c0_i32_2 = arith.constant 0 : i32
    return %c0_i32, %c0_i32_0, %c0_i32_1 : i32, i32, i32
  }
  func.func @transform_5(%arg0: i32) -> (i32, i32, i32) {
    %c0_i32 = arith.constant 0 : i32
    %c0_i32_0 = arith.constant 0 : i32
    %c0_i32_1 = arith.constant 0 : i32
    %c0_i32_2 = arith.constant 0 : i32
    return %c0_i32, %c0_i32_0, %c0_i32_1 : i32, i32, i32
  }
  func.func @transform_6(%arg0: i32) -> (i32, i32) {
    %c0_i32 = arith.constant 0 : i32
    %c0_i32_0 = arith.constant 0 : i32
    %c0_i32_1 = arith.constant 0 : i32
    return %c0_i32, %c0_i32_0 : i32, i32
  }
  func.func @transform_7(%arg0: i32) -> (i32, i32) {
    %c0_i32 = arith.constant 0 : i32
    %c0_i32_0 = arith.constant 0 : i32
    %c0_i32_1 = arith.constant 0 : i32
    return %c0_i32, %c0_i32_0 : i32, i32
  }
  func.func @transform_8(%arg0: i32) -> (i32, i32) {
    %c0_i32 = arith.constant 0 : i32
    %c0_i32_0 = arith.constant 0 : i32
    return %arg0, %c0_i32 : i32, i32
  }
}

</mosaic_0001>

<llo_original>
// kernel: tpu_custom_call.1
$region0: #{tpu_custom_call.1}
  #allocation0 [shape = 'u32[]', space=smem, size = 0x4, offset = 0x4, fixed_abs, tag = 'smem constant byte address 0x4 - core index']
  #allocation1 [shape = 'u32[144,128]{1,0:T(1,128)}', space=vmem, size = 0x12000, scoped, tag = 'internal scratch']
  %s0 = inlined_call_operand.vmem [shape: f32[80,2], index: 0, kind: input, shape index: {}]
  %s1 = inlined_call_operand.vmem [shape: f32[2,32], index: 1, kind: input, shape index: {}]
  %s2 = inlined_call_operand.vmem [shape: f32[1,32], index: 2, kind: input, shape index: {}]
  %s3 = inlined_call_operand.vmem [shape: f32[2,32,32], index: 3, kind: input, shape index: {}]
  %s4 = inlined_call_operand.vmem [shape: f32[2,2,32], index: 4, kind: input, shape index: {}]
  %s5 = inlined_call_operand.vmem [shape: f32[2,1,32], index: 5, kind: input, shape index: {}]
  %s6 = inlined_call_operand.hbm [shape: f32[32,128], index: 6, kind: input, shape index: {}]
  %s7 = inlined_call_operand.vmem [shape: f32[1,128], index: 7, kind: input, shape index: {}]
  %s8 = inlined_call_operand.hbm [shape: f32[80,128], index: 8, kind: output, shape index: {}]
  %s9 = sld [smem:[#allocation0]]
  $region46: #{tpu_custom_call.1} parent=0
    _
  %s11 = ssub.s32 1, %s9
  %s12 = scalar_select 0, %s11, %s9
  $region1: #{tpu_custom_call.1} parent=0
    #allocation2 [shape = 'u8[16384]{0}', space=vmem, size = 0x4000, scoped, tag = 'input window, operand 6, single buffered']
    #allocation3 [shape = 's32[1]{0}', space=sflag, size = 0x4, scoped, tag = 'scoped memory for tpu_custom_call.1']
    #allocation4 [shape = 's32[1]{0}', space=sflag, size = 0x4, scoped, tag = 'scoped memory for tpu_custom_call.1']
    #allocation5 [shape = 'u8[40960]{0}', space=vmem, size = 0xa000, scoped, tag = 'output window, operand 0, single buffered']
    %13 = vsyncpa [#allocation3], 0
    %14 = vsyncpa [#allocation4], 0
    // Predicated region
    $region2: #{tpu_custom_call.1} parent=1 // pred_check
      _
    $region3: #{tpu_custom_call.1} parent=1 // pred_check_branch
      %16 = sbr.rel (0) target = $region5
    $region4: #{tpu_custom_call.1} parent=1 // pred_region
      _
    $region5: #{tpu_custom_call.1} parent=1 // pred_fallthru
      _
    // Predicated region
    $region6: #{tpu_custom_call.1} parent=1 // pred_check
      _
    $region7: #{tpu_custom_call.1} parent=1 // pred_check_branch
      %18 = sbr.rel (0) target = $region9
    $region8: #{tpu_custom_call.1} parent=1 // pred_region
      _
    $region9: #{tpu_custom_call.1} parent=1 // pred_fallthru
      _
    // Predicated region
    $region10: #{tpu_custom_call.1} parent=1 // pred_check
      _
    $region11: #{tpu_custom_call.1} parent=1 // pred_check_branch
      %20 = sbr.rel (0) target = $region13
    $region12: #{tpu_custom_call.1} parent=1 // pred_region
      _
    $region13: #{tpu_custom_call.1} parent=1 // pred_fallthru
      _
    // Predicated region
    $region14: #{tpu_custom_call.1} parent=1 // pred_check
      _
    $region15: #{tpu_custom_call.1} parent=1 // pred_check_branch
      %22 = sbr.rel (0) target = $region17
    $region16: #{tpu_custom_call.1} parent=1 // pred_region
      _
    $region17: #{tpu_custom_call.1} parent=1 // pred_fallthru
      _
    // Predicated region
    $region18: #{tpu_custom_call.1} parent=1 // pred_check
      _
    $region19: #{tpu_custom_call.1} parent=1 // pred_check_branch
      %24 = sbr.rel (0) target = $region21
    $region20: #{tpu_custom_call.1} parent=1 // pred_region
      _
    $region21: #{tpu_custom_call.1} parent=1 // pred_fallthru
      _
    // Predicated region
    $region22: #{tpu_custom_call.1} parent=1 // pred_check
      _
    $region23: #{tpu_custom_call.1} parent=1 // pred_check_branch
      %26 = sbr.rel (0) target = $region25
    $region24: #{tpu_custom_call.1} parent=1 // pred_region
      _
    $region25: #{tpu_custom_call.1} parent=1 // pred_fallthru
      _
    // Predicated region
    $region26: #{tpu_custom_call.1} parent=1 // pred_check
      _
    $region27: #{tpu_custom_call.1} parent=1 // pred_check_branch
      %28 = sbr.rel (0) target = $region29
    $region28: #{tpu_custom_call.1} parent=1 // pred_region
      %s30 = ssub.s32 512, 512
      %31 = vsyncadd [#allocation3], %s30
      %s32 = sshll.u32 [#allocation2], 4
      %s33 = int_to_ptr.vmem [resolvable:$true] %s32
      %38 = dma.hbm_to_vmem [thread:$0]  %s6, 512, %s33, [#allocation3], 128, 128, 8
    $region29: #{tpu_custom_call.1} parent=1 // pred_fallthru
      _
    // Predicated region
    $region30: #{tpu_custom_call.1} parent=1 // pred_check
      _
    $region31: #{tpu_custom_call.1} parent=1 // pred_check_branch
      %40 = sbr.rel (0) target = $region33
    $region32: #{tpu_custom_call.1} parent=1 // pred_region
      _
    $region33: #{tpu_custom_call.1} parent=1 // pred_fallthru
      _
    // Predicated region
    $region34: #{tpu_custom_call.1} parent=1 // pred_check
      _
    $region35: #{tpu_custom_call.1} parent=1 // pred_check_branch
      %42 = sbr.rel (0) target = $region37
    $region36: #{tpu_custom_call.1} parent=1 // pred_region
      %43 = dma.done [#allocation3], 512
    $region37: #{tpu_custom_call.1} parent=1 // pred_fallthru
      _
    %v44 = vld [vmem:[%s0] sm:$0xff]
    %v45 = vld [vmem:[%s0 + $0x8] sm:$0xff]
    %v46 = vld [vmem:[%s0 + $0x10] sm:$0xff]
    %v47 = vld [vmem:[%s0 + $0x18] sm:$0xff]
    %v48 = vld [vmem:[%s0 + $0x20] sm:$0xff]
    %v49 = vld [vmem:[%s0 + $0x28] sm:$0xff]
    %v50 = vld [vmem:[%s0 + $0x30] sm:$0xff]
    %v51 = vld [vmem:[%s0 + $0x38] sm:$0xff]
    %v52 = vld [vmem:[%s0 + $0x40] sm:$0xff]
    %v53 = vld [vmem:[%s0 + $0x48] sm:$0xff]
    %v54 = vld [vmem:[%s1] sm:$0x3]
    %v55 = vld [vmem:[%s2] sm:$0x1]
    %v57 = vlaneseq
    %v58 = vshrl.u32 %v57, 7
    %v59 = vsub.s32 0, %v58
    %v60 = vrot.slane %v55, %v59
    %vm62 = vcmask 15360
    %v64 = vsel %vm62, %v44, 0
    %v67 = vsel %vm62, %v45, 0
    %v70 = vsel %vm62, %v46, 0
    %v73 = vsel %vm62, %v47, 0
    %v76 = vsel %vm62, %v48, 0
    %v79 = vsel %vm62, %v49, 0
    %v82 = vsel %vm62, %v50, 0
    %v85 = vsel %vm62, %v51, 0
    %v88 = vsel %vm62, %v52, 0
    %v91 = vsel %vm62, %v53, 0
    %vm93 = vcmask 1041408
    %v95 = vsel %vm93, %v54, 0
    %97 = vmatprep.subr.mxu0 0.0
    %98 = vmatpush1.msra.mxu0 0.0
    %99 = vmatprep.subr.mxu0 0.0
    %100 = vmatpush1.msra.mxu0 0.0
    %101 = vmatprep.subr.mxu0 0.0
    %102 = vmatpush1.msra.mxu0 0.0
    %103 = vmatprep.subr.mxu0 0.0
    %104 = vmatpush1.msra.mxu0 0.0
    %105 = vmatprep.subr.mxu0 0.0
    %106 = vmatpush1.msra.mxu0 0.0
    %107 = vmatprep.subr.mxu0 0.0
    %108 = vmatpush1.msra.mxu0 0.0
    %109 = vmatprep.subr.mxu0 0.0
    %110 = vmatpush1.msra.mxu0 0.0
    %111 = vmatprep.subr.mxu0 0.0
    %112 = vmatpush1.msra.mxu0 0.0
    %113 = vmatprep.subr.mxu0 0.0
    %114 = vmatpush1.msra.mxu0 0.0
    %115 = vmatprep.subr.mxu0 0.0
    %116 = vmatpush1.msra.mxu0 0.0
    %117 = vmatprep.subr.mxu0 0.0
    %118 = vmatpush1.msra.mxu0 0.0
    %119 = vmatprep.subr.mxu0 0.0
    %120 = vmatpush1.msra.mxu0 0.0
    %121 = vmatprep.subr.mxu0 0.0
    %122 = vmatpush1.msra.mxu0 0.0
    %123 = vmatprep.subr.mxu0 0.0
    %124 = vmatpush1.msra.mxu0 0.0
    %125 = vmatprep.subr.mxu0 0.0
    %126 = vmatpush1.msra.mxu0 0.0
    %127 = vmatprep.subr.mxu0 0.0
    %128 = vmatpush1.msra.mxu0 %v95
    %129 = vmatprep.subr.mxu0 0.0
    %130 = vmatpush2.msra.mxu0 0.0
    %131 = vmatprep.subr.mxu0 0.0
    %132 = vmatpush2.msra.mxu0 0.0
    %133 = vmatprep.subr.mxu0 0.0
    %134 = vmatpush2.msra.mxu0 0.0
    %135 = vmatprep.subr.mxu0 0.0
    %136 = vmatpush2.msra.mxu0 0.0
    %137 = vmatprep.subr.mxu0 0.0
    %138 = vmatpush2.msra.mxu0 0.0
    %139 = vmatprep.subr.mxu0 0.0
    %140 = vmatpush2.msra.mxu0 0.0
    %141 = vmatprep.subr.mxu0 0.0
    %142 = vmatpush2.msra.mxu0 0.0
    %143 = vmatprep.subr.mxu0 0.0
    %144 = vmatpush2.msra.mxu0 0.0
    %145 = vmatprep.subr.mxu0 0.0
    %146 = vmatpush2.msra.mxu0 0.0
    %147 = vmatprep.subr.mxu0 0.0
    %148 = vmatpush2.msra.mxu0 0.0
    %149 = vmatprep.subr.mxu0 0.0
    %150 = vmatpush2.msra.mxu0 0.0
    %151 = vmatprep.subr.mxu0 0.0
    %152 = vmatpush2.msra.mxu0 0.0
    %153 = vmatprep.subr.mxu0 0.0
    %154 = vmatpush2.msra.mxu0 0.0
    %155 = vmatprep.subr.mxu0 0.0
    %156 = vmatpush2.msra.mxu0 0.0
    %157 = vmatprep.subr.mxu0 0.0
    %158 = vmatpush2.msra.mxu0 0.0
    %159 = vmatprep.subr.mxu0 0.0
    %160 = vmatpush2.msra.mxu0 0.0
    %161 = vmatprep.mubr.f32.mxu0 0.0
    %162 = vmatmul.mubr.f32.gmra.mxu0 %v64
    %v163 = vpop.f32.mrf.mxu0
    %v164 = vadd.f32 %v60, %v163
    %v165 = vpop.f32.mrf.mxu0
    %166 = vmatprep.mubr.f32.mxu0 0.0
    %167 = vmatmul.mubr.f32.gmra.mxu0 %v67
    %v168 = vpop.f32.mrf.mxu0
    %v169 = vadd.f32 %v60, %v168
    %v170 = vpop.f32.mrf.mxu0
    %171 = vmatprep.mubr.f32.mxu0 0.0
    %172 = vmatmul.mubr.f32.gmra.mxu0 %v70
    %v173 = vpop.f32.mrf.mxu0
    %v174 = vadd.f32 %v60, %v173
    %v175 = vpop.f32.mrf.mxu0
    %176 = vmatprep.mubr.f32.mxu0 0.0
    %177 = vmatmul.mubr.f32.gmra.mxu0 %v73
    %v178 = vpop.f32.mrf.mxu0
    %v179 = vadd.f32 %v60, %v178
    %v180 = vpop.f32.mrf.mxu0
    %181 = vmatprep.mubr.f32.mxu0 0.0
    %182 = vmatmul.mubr.f32.gmra.mxu0 %v76
    %v183 = vpop.f32.mrf.mxu0
    %v184 = vadd.f32 %v60, %v183
    %v185 = vpop.f32.mrf.mxu0
    %186 = vmatprep.mubr.f32.mxu0 0.0
    %187 = vmatmul.mubr.f32.gmra.mxu0 %v79
    %v188 = vpop.f32.mrf.mxu0
    %v189 = vadd.f32 %v60, %v188
    %v190 = vpop.f32.mrf.mxu0
    %191 = vmatprep.mubr.f32.mxu0 0.0
    %192 = vmatmul.mubr.f32.gmra.mxu0 %v82
    %v193 = vpop.f32.mrf.mxu0
    %v194 = vadd.f32 %v60, %v193
    %v195 = vpop.f32.mrf.mxu0
    %196 = vmatprep.mubr.f32.mxu0 0.0
    %197 = vmatmul.mubr.f32.gmra.mxu0 %v85
    %v198 = vpop.f32.mrf.mxu0
    %v199 = vadd.f32 %v60, %v198
    %v200 = vpop.f32.mrf.mxu0
    %201 = vmatprep.mubr.f32.mxu0 0.0
    %202 = vmatmul.mubr.f32.gmra.mxu0 %v88
    %v203 = vpop.f32.mrf.mxu0
    %v204 = vadd.f32 %v60, %v203
    %v205 = vpop.f32.mrf.mxu0
    %206 = vmatprep.mubr.f32.mxu0 0.0
    %207 = vmatmul.mubr.f32.gmra.mxu0 %v91
    %v208 = vpop.f32.mrf.mxu0
    %v209 = vadd.f32 %v60, %v208
    %v210 = vpop.f32.mrf.mxu0
    %211 = vdwg.mxu0
    %v212 = vmul.f32 %v164, 30.0
    %v213 = vmul.f32 %v169, 30.0
    %v214 = vmul.f32 %v174, 30.0
    %v215 = vmul.f32 %v179, 30.0
    %v216 = vmul.f32 %v184, 30.0
    %v217 = vmul.f32 %v189, 30.0
    %v218 = vmul.f32 %v194, 30.0
    %v219 = vmul.f32 %v199, 30.0
    %v220 = vmul.f32 %v204, 30.0
    %v221 = vmul.f32 %v209, 30.0
    %v222 = vand.u32 2147483647, %v212
    %vm223 = vcmp.le.f32.partialorder %v222, 0.7853982
    %vm224 = vcmp.lt.s32.totalorder %v212, 0
    %v225 = vand.u32 %v212, 2139095040
    %v226 = vshrl.u32 %v225, 23
    %v227 = vsub.s32 %v226, 127
    %v228 = vand.u32 2147483647, %v212
    %v229 = vand.u32 %v228, 8388607
    %v230 = vor.u32 %v229, 8388608
    %v231 = vsub.s32 0, %v230
    %v232 = vadd.s32 %v227, 1
    %vm233 = vcmp.gt.s32.totalorder %v232, 0
    %v234 = vsel %vm233, %v232, 0
    %v235 = vshrl.u32 %v234, 5
    %v236 = vand.u32 %v234, 31
    %v237 = vsub.s32 32, %v236
    %v238 = vshrl.u32 683565275, %v237
    %v239 = vshll.u32 683565275, %v236
    %v240 = vshrl.u32 2475754826, %v237
    %v241 = vor.u32 %v239, %v240
    %v242 = vshll.u32 2475754826, %v236
    %v243 = vshrl.u32 2131351028, %v237
    %v244 = vor.u32 %v242, %v243
    %v245 = vshll.u32 2131351028, %v236
    %v246 = vshrl.u32 2102212464, %v237
    %v247 = vor.u32 %v245, %v246
    %v248 = vshll.u32 2102212464, %v236
    %v249 = vshrl.u32 920167782, %v237
    %v250 = vor.u32 %v248, %v249
    %v251 = vshll.u32 920167782, %v236
    %v252 = vshrl.u32 1326507024, %v237
    %v253 = vor.u32 %v251, %v252
    %vm254 = vcmp.lt.s32.totalorder %v235, 1
    %vm255 = vcmp.lt.s32.totalorder %v235, 2
    %vm256 = vcmp.lt.s32.totalorder %v235, 3
    %vm257 = vcmp.lt.s32.totalorder %v235, 4
    %v258 = vsel %vm254, %v238, %v241
    %v259 = vsel %vm257, %v247, 2102212464
    %v260 = vsel %vm256, %v244, %v259
    %v261 = vsel %vm255, %v258, %v260
    %v262 = vsel %vm254, %v241, %v244
    %v263 = vsel %vm257, %v250, 920167782
    %v264 = vsel %vm256, %v247, %v263
    %v265 = vsel %vm255, %v262, %v264
    %v266 = vsel %vm254, %v244, %v247
    %v267 = vsel %vm257, %v253, 1326507024
    %v268 = vsel %vm256, %v250, %v267
    %v269 = vsel %vm255, %v266, %v268
    %v270 = vshll.u32 %v230, 8
    %v271 = vmul.u32.u64.compose %v270, %v269
    %v272 = vextract.low.u32 %v271
    %v273 = vextract.high.u32 %v271
    %v274 = vmul.u32.u64.compose %v270, %v265
    %v275 = vextract.low.u32 %v274
    %v276 = vextract.high.u32 %v274
    %v277 = vmul.u32 %v270, %v261
    %v278 = vadd.s32 %v273, %v275
    %vm279 = vc.u32 %v273, %v275
    %v280 = vadd.s32 %v276, 1
    %v281 = vsel %vm279, %v280, %v276
    %v282 = vadd.s32 %v277, %v281
    %v283 = vadd.s32 %v282, 536870912
    %v284 = vshrl.u32 %v283, 30
    %v285 = vshll.u32 %v284, 30
    %v286 = vsub.s32 %v282, %v285
    %vm287 = vcmp.lt.s32.totalorder %v286, 0
    %v288 = vsub.s32 0, %v286
    %v289 = vsel %vm287, %v288, %v286
    %v290 = vclz %v289
    %v291 = vsub.s32 %v290, 2
    %vm292 = vcmp.gt.s32.totalorder 0, %v291
    %v293 = vsel %vm292, 0, %v291
    %v294 = vsub.s32 32, %v293
    %v295 = vshll.u32 %v286, %v293
    %v296 = vshrl.u32 %v278, %v294
    %v297 = vor.u32 %v295, %v296
    %v298 = vsub.s32 4294967266, %v293
    %v299 = vadd.s32 %v298, 127
    %v300 = vshll.u32 %v299, 23
    %v301 = vor.u32 4788187, %v300
    %v302 = vand.u32 2147483647, %v301
    %v304 = vcvt.s32.f32 %v297
    %v305 = vmul.f32 %v304, %v302
    %v306 = vxor.u32 %v305, 2147483648
    %v307 = vsel %vm224, %v306, %v305
    %v308 = vsub.s32 4, %v284
    %v309 = vsel %vm224, %v308, %v284
    %v310 = vsel %vm223, %v212, %v307
    %v311 = vsel %vm223, 0, %v309
    %v312 = vcosq.f32.pop %v310
    %v313 = vsinq.f32.pop %v310
    %vm314 = vweird.f32 %v212
    %v315 = vadd.s32 %v311, 3
    %v316 = vand.u32 %v315, 3
    %vm317 = vcmp.lt.s32.totalorder %v316, 2
    %vm318 = vcmp.eq.s32.totalorder %v316, 0
    %v319 = vxor.u32 %v313, 2147483648
    %v320 = vsel %vm318, %v312, %v319
    %vm321 = vcmp.eq.s32.totalorder %v316, 2
    %v322 = vxor.u32 %v312, 2147483648
    %v323 = vsel %vm321, %v322, %v313
    %v324 = vsel %vm317, %v320, %v323
    %v325 = vsel %vm314, nan, %v324
    %v326 = vand.u32 2147483647, %v213
    %vm327 = vcmp.le.f32.partialorder %v326, 0.7853982
    %vm328 = vcmp.lt.s32.totalorder %v213, 0
    %v329 = vand.u32 %v213, 2139095040
    %v330 = vshrl.u32 %v329, 23
    %v331 = vsub.s32 %v330, 127
    %v332 = vand.u32 2147483647, %v213
    %v333 = vand.u32 %v332, 8388607
    %v334 = vor.u32 %v333, 8388608
    %v335 = vsub.s32 0, %v334
    %v336 = vadd.s32 %v331, 1
    %vm337 = vcmp.gt.s32.totalorder %v336, 0
    %v338 = vsel %vm337, %v336, 0
    %v339 = vshrl.u32 %v338, 5
    %v340 = vand.u32 %v338, 31
    %v341 = vsub.s32 32, %v340
    %v342 = vshrl.u32 683565275, %v341
    %v343 = vshll.u32 683565275, %v340
    %v344 = vshrl.u32 2475754826, %v341
    %v345 = vor.u32 %v343, %v344
    %v346 = vshll.u32 2475754826, %v340
    %v347 = vshrl.u32 2131351028, %v341
    %v348 = vor.u32 %v346, %v347
    %v349 = vshll.u32 2131351028, %v340
    %v350 = vshrl.u32 2102212464, %v341
    %v351 = vor.u32 %v349, %v350
    %v352 = vshll.u32 2102212464, %v340
    %v353 = vshrl.u32 920167782, %v341
    %v354 = vor.u32 %v352, %v353
    %v355 = vshll.u32 920167782, %v340
    %v356 = vshrl.u32 1326507024, %v341
    %v357 = vor.u32 %v355, %v356
    %vm358 = vcmp.lt.s32.totalorder %v339, 1
    %vm359 = vcmp.lt.s32.totalorder %v339, 2
    %vm360 = vcmp.lt.s32.totalorder %v339, 3
    %vm361 = vcmp.lt.s32.totalorder %v339, 4
    %v362 = vsel %vm358, %v342, %v345
    %v363 = vsel %vm361, %v351, 2102212464
    %v364 = vsel %vm360, %v348, %v363
    %v365 = vsel %vm359, %v362, %v364
    %v366 = vsel %vm358, %v345, %v348
    %v367 = vsel %vm361, %v354, 920167782
    %v368 = vsel %vm360, %v351, %v367
    %v369 = vsel %vm359, %v366, %v368
    %v370 = vsel %vm358, %v348, %v351
    %v371 = vsel %vm361, %v357, 1326507024
    %v372 = vsel %vm360, %v354, %v371
    %v373 = vsel %vm359, %v370, %v372
    %v374 = vshll.u32 %v334, 8
    %v375 = vmul.u32.u64.compose %v374, %v373
    %v376 = vextract.low.u32 %v375
    %v377 = vextract.high.u32 %v375
    %v378 = vmul.u32.u64.compose %v374, %v369
    %v379 = vextract.low.u32 %v378
    %v380 = vextract.high.u32 %v378
    %v381 = vmul.u32 %v374, %v365
    %v382 = vadd.s32 %v377, %v379
    %vm383 = vc.u32 %v377, %v379
    %v384 = vadd.s32 %v380, 1
    %v385 = vsel %vm383, %v384, %v380
    %v386 = vadd.s32 %v381, %v385
    %v387 = vadd.s32 %v386, 536870912
    %v388 = vshrl.u32 %v387, 30
    %v389 = vshll.u32 %v388, 30
    %v390 = vsub.s32 %v386, %v389
    %vm391 = vcmp.lt.s32.totalorder %v390, 0
    %v392 = vsub.s32 0, %v390
    %v393 = vsel %vm391, %v392, %v390
    %v394 = vclz %v393
    %v395 = vsub.s32 %v394, 2
    %vm396 = vcmp.gt.s32.totalorder 0, %v395
    %v397 = vsel %vm396, 0, %v395
    %v398 = vsub.s32 32, %v397
    %v399 = vshll.u32 %v390, %v397
    %v400 = vshrl.u32 %v382, %v398
    %v401 = vor.u32 %v399, %v400
    %v402 = vsub.s32 4294967266, %v397
    %v403 = vadd.s32 %v402, 127
    %v404 = vshll.u32 %v403, 23
    %v405 = vor.u32 4788187, %v404
    %v406 = vand.u32 2147483647, %v405
    %v408 = vcvt.s32.f32 %v401
    %v409 = vmul.f32 %v408, %v406
    %v410 = vxor.u32 %v409, 2147483648
    %v411 = vsel %vm328, %v410, %v409
    %v412 = vsub.s32 4, %v388
    %v413 = vsel %vm328, %v412, %v388
    %v414 = vsel %vm327, %v213, %v411
    %v415 = vsel %vm327, 0, %v413
    %v416 = vcosq.f32.pop %v414
    %v417 = vsinq.f32.pop %v414
    %vm418 = vweird.f32 %v213
    %v419 = vadd.s32 %v415, 3
    %v420 = vand.u32 %v419, 3
    %vm421 = vcmp.lt.s32.totalorder %v420, 2
    %vm422 = vcmp.eq.s32.totalorder %v420, 0
    %v423 = vxor.u32 %v417, 2147483648
    %v424 = vsel %vm422, %v416, %v423
    %vm425 = vcmp.eq.s32.totalorder %v420, 2
    %v426 = vxor.u32 %v416, 2147483648
    %v427 = vsel %vm425, %v426, %v417
    %v428 = vsel %vm421, %v424, %v427
    %v429 = vsel %vm418, nan, %v428
    %v430 = vand.u32 2147483647, %v214
    %vm431 = vcmp.le.f32.partialorder %v430, 0.7853982
    %vm432 = vcmp.lt.s32.totalorder %v214, 0
    %v433 = vand.u32 %v214, 2139095040
    %v434 = vshrl.u32 %v433, 23
    %v435 = vsub.s32 %v434, 127
    %v436 = vand.u32 2147483647, %v214
    %v437 = vand.u32 %v436, 8388607
    %v438 = vor.u32 %v437, 8388608
    %v439 = vsub.s32 0, %v438
    %v440 = vadd.s32 %v435, 1
    %vm441 = vcmp.gt.s32.totalorder %v440, 0
    %v442 = vsel %vm441, %v440, 0
    %v443 = vshrl.u32 %v442, 5
    %v444 = vand.u32 %v442, 31
    %v445 = vsub.s32 32, %v444
    %v446 = vshrl.u32 683565275, %v445
    %v447 = vshll.u32 683565275, %v444
    %v448 = vshrl.u32 2475754826, %v445
    %v449 = vor.u32 %v447, %v448
    %v450 = vshll.u32 2475754826, %v444
    %v451 = vshrl.u32 2131351028, %v445
    %v452 = vor.u32 %v450, %v451
    %v453 = vshll.u32 2131351028, %v444
    %v454 = vshrl.u32 2102212464, %v445
    %v455 = vor.u32 %v453, %v454
    %v456 = vshll.u32 2102212464, %v444
    %v457 = vshrl.u32 920167782, %v445
    %v458 = vor.u32 %v456, %v457
    %v459 = vshll.u32 920167782, %v444
    %v460 = vshrl.u32 1326507024, %v445
    %v461 = vor.u32 %v459, %v460
    %vm462 = vcmp.lt.s32.totalorder %v443, 1
    %vm463 = vcmp.lt.s32.totalorder %v443, 2
    %vm464 = vcmp.lt.s32.totalorder %v443, 3
    %vm465 = vcmp.lt.s32.totalorder %v443, 4
    %v466 = vsel %vm462, %v446, %v449
    %v467 = vsel %vm465, %v455, 2102212464
    %v468 = vsel %vm464, %v452, %v467
    %v469 = vsel %vm463, %v466, %v468
    %v470 = vsel %vm462, %v449, %v452
    %v471 = vsel %vm465, %v458, 920167782
    %v472 = vsel %vm464, %v455, %v471
    %v473 = vsel %vm463, %v470, %v472
    %v474 = vsel %vm462, %v452, %v455
    %v475 = vsel %vm465, %v461, 1326507024
    %v476 = vsel %vm464, %v458, %v475
    %v477 = vsel %vm463, %v474, %v476
    %v478 = vshll.u32 %v438, 8
    %v479 = vmul.u32.u64.compose %v478, %v477
    %v480 = vextract.low.u32 %v479
    %v481 = vextract.high.u32 %v479
    %v482 = vmul.u32.u64.compose %v478, %v473
    %v483 = vextract.low.u32 %v482
    %v484 = vextract.high.u32 %v482
    %v485 = vmul.u32 %v478, %v469
    %v486 = vadd.s32 %v481, %v483
    %vm487 = vc.u32 %v481, %v483
    %v488 = vadd.s32 %v484, 1
    %v489 = vsel %vm487, %v488, %v484
    %v490 = vadd.s32 %v485, %v489
    %v491 = vadd.s32 %v490, 536870912
    %v492 = vshrl.u32 %v491, 30
    %v493 = vshll.u32 %v492, 30
    %v494 = vsub.s32 %v490, %v493
    %vm495 = vcmp.lt.s32.totalorder %v494, 0
    %v496 = vsub.s32 0, %v494
    %v497 = vsel %vm495, %v496, %v494
    %v498 = vclz %v497
    %v499 = vsub.s32 %v498, 2
    %vm500 = vcmp.gt.s32.totalorder 0, %v499
    %v501 = vsel %vm500, 0, %v499
    %v502 = vsub.s32 32, %v501
    %v503 = vshll.u32 %v494, %v501
    %v504 = vshrl.u32 %v486, %v502
    %v505 = vor.u32 %v503, %v504
    %v506 = vsub.s32 4294967266, %v501
    %v507 = vadd.s32 %v506, 127
    %v508 = vshll.u32 %v507, 23
    %v509 = vor.u32 4788187, %v508
    %v510 = vand.u32 2147483647, %v509
    %v512 = vcvt.s32.f32 %v505
    %v513 = vmul.f32 %v512, %v510
    %v514 = vxor.u32 %v513, 2147483648
    %v515 = vsel %vm432, %v514, %v513
    %v516 = vsub.s32 4, %v492
    %v517 = vsel %vm432, %v516, %v492
    %v518 = vsel %vm431, %v214, %v515
    %v519 = vsel %vm431, 0, %v517
    %v520 = vcosq.f32.pop %v518
    %v521 = vsinq.f32.pop %v518
    %vm522 = vweird.f32 %v214
    %v523 = vadd.s32 %v519, 3
    %v524 = vand.u32 %v523, 3
    %vm525 = vcmp.lt.s32.totalorder %v524, 2
    %vm526 = vcmp.eq.s32.totalorder %v524, 0
    %v527 = vxor.u32 %v521, 2147483648
    %v528 = vsel %vm526, %v520, %v527
    %vm529 = vcmp.eq.s32.totalorder %v524, 2
    %v530 = vxor.u32 %v520, 2147483648
    %v531 = vsel %vm529, %v530, %v521
    %v532 = vsel %vm525, %v528, %v531
    %v533 = vsel %vm522, nan, %v532
    %v534 = vand.u32 2147483647, %v215
    %vm535 = vcmp.le.f32.partialorder %v534, 0.7853982
    %vm536 = vcmp.lt.s32.totalorder %v215, 0
    %v537 = vand.u32 %v215, 2139095040
    %v538 = vshrl.u32 %v537, 23
    %v539 = vsub.s32 %v538, 127
    %v540 = vand.u32 2147483647, %v215
    %v541 = vand.u32 %v540, 8388607
    %v542 = vor.u32 %v541, 8388608
    %v543 = vsub.s32 0, %v542
    %v544 = vadd.s32 %v539, 1
    %vm545 = vcmp.gt.s32.totalorder %v544, 0
    %v546 = vsel %vm545, %v544, 0
    %v547 = vshrl.u32 %v546, 5
    %v548 = vand.u32 %v546, 31
    %v549 = vsub.s32 32, %v548
    %v550 = vshrl.u32 683565275, %v549
    %v551 = vshll.u32 683565275, %v548
    %v552 = vshrl.u32 2475754826, %v549
    %v553 = vor.u32 %v551, %v552
    %v554 = vshll.u32 2475754826, %v548
    %v555 = vshrl.u32 2131351028, %v549
    %v556 = vor.u32 %v554, %v555
    %v557 = vshll.u32 2131351028, %v548
    %v558 = vshrl.u32 2102212464, %v549
    %v559 = vor.u32 %v557, %v558
    %v560 = vshll.u32 2102212464, %v548
    %v561 = vshrl.u32 920167782, %v549
    %v562 = vor.u32 %v560, %v561
    %v563 = vshll.u32 920167782, %v548
    %v564 = vshrl.u32 1326507024, %v549
    %v565 = vor.u32 %v563, %v564
    %vm566 = vcmp.lt.s32.totalorder %v547, 1
    %vm567 = vcmp.lt.s32.totalorder %v547, 2
    %vm568 = vcmp.lt.s32.totalorder %v547, 3
    %vm569 = vcmp.lt.s32.totalorder %v547, 4
    %v570 = vsel %vm566, %v550, %v553
    %v571 = vsel %vm569, %v559, 2102212464
    %v572 = vsel %vm568, %v556, %v571
    %v573 = vsel %vm567, %v570, %v572
    %v574 = vsel %vm566, %v553, %v556
    %v575 = vsel %vm569, %v562, 920167782
    %v576 = vsel %vm568, %v559, %v575
    %v577 = vsel %vm567, %v574, %v576
    %v578 = vsel %vm566, %v556, %v559
    %v579 = vsel %vm569, %v565, 1326507024
    %v580 = vsel %vm568, %v562, %v579
    %v581 = vsel %vm567, %v578, %v580
    %v582 = vshll.u32 %v542, 8
    %v583 = vmul.u32.u64.compose %v582, %v581
    %v584 = vextract.low.u32 %v583
    %v585 = vextract.high.u32 %v583
    %v586 = vmul.u32.u64.compose %v582, %v577
    %v587 = vextract.low.u32 %v586
    %v588 = vextract.high.u32 %v586
    %v589 = vmul.u32 %v582, %v573
    %v590 = vadd.s32 %v585, %v587
    %vm591 = vc.u32 %v585, %v587
    %v592 = vadd.s32 %v588, 1
    %v593 = vsel %vm591, %v592, %v588
    %v594 = vadd.s32 %v589, %v593
    %v595 = vadd.s32 %v594, 536870912
    %v596 = vshrl.u32 %v595, 30
    %v597 = vshll.u32 %v596, 30
    %v598 = vsub.s32 %v594, %v597
    %vm599 = vcmp.lt.s32.totalorder %v598, 0
    %v600 = vsub.s32 0, %v598
    %v601 = vsel %vm599, %v600, %v598
    %v602 = vclz %v601
    %v603 = vsub.s32 %v602, 2
    %vm604 = vcmp.gt.s32.totalorder 0, %v603
    %v605 = vsel %vm604, 0, %v603
    %v606 = vsub.s32 32, %v605
    %v607 = vshll.u32 %v598, %v605
    %v608 = vshrl.u32 %v590, %v606
    %v609 = vor.u32 %v607, %v608
    %v610 = vsub.s32 4294967266, %v605
    %v611 = vadd.s32 %v610, 127
    %v612 = vshll.u32 %v611, 23
    %v613 = vor.u32 4788187, %v612
    %v614 = vand.u32 2147483647, %v613
    %v616 = vcvt.s32.f32 %v609
    %v617 = vmul.f32 %v616, %v614
    %v618 = vxor.u32 %v617, 2147483648
    %v619 = vsel %vm536, %v618, %v617
    %v620 = vsub.s32 4, %v596
    %v621 = vsel %vm536, %v620, %v596
    %v622 = vsel %vm535, %v215, %v619
    %v623 = vsel %vm535, 0, %v621
    %v624 = vcosq.f32.pop %v622
    %v625 = vsinq.f32.pop %v622
    %vm626 = vweird.f32 %v215
    %v627 = vadd.s32 %v623, 3
    %v628 = vand.u32 %v627, 3
    %vm629 = vcmp.lt.s32.totalorder %v628, 2
    %vm630 = vcmp.eq.s32.totalorder %v628, 0
    %v631 = vxor.u32 %v625, 2147483648
    %v632 = vsel %vm630, %v624, %v631
    %vm633 = vcmp.eq.s32.totalorder %v628, 2
    %v634 = vxor.u32 %v624, 2147483648
    %v635 = vsel %vm633, %v634, %v625
    %v636 = vsel %vm629, %v632, %v635
    %v637 = vsel %vm626, nan, %v636
    %v638 = vand.u32 2147483647, %v216
    %vm639 = vcmp.le.f32.partialorder %v638, 0.7853982
    %vm640 = vcmp.lt.s32.totalorder %v216, 0
    %v641 = vand.u32 %v216, 2139095040
    %v642 = vshrl.u32 %v641, 23
    %v643 = vsub.s32 %v642, 127
    %v644 = vand.u32 2147483647, %v216
    %v645 = vand.u32 %v644, 8388607
    %v646 = vor.u32 %v645, 8388608
    %v647 = vsub.s32 0, %v646
    %v648 = vadd.s32 %v643, 1
    %vm649 = vcmp.gt.s32.totalorder %v648, 0
    %v650 = vsel %vm649, %v648, 0
    %v651 = vshrl.u32 %v650, 5
    %v652 = vand.u32 %v650, 31
    %v653 = vsub.s32 32, %v652
    %v654 = vshrl.u32 683565275, %v653
    %v655 = vshll.u32 683565275, %v652
    %v656 = vshrl.u32 2475754826, %v653
    %v657 = vor.u32 %v655, %v656
    %v658 = vshll.u32 2475754826, %v652
    %v659 = vshrl.u32 2131351028, %v653
    %v660 = vor.u32 %v658, %v659
    %v661 = vshll.u32 2131351028, %v652
    %v662 = vshrl.u32 2102212464, %v653
    %v663 = vor.u32 %v661, %v662
    %v664 = vshll.u32 2102212464, %v652
    %v665 = vshrl.u32 920167782, %v653
    %v666 = vor.u32 %v664, %v665
    %v667 = vshll.u32 920167782, %v652
    %v668 = vshrl.u32 1326507024, %v653
    %v669 = vor.u32 %v667, %v668
    %vm670 = vcmp.lt.s32.totalorder %v651, 1
    %vm671 = vcmp.lt.s32.totalorder %v651, 2
    %vm672 = vcmp.lt.s32.totalorder %v651, 3
    %vm673 = vcmp.lt.s32.totalorder %v651, 4
    %v674 = vsel %vm670, %v654, %v657
    %v675 = vsel %vm673, %v663, 2102212464
    %v676 = vsel %vm672, %v660, %v675
    %v677 = vsel %vm671, %v674, %v676
    %v678 = vsel %vm670, %v657, %v660
    %v679 = vsel %vm673, %v666, 920167782
    %v680 = vsel %vm672, %v663, %v679
    %v681 = vsel %vm671, %v678, %v680
    %v682 = vsel %vm670, %v660, %v663
    %v683 = vsel %vm673, %v669, 1326507024
    %v684 = vsel %vm672, %v666, %v683
    %v685 = vsel %vm671, %v682, %v684
    %v686 = vshll.u32 %v646, 8
    %v687 = vmul.u32.u64.compose %v686, %v685
    %v688 = vextract.low.u32 %v687
    %v689 = vextract.high.u32 %v687
    %v690 = vmul.u32.u64.compose %v686, %v681
    %v691 = vextract.low.u32 %v690
    %v692 = vextract.high.u32 %v690
    %v693 = vmul.u32 %v686, %v677
    %v694 = vadd.s32 %v689, %v691
    %vm695 = vc.u32 %v689, %v691
    %v696 = vadd.s32 %v692, 1
    %v697 = vsel %vm695, %v696, %v692
    %v698 = vadd.s32 %v693, %v697
    %v699 = vadd.s32 %v698, 536870912
    %v700 = vshrl.u32 %v699, 30
    %v701 = vshll.u32 %v700, 30
    %v702 = vsub.s32 %v698, %v701
    %vm703 = vcmp.lt.s32.totalorder %v702, 0
    %v704 = vsub.s32 0, %v702
    %v705 = vsel %vm703, %v704, %v702
    %v706 = vclz %v705
    %v707 = vsub.s32 %v706, 2
    %vm708 = vcmp.gt.s32.totalorder 0, %v707
    %v709 = vsel %vm708, 0, %v707
    %v710 = vsub.s32 32, %v709
    %v711 = vshll.u32 %v702, %v709
    %v712 = vshrl.u32 %v694, %v710
    %v713 = vor.u32 %v711, %v712
    %v714 = vsub.s32 4294967266, %v709
    %v715 = vadd.s32 %v714, 127
    %v716 = vshll.u32 %v715, 23
    %v717 = vor.u32 4788187, %v716
    %v718 = vand.u32 2147483647, %v717
    %v720 = vcvt.s32.f32 %v713
    %v721 = vmul.f32 %v720, %v718
    %v722 = vxor.u32 %v721, 2147483648
    %v723 = vsel %vm640, %v722, %v721
    %v724 = vsub.s32 4, %v700
    %v725 = vsel %vm640, %v724, %v700
    %v726 = vsel %vm639, %v216, %v723
    %v727 = vsel %vm639, 0, %v725
    %v728 = vcosq.f32.pop %v726
    %v729 = vsinq.f32.pop %v726
    %vm730 = vweird.f32 %v216
    %v731 = vadd.s32 %v727, 3
    %v732 = vand.u32 %v731, 3
    %vm733 = vcmp.lt.s32.totalorder %v732, 2
    %vm734 = vcmp.eq.s32.totalorder %v732, 0
    %v735 = vxor.u32 %v729, 2147483648
    %v736 = vsel %vm734, %v728, %v735
    %vm737 = vcmp.eq.s32.totalorder %v732, 2
    %v738 = vxor.u32 %v728, 2147483648
    %v739 = vsel %vm737, %v738, %v729
    %v740 = vsel %vm733, %v736, %v739
    %v741 = vsel %vm730, nan, %v740
    %v742 = vand.u32 2147483647, %v217
    %vm743 = vcmp.le.f32.partialorder %v742, 0.7853982
    %vm744 = vcmp.lt.s32.totalorder %v217, 0
    %v745 = vand.u32 %v217, 2139095040
    %v746 = vshrl.u32 %v745, 23
    %v747 = vsub.s32 %v746, 127
    %v748 = vand.u32 2147483647, %v217
    %v749 = vand.u32 %v748, 8388607
    %v750 = vor.u32 %v749, 8388608
    %v751 = vsub.s32 0, %v750
    %v752 = vadd.s32 %v747, 1
    %vm753 = vcmp.gt.s32.totalorder %v752, 0
    %v754 = vsel %vm753, %v752, 0
    %v755 = vshrl.u32 %v754, 5
    %v756 = vand.u32 %v754, 31
    %v757 = vsub.s32 32, %v756
    %v758 = vshrl.u32 683565275, %v757
    %v759 = vshll.u32 683565275, %v756
    %v760 = vshrl.u32 2475754826, %v757
    %v761 = vor.u32 %v759, %v760
    %v762 = vshll.u32 2475754826, %v756
    %v763 = vshrl.u32 2131351028, %v757
    %v764 = vor.u32 %v762, %v763
    %v765 = vshll.u32 2131351028, %v756
    %v766 = vshrl.u32 2102212464, %v757
    %v767 = vor.u32 %v765, %v766
    %v768 = vshll.u32 2102212464, %v756
    %v769 = vshrl.u32 920167782, %v757
    %v770 = vor.u32 %v768, %v769
    %v771 = vshll.u32 920167782, %v756
    %v772 = vshrl.u32 1326507024, %v757
    %v773 = vor.u32 %v771, %v772
    %vm774 = vcmp.lt.s32.totalorder %v755, 1
    %vm775 = vcmp.lt.s32.totalorder %v755, 2
    %vm776 = vcmp.lt.s32.totalorder %v755, 3
    %vm777 = vcmp.lt.s32.totalorder %v755, 4
    %v778 = vsel %vm774, %v758, %v761
    %v779 = vsel %vm777, %v767, 2102212464
    %v780 = vsel %vm776, %v764, %v779
    %v781 = vsel %vm775, %v778, %v780
    %v782 = vsel %vm774, %v761, %v764
    %v783 = vsel %vm777, %v770, 920167782
    %v784 = vsel %vm776, %v767, %v783
    %v785 = vsel %vm775, %v782, %v784
    %v786 = vsel %vm774, %v764, %v767
    %v787 = vsel %vm777, %v773, 1326507024
    %v788 = vsel %vm776, %v770, %v787
    %v789 = vsel %vm775, %v786, %v788
    %v790 = vshll.u32 %v750, 8
    %v791 = vmul.u32.u64.compose %v790, %v789
    %v792 = vextract.low.u32 %v791
    %v793 = vextract.high.u32 %v791
    %v794 = vmul.u32.u64.compose %v790, %v785
    %v795 = vextract.low.u32 %v794
    %v796 = vextract.high.u32 %v794
    %v797 = vmul.u32 %v790, %v781
    %v798 = vadd.s32 %v793, %v795
    %vm799 = vc.u32 %v793, %v795
    %v800 = vadd.s32 %v796, 1
    %v801 = vsel %vm799, %v800, %v796
    %v802 = vadd.s32 %v797, %v801
    %v803 = vadd.s32 %v802, 536870912
    %v804 = vshrl.u32 %v803, 30
    %v805 = vshll.u32 %v804, 30
    %v806 = vsub.s32 %v802, %v805
    %vm807 = vcmp.lt.s32.totalorder %v806, 0
    %v808 = vsub.s32 0, %v806
    %v809 = vsel %vm807, %v808, %v806
    %v810 = vclz %v809
    %v811 = vsub.s32 %v810, 2
    %vm812 = vcmp.gt.s32.totalorder 0, %v811
    %v813 = vsel %vm812, 0, %v811
    %v814 = vsub.s32 32, %v813
    %v815 = vshll.u32 %v806, %v813
    %v816 = vshrl.u32 %v798, %v814
    %v817 = vor.u32 %v815, %v816
    %v818 = vsub.s32 4294967266, %v813
    %v819 = vadd.s32 %v818, 127
    %v820 = vshll.u32 %v819, 23
    %v821 = vor.u32 4788187, %v820
    %v822 = vand.u32 2147483647, %v821
    %v824 = vcvt.s32.f32 %v817
    %v825 = vmul.f32 %v824, %v822
    %v826 = vxor.u32 %v825, 2147483648
    %v827 = vsel %vm744, %v826, %v825
    %v828 = vsub.s32 4, %v804
    %v829 = vsel %vm744, %v828, %v804
    %v830 = vsel %vm743, %v217, %v827
    %v831 = vsel %vm743, 0, %v829
    %v832 = vcosq.f32.pop %v830
    %v833 = vsinq.f32.pop %v830
    %vm834 = vweird.f32 %v217
    %v835 = vadd.s32 %v831, 3
    %v836 = vand.u32 %v835, 3
    %vm837 = vcmp.lt.s32.totalorder %v836, 2
    %vm838 = vcmp.eq.s32.totalorder %v836, 0
    %v839 = vxor.u32 %v833, 2147483648
    %v840 = vsel %vm838, %v832, %v839
    %vm841 = vcmp.eq.s32.totalorder %v836, 2
    %v842 = vxor.u32 %v832, 2147483648
    %v843 = vsel %vm841, %v842, %v833
    %v844 = vsel %vm837, %v840, %v843
    %v845 = vsel %vm834, nan, %v844
    %v846 = vand.u32 2147483647, %v218
    %vm847 = vcmp.le.f32.partialorder %v846, 0.7853982
    %vm848 = vcmp.lt.s32.totalorder %v218, 0
    %v849 = vand.u32 %v218, 2139095040
    %v850 = vshrl.u32 %v849, 23
    %v851 = vsub.s32 %v850, 127
    %v852 = vand.u32 2147483647, %v218
    %v853 = vand.u32 %v852, 8388607
    %v854 = vor.u32 %v853, 8388608
    %v855 = vsub.s32 0, %v854
    %v856 = vadd.s32 %v851, 1
    %vm857 = vcmp.gt.s32.totalorder %v856, 0
    %v858 = vsel %vm857, %v856, 0
    %v859 = vshrl.u32 %v858, 5
    %v860 = vand.u32 %v858, 31
    %v861 = vsub.s32 32, %v860
    %v862 = vshrl.u32 683565275, %v861
    %v863 = vshll.u32 683565275, %v860
    %v864 = vshrl.u32 2475754826, %v861
    %v865 = vor.u32 %v863, %v864
    %v866 = vshll.u32 2475754826, %v860
    %v867 = vshrl.u32 2131351028, %v861
    %v868 = vor.u32 %v866, %v867
    %v869 = vshll.u32 2131351028, %v860
    %v870 = vshrl.u32 2102212464, %v861
    %v871 = vor.u32 %v869, %v870
    %v872 = vshll.u32 2102212464, %v860
    %v873 = vshrl.u32 920167782, %v861
    %v874 = vor.u32 %v872, %v873
    %v875 = vshll.u32 920167782, %v860
    %v876 = vshrl.u32 1326507024, %v861
    %v877 = vor.u32 %v875, %v876
    %vm878 = vcmp.lt.s32.totalorder %v859, 1
    %vm879 = vcmp.lt.s32.totalorder %v859, 2
    %vm880 = vcmp.lt.s32.totalorder %v859, 3
    %vm881 = vcmp.lt.s32.totalorder %v859, 4
    %v882 = vsel %vm878, %v862, %v865
    %v883 = vsel %vm881, %v871, 2102212464
    %v884 = vsel %vm880, %v868, %v883
    %v885 = vsel %vm879, %v882, %v884
    %v886 = vsel %vm878, %v865, %v868
    %v887 = vsel %vm881, %v874, 920167782
    %v888 = vsel %vm880, %v871, %v887
    %v889 = vsel %vm879, %v886, %v888
    %v890 = vsel %vm878, %v868, %v871
    %v891 = vsel %vm881, %v877, 1326507024
    %v892 = vsel %vm880, %v874, %v891
    %v893 = vsel %vm879, %v890, %v892
    %v894 = vshll.u32 %v854, 8
    %v895 = vmul.u32.u64.compose %v894, %v893
    %v896 = vextract.low.u32 %v895
    %v897 = vextract.high.u32 %v895
    %v898 = vmul.u32.u64.compose %v894, %v889
    %v899 = vextract.low.u32 %v898
    %v900 = vextract.high.u32 %v898
    %v901 = vmul.u32 %v894, %v885
    %v902 = vadd.s32 %v897, %v899
    %vm903 = vc.u32 %v897, %v899
    %v904 = vadd.s32 %v900, 1
    %v905 = vsel %vm903, %v904, %v900
    %v906 = vadd.s32 %v901, %v905
    %v907 = vadd.s32 %v906, 536870912
    %v908 = vshrl.u32 %v907, 30
    %v909 = vshll.u32 %v908, 30
    %v910 = vsub.s32 %v906, %v909
    %vm911 = vcmp.lt.s32.totalorder %v910, 0
    %v912 = vsub.s32 0, %v910
    %v913 = vsel %vm911, %v912, %v910
    %v914 = vclz %v913
    %v915 = vsub.s32 %v914, 2
    %vm916 = vcmp.gt.s32.totalorder 0, %v915
    %v917 = vsel %vm916, 0, %v915
    %v918 = vsub.s32 32, %v917
    %v919 = vshll.u32 %v910, %v917
    %v920 = vshrl.u32 %v902, %v918
    %v921 = vor.u32 %v919, %v920
    %v922 = vsub.s32 4294967266, %v917
    %v923 = vadd.s32 %v922, 127
    %v924 = vshll.u32 %v923, 23
    %v925 = vor.u32 4788187, %v924
    %v926 = vand.u32 2147483647, %v925
    %v928 = vcvt.s32.f32 %v921
    %v929 = vmul.f32 %v928, %v926
    %v930 = vxor.u32 %v929, 2147483648
    %v931 = vsel %vm848, %v930, %v929
    %v932 = vsub.s32 4, %v908
    %v933 = vsel %vm848, %v932, %v908
    %v934 = vsel %vm847, %v218, %v931
    %v935 = vsel %vm847, 0, %v933
    %v936 = vcosq.f32.pop %v934
    %v937 = vsinq.f32.pop %v934
    %vm938 = vweird.f32 %v218
    %v939 = vadd.s32 %v935, 3
    %v940 = vand.u32 %v939, 3
    %vm941 = vcmp.lt.s32.totalorder %v940, 2
    %vm942 = vcmp.eq.s32.totalorder %v940, 0
    %v943 = vxor.u32 %v937, 2147483648
    %v944 = vsel %vm942, %v936, %v943
    %vm945 = vcmp.eq.s32.totalorder %v940, 2
    %v946 = vxor.u32 %v936, 2147483648
    %v947 = vsel %vm945, %v946, %v937
    %v948 = vsel %vm941, %v944, %v947
    %v949 = vsel %vm938, nan, %v948
    %v950 = vand.u32 2147483647, %v219
    %vm951 = vcmp.le.f32.partialorder %v950, 0.7853982
    %vm952 = vcmp.lt.s32.totalorder %v219, 0
    %v953 = vand.u32 %v219, 2139095040
    %v954 = vshrl.u32 %v953, 23
    %v955 = vsub.s32 %v954, 127
    %v956 = vand.u32 2147483647, %v219
    %v957 = vand.u32 %v956, 8388607
    %v958 = vor.u32 %v957, 8388608
    %v959 = vsub.s32 0, %v958
    %v960 = vadd.s32 %v955, 1
    %vm961 = vcmp.gt.s32.totalorder %v960, 0
    %v962 = vsel %vm961, %v960, 0
    %v963 = vshrl.u32 %v962, 5
    %v964 = vand.u32 %v962, 31
    %v965 = vsub.s32 32, %v964
    %v966 = vshrl.u32 683565275, %v965
    %v967 = vshll.u32 683565275, %v964
    %v968 = vshrl.u32 2475754826, %v965
    %v969 = vor.u32 %v967, %v968
    %v970 = vshll.u32 2475754826, %v964
    %v971 = vshrl.u32 2131351028, %v965
    %v972 = vor.u32 %v970, %v971
    %v973 = vshll.u32 2131351028, %v964
    %v974 = vshrl.u32 2102212464, %v965
    %v975 = vor.u32 %v973, %v974
    %v976 = vshll.u32 2102212464, %v964
    %v977 = vshrl.u32 920167782, %v965
    %v978 = vor.u32 %v976, %v977
    %v979 = vshll.u32 920167782, %v964
    %v980 = vshrl.u32 1326507024, %v965
    %v981 = vor.u32 %v979, %v980
    %vm982 = vcmp.lt.s32.totalorder %v963, 1
    %vm983 = vcmp.lt.s32.totalorder %v963, 2
    %vm984 = vcmp.lt.s32.totalorder %v963, 3
    %vm985 = vcmp.lt.s32.totalorder %v963, 4
    %v986 = vsel %vm982, %v966, %v969
    %v987 = vsel %vm985, %v975, 2102212464
    %v988 = vsel %vm984, %v972, %v987
    %v989 = vsel %vm983, %v986, %v988
    %v990 = vsel %vm982, %v969, %v972
    %v991 = vsel %vm985, %v978, 920167782
    %v992 = vsel %vm984, %v975, %v991
    %v993 = vsel %vm983, %v990, %v992
    %v994 = vsel %vm982, %v972, %v975
    %v995 = vsel %vm985, %v981, 1326507024
    %v996 = vsel %vm984, %v978, %v995
    %v997 = vsel %vm983, %v994, %v996
    %v998 = vshll.u32 %v958, 8
    %v999 = vmul.u32.u64.compose %v998, %v997
    %v1000 = vextract.low.u32 %v999
    %v1001 = vextract.high.u32 %v999
    %v1002 = vmul.u32.u64.compose %v998, %v993
    %v1003 = vextract.low.u32 %v1002
    %v1004 = vextract.high.u32 %v1002
    %v1005 = vmul.u32 %v998, %v989
    %v1006 = vadd.s32 %v1001, %v1003
    %vm1007 = vc.u32 %v1001, %v1003
    %v1008 = vadd.s32 %v1004, 1
    %v1009 = vsel %vm1007, %v1008, %v1004
    %v1010 = vadd.s32 %v1005, %v1009
    %v1011 = vadd.s32 %v1010, 536870912
    %v1012 = vshrl.u32 %v1011, 30
    %v1013 = vshll.u32 %v1012, 30
    %v1014 = vsub.s32 %v1010, %v1013
    %vm1015 = vcmp.lt.s32.totalorder %v1014, 0
    %v1016 = vsub.s32 0, %v1014
    %v1017 = vsel %vm1015, %v1016, %v1014
    %v1018 = vclz %v1017
    %v1019 = vsub.s32 %v1018, 2
    %vm1020 = vcmp.gt.s32.totalorder 0, %v1019
    %v1021 = vsel %vm1020, 0, %v1019
    %v1022 = vsub.s32 32, %v1021
    %v1023 = vshll.u32 %v1014, %v1021
    %v1024 = vshrl.u32 %v1006, %v1022
    %v1025 = vor.u32 %v1023, %v1024
    %v1026 = vsub.s32 4294967266, %v1021
    %v1027 = vadd.s32 %v1026, 127
    %v1028 = vshll.u32 %v1027, 23
    %v1029 = vor.u32 4788187, %v1028
    %v1030 = vand.u32 2147483647, %v1029
    %v1032 = vcvt.s32.f32 %v1025
    %v1033 = vmul.f32 %v1032, %v1030
    %v1034 = vxor.u32 %v1033, 2147483648
    %v1035 = vsel %vm952, %v1034, %v1033
    %v1036 = vsub.s32 4, %v1012
    %v1037 = vsel %vm952, %v1036, %v1012
    %v1038 = vsel %vm951, %v219, %v1035
    %v1039 = vsel %vm951, 0, %v1037
    %v1040 = vcosq.f32.pop %v1038
    %v1041 = vsinq.f32.pop %v1038
    %vm1042 = vweird.f32 %v219
    %v1043 = vadd.s32 %v1039, 3
    %v1044 = vand.u32 %v1043, 3
    %vm1045 = vcmp.lt.s32.totalorder %v1044, 2
    %vm1046 = vcmp.eq.s32.totalorder %v1044, 0
    %v1047 = vxor.u32 %v1041, 2147483648
    %v1048 = vsel %vm1046, %v1040, %v1047
    %vm1049 = vcmp.eq.s32.totalorder %v1044, 2
    %v1050 = vxor.u32 %v1040, 2147483648
    %v1051 = vsel %vm1049, %v1050, %v1041
    %v1052 = vsel %vm1045, %v1048, %v1051
    %v1053 = vsel %vm1042, nan, %v1052
    %v1054 = vand.u32 2147483647, %v220
    %vm1055 = vcmp.le.f32.partialorder %v1054, 0.7853982
    %vm1056 = vcmp.lt.s32.totalorder %v220, 0
    %v1057 = vand.u32 %v220, 2139095040
    %v1058 = vshrl.u32 %v1057, 23
    %v1059 = vsub.s32 %v1058, 127
    %v1060 = vand.u32 2147483647, %v220
    %v1061 = vand.u32 %v1060, 8388607
    %v1062 = vor.u32 %v1061, 8388608
    %v1063 = vsub.s32 0, %v1062
    %v1064 = vadd.s32 %v1059, 1
    %vm1065 = vcmp.gt.s32.totalorder %v1064, 0
    %v1066 = vsel %vm1065, %v1064, 0
    %v1067 = vshrl.u32 %v1066, 5
    %v1068 = vand.u32 %v1066, 31
    %v1069 = vsub.s32 32, %v1068
    %v1070 = vshrl.u32 683565275, %v1069
    %v1071 = vshll.u32 683565275, %v1068
    %v1072 = vshrl.u32 2475754826, %v1069
    %v1073 = vor.u32 %v1071, %v1072
    %v1074 = vshll.u32 2475754826, %v1068
    %v1075 = vshrl.u32 2131351028, %v1069
    %v1076 = vor.u32 %v1074, %v1075
    %v1077 = vshll.u32 2131351028, %v1068
    %v1078 = vshrl.u32 2102212464, %v1069
    %v1079 = vor.u32 %v1077, %v1078
    %v1080 = vshll.u32 2102212464, %v1068
    %v1081 = vshrl.u32 920167782, %v1069
    %v1082 = vor.u32 %v1080, %v1081
    %v1083 = vshll.u32 920167782, %v1068
    %v1084 = vshrl.u32 1326507024, %v1069
    %v1085 = vor.u32 %v1083, %v1084
    %vm1086 = vcmp.lt.s32.totalorder %v1067, 1
    %vm1087 = vcmp.lt.s32.totalorder %v1067, 2
    %vm1088 = vcmp.lt.s32.totalorder %v1067, 3
    %vm1089 = vcmp.lt.s32.totalorder %v1067, 4
    %v1090 = vsel %vm1086, %v1070, %v1073
    %v1091 = vsel %vm1089, %v1079, 2102212464
    %v1092 = vsel %vm1088, %v1076, %v1091
    %v1093 = vsel %vm1087, %v1090, %v1092
    %v1094 = vsel %vm1086, %v1073, %v1076
    %v1095 = vsel %vm1089, %v1082, 920167782
    %v1096 = vsel %vm1088, %v1079, %v1095
    %v1097 = vsel %vm1087, %v1094, %v1096
    %v1098 = vsel %vm1086, %v1076, %v1079
    %v1099 = vsel %vm1089, %v1085, 1326507024
    %v1100 = vsel %vm1088, %v1082, %v1099
    %v1101 = vsel %vm1087, %v1098, %v1100
    %v1102 = vshll.u32 %v1062, 8
    %v1103 = vmul.u32.u64.compose %v1102, %v1101
    %v1104 = vextract.low.u32 %v1103
    %v1105 = vextract.high.u32 %v1103
    %v1106 = vmul.u32.u64.compose %v1102, %v1097
    %v1107 = vextract.low.u32 %v1106
    %v1108 = vextract.high.u32 %v1106
    %v1109 = vmul.u32 %v1102, %v1093
    %v1110 = vadd.s32 %v1105, %v1107
    %vm1111 = vc.u32 %v1105, %v1107
    %v1112 = vadd.s32 %v1108, 1
    %v1113 = vsel %vm1111, %v1112, %v1108
    %v1114 = vadd.s32 %v1109, %v1113
    %v1115 = vadd.s32 %v1114, 536870912
    %v1116 = vshrl.u32 %v1115, 30
    %v1117 = vshll.u32 %v1116, 30
    %v1118 = vsub.s32 %v1114, %v1117
    %vm1119 = vcmp.lt.s32.totalorder %v1118, 0
    %v1120 = vsub.s32 0, %v1118
    %v1121 = vsel %vm1119, %v1120, %v1118
    %v1122 = vclz %v1121
    %v1123 = vsub.s32 %v1122, 2
    %vm1124 = vcmp.gt.s32.totalorder 0, %v1123
    %v1125 = vsel %vm1124, 0, %v1123
    %v1126 = vsub.s32 32, %v1125
    %v1127 = vshll.u32 %v1118, %v1125
    %v1128 = vshrl.u32 %v1110, %v1126
    %v1129 = vor.u32 %v1127, %v1128
    %v1130 = vsub.s32 4294967266, %v1125
    %v1131 = vadd.s32 %v1130, 127
    %v1132 = vshll.u32 %v1131, 23
    %v1133 = vor.u32 4788187, %v1132
    %v1134 = vand.u32 2147483647, %v1133
    %v1136 = vcvt.s32.f32 %v1129
    %v1137 = vmul.f32 %v1136, %v1134
    %v1138 = vxor.u32 %v1137, 2147483648
    %v1139 = vsel %vm1056, %v1138, %v1137
    %v1140 = vsub.s32 4, %v1116
    %v1141 = vsel %vm1056, %v1140, %v1116
    %v1142 = vsel %vm1055, %v220, %v1139
    %v1143 = vsel %vm1055, 0, %v1141
    %v1144 = vcosq.f32.pop %v1142
    %v1145 = vsinq.f32.pop %v1142
    %vm1146 = vweird.f32 %v220
    %v1147 = vadd.s32 %v1143, 3
    %v1148 = vand.u32 %v1147, 3
    %vm1149 = vcmp.lt.s32.totalorder %v1148, 2
    %vm1150 = vcmp.eq.s32.totalorder %v1148, 0
    %v1151 = vxor.u32 %v1145, 2147483648
    %v1152 = vsel %vm1150, %v1144, %v1151
    %vm1153 = vcmp.eq.s32.totalorder %v1148, 2
    %v1154 = vxor.u32 %v1144, 2147483648
    %v1155 = vsel %vm1153, %v1154, %v1145
    %v1156 = vsel %vm1149, %v1152, %v1155
    %v1157 = vsel %vm1146, nan, %v1156
    %v1158 = vand.u32 2147483647, %v221
    %vm1159 = vcmp.le.f32.partialorder %v1158, 0.7853982
    %vm1160 = vcmp.lt.s32.totalorder %v221, 0
    %v1161 = vand.u32 %v221, 2139095040
    %v1162 = vshrl.u32 %v1161, 23
    %v1163 = vsub.s32 %v1162, 127
    %v1164 = vand.u32 2147483647, %v221
    %v1165 = vand.u32 %v1164, 8388607
    %v1166 = vor.u32 %v1165, 8388608
    %v1167 = vsub.s32 0, %v1166
    %v1168 = vadd.s32 %v1163, 1
    %vm1169 = vcmp.gt.s32.totalorder %v1168, 0
    %v1170 = vsel %vm1169, %v1168, 0
    %v1171 = vshrl.u32 %v1170, 5
    %v1172 = vand.u32 %v1170, 31
    %v1173 = vsub.s32 32, %v1172
    %v1174 = vshrl.u32 683565275, %v1173
    %v1175 = vshll.u32 683565275, %v1172
    %v1176 = vshrl.u32 2475754826, %v1173
    %v1177 = vor.u32 %v1175, %v1176
    %v1178 = vshll.u32 2475754826, %v1172
    %v1179 = vshrl.u32 2131351028, %v1173
    %v1180 = vor.u32 %v1178, %v1179
    %v1181 = vshll.u32 2131351028, %v1172
    %v1182 = vshrl.u32 2102212464, %v1173
    %v1183 = vor.u32 %v1181, %v1182
    %v1184 = vshll.u32 2102212464, %v1172
    %v1185 = vshrl.u32 920167782, %v1173
    %v1186 = vor.u32 %v1184, %v1185
    %v1187 = vshll.u32 920167782, %v1172
    %v1188 = vshrl.u32 1326507024, %v1173
    %v1189 = vor.u32 %v1187, %v1188
    %vm1190 = vcmp.lt.s32.totalorder %v1171, 1
    %vm1191 = vcmp.lt.s32.totalorder %v1171, 2
    %vm1192 = vcmp.lt.s32.totalorder %v1171, 3
    %vm1193 = vcmp.lt.s32.totalorder %v1171, 4
    %v1194 = vsel %vm1190, %v1174, %v1177
    %v1195 = vsel %vm1193, %v1183, 2102212464
    %v1196 = vsel %vm1192, %v1180, %v1195
    %v1197 = vsel %vm1191, %v1194, %v1196
    %v1198 = vsel %vm1190, %v1177, %v1180
    %v1199 = vsel %vm1193, %v1186, 920167782
    %v1200 = vsel %vm1192, %v1183, %v1199
    %v1201 = vsel %vm1191, %v1198, %v1200
    %v1202 = vsel %vm1190, %v1180, %v1183
    %v1203 = vsel %vm1193, %v1189, 1326507024
    %v1204 = vsel %vm1192, %v1186, %v1203
    %v1205 = vsel %vm1191, %v1202, %v1204
    %v1206 = vshll.u32 %v1166, 8
    %v1207 = vmul.u32.u64.compose %v1206, %v1205
    %v1208 = vextract.low.u32 %v1207
    %v1209 = vextract.high.u32 %v1207
    %v1210 = vmul.u32.u64.compose %v1206, %v1201
    %v1211 = vextract.low.u32 %v1210
    %v1212 = vextract.high.u32 %v1210
    %v1213 = vmul.u32 %v1206, %v1197
    %v1214 = vadd.s32 %v1209, %v1211
    %vm1215 = vc.u32 %v1209, %v1211
    %v1216 = vadd.s32 %v1212, 1
    %v1217 = vsel %vm1215, %v1216, %v1212
    %v1218 = vadd.s32 %v1213, %v1217
    %v1219 = vadd.s32 %v1218, 536870912
    %v1220 = vshrl.u32 %v1219, 30
    %v1221 = vshll.u32 %v1220, 30
    %v1222 = vsub.s32 %v1218, %v1221
    %vm1223 = vcmp.lt.s32.totalorder %v1222, 0
    %v1224 = vsub.s32 0, %v1222
    %v1225 = vsel %vm1223, %v1224, %v1222
    %v1226 = vclz %v1225
    %v1227 = vsub.s32 %v1226, 2
    %vm1228 = vcmp.gt.s32.totalorder 0, %v1227
    %v1229 = vsel %vm1228, 0, %v1227
    %v1230 = vsub.s32 32, %v1229
    %v1231 = vshll.u32 %v1222, %v1229
    %v1232 = vshrl.u32 %v1214, %v1230
    %v1233 = vor.u32 %v1231, %v1232
    %v1234 = vsub.s32 4294967266, %v1229
    %v1235 = vadd.s32 %v1234, 127
    %v1236 = vshll.u32 %v1235, 23
    %v1237 = vor.u32 4788187, %v1236
    %v1238 = vand.u32 2147483647, %v1237
    %v1240 = vcvt.s32.f32 %v1233
    %v1241 = vmul.f32 %v1240, %v1238
    %v1242 = vxor.u32 %v1241, 2147483648
    %v1243 = vsel %vm1160, %v1242, %v1241
    %v1244 = vsub.s32 4, %v1220
    %v1245 = vsel %vm1160, %v1244, %v1220
    %v1246 = vsel %vm1159, %v221, %v1243
    %v1247 = vsel %vm1159, 0, %v1245
    %v1248 = vcosq.f32.pop %v1246
    %v1249 = vsinq.f32.pop %v1246
    %vm1250 = vweird.f32 %v221
    %v1251 = vadd.s32 %v1247, 3
    %v1252 = vand.u32 %v1251, 3
    %vm1253 = vcmp.lt.s32.totalorder %v1252, 2
    %vm1254 = vcmp.eq.s32.totalorder %v1252, 0
    %v1255 = vxor.u32 %v1249, 2147483648
    %v1256 = vsel %vm1254, %v1248, %v1255
    %vm1257 = vcmp.eq.s32.totalorder %v1252, 2
    %v1258 = vxor.u32 %v1248, 2147483648
    %v1259 = vsel %vm1257, %v1258, %v1249
    %v1260 = vsel %vm1253, %v1256, %v1259
    %v1261 = vsel %vm1250, nan, %v1260
    %v1262 = vld [vmem:[%s3] sm:$0xff]
    %v1263 = vld [vmem:[%s3 + $0x8] sm:$0xff]
    %v1264 = vld [vmem:[%s3 + $0x10] sm:$0xff]
    %v1265 = vld [vmem:[%s3 + $0x18] sm:$0xff]
    %v1266 = vld [vmem:[%s4] sm:$0x3]
    %v1268 = vsel %vm93, %v1266, 0
    %1270 = vmatprep.subr.mxu0 0.0
    %1271 = vmatpush1.msra.mxu0 0.0
    %1272 = vmatprep.subr.mxu0 0.0
    %1273 = vmatpush1.msra.mxu0 0.0
    %1274 = vmatprep.subr.mxu0 0.0
    %1275 = vmatpush1.msra.mxu0 0.0
    %1276 = vmatprep.subr.mxu0 0.0
    %1277 = vmatpush1.msra.mxu0 0.0
    %1278 = vmatprep.subr.mxu0 0.0
    %1279 = vmatpush1.msra.mxu0 0.0
    %1280 = vmatprep.subr.mxu0 0.0
    %1281 = vmatpush1.msra.mxu0 0.0
    %1282 = vmatprep.subr.mxu0 0.0
    %1283 = vmatpush1.msra.mxu0 0.0
    %1284 = vmatprep.subr.mxu0 0.0
    %1285 = vmatpush1.msra.mxu0 0.0
    %1286 = vmatprep.subr.mxu0 0.0
    %1287 = vmatpush1.msra.mxu0 0.0
    %1288 = vmatprep.subr.mxu0 0.0
    %1289 = vmatpush1.msra.mxu0 0.0
    %1290 = vmatprep.subr.mxu0 0.0
    %1291 = vmatpush1.msra.mxu0 0.0
    %1292 = vmatprep.subr.mxu0 0.0
    %1293 = vmatpush1.msra.mxu0 0.0
    %1294 = vmatprep.subr.mxu0 0.0
    %1295 = vmatpush1.msra.mxu0 0.0
    %1296 = vmatprep.subr.mxu0 0.0
    %1297 = vmatpush1.msra.mxu0 0.0
    %1298 = vmatprep.subr.mxu0 0.0
    %1299 = vmatpush1.msra.mxu0 0.0
    %1300 = vmatprep.subr.mxu0 0.0
    %1301 = vmatpush1.msra.mxu0 %v1268
    %1302 = vmatprep.subr.mxu0 0.0
    %1303 = vmatpush2.msra.mxu0 0.0
    %1304 = vmatprep.subr.mxu0 0.0
    %1305 = vmatpush2.msra.mxu0 0.0
    %1306 = vmatprep.subr.mxu0 0.0
    %1307 = vmatpush2.msra.mxu0 0.0
    %1308 = vmatprep.subr.mxu0 0.0
    %1309 = vmatpush2.msra.mxu0 0.0
    %1310 = vmatprep.subr.mxu0 0.0
    %1311 = vmatpush2.msra.mxu0 0.0
    %1312 = vmatprep.subr.mxu0 0.0
    %1313 = vmatpush2.msra.mxu0 0.0
    %1314 = vmatprep.subr.mxu0 0.0
    %1315 = vmatpush2.msra.mxu0 0.0
    %1316 = vmatprep.subr.mxu0 0.0
    %1317 = vmatpush2.msra.mxu0 0.0
    %1318 = vmatprep.subr.mxu0 0.0
    %1319 = vmatpush2.msra.mxu0 0.0
    %1320 = vmatprep.subr.mxu0 0.0
    %1321 = vmatpush2.msra.mxu0 0.0
    %1322 = vmatprep.subr.mxu0 0.0
    %1323 = vmatpush2.msra.mxu0 0.0
    %1324 = vmatprep.subr.mxu0 0.0
    %1325 = vmatpush2.msra.mxu0 0.0
    %1326 = vmatprep.subr.mxu0 0.0
    %1327 = vmatpush2.msra.mxu0 0.0
    %1328 = vmatprep.subr.mxu0 0.0
    %1329 = vmatpush2.msra.mxu0 0.0
    %1330 = vmatprep.subr.mxu0 0.0
    %1331 = vmatpush2.msra.mxu0 0.0
    %1332 = vmatprep.subr.mxu0 0.0
    %1333 = vmatpush2.msra.mxu0 0.0
    %1334 = vmatprep.mubr.f32.mxu0 0.0
    %1335 = vmatmul.mubr.f32.gmra.mxu0 %v64
    %v1336 = vpop.f32.mrf.mxu0
    %v1337 = vadd.f32 0.0, %v1336
    %v1338 = vpop.f32.mrf.mxu0
    %1339 = vmatprep.mubr.f32.mxu0 0.0
    %1340 = vmatmul.mubr.f32.gmra.mxu0 %v67
    %v1341 = vpop.f32.mrf.mxu0
    %v1342 = vadd.f32 0.0, %v1341
    %v1343 = vpop.f32.mrf.mxu0
    %1344 = vmatprep.mubr.f32.mxu0 0.0
    %1345 = vmatmul.mubr.f32.gmra.mxu0 %v70
    %v1346 = vpop.f32.mrf.mxu0
    %v1347 = vadd.f32 0.0, %v1346
    %v1348 = vpop.f32.mrf.mxu0
    %1349 = vmatprep.mubr.f32.mxu0 0.0
    %1350 = vmatmul.mubr.f32.gmra.mxu0 %v73
    %v1351 = vpop.f32.mrf.mxu0
    %v1352 = vadd.f32 0.0, %v1351
    %v1353 = vpop.f32.mrf.mxu0
    %1354 = vmatprep.mubr.f32.mxu0 0.0
    %1355 = vmatmul.mubr.f32.gmra.mxu0 %v76
    %v1356 = vpop.f32.mrf.mxu0
    %v1357 = vadd.f32 0.0, %v1356
    %v1358 = vpop.f32.mrf.mxu0
    %1359 = vmatprep.mubr.f32.mxu0 0.0
    %1360 = vmatmul.mubr.f32.gmra.mxu0 %v79
    %v1361 = vpop.f32.mrf.mxu0
    %v1362 = vadd.f32 0.0, %v1361
    %v1363 = vpop.f32.mrf.mxu0
    %1364 = vmatprep.mubr.f32.mxu0 0.0
    %1365 = vmatmul.mubr.f32.gmra.mxu0 %v82
    %v1366 = vpop.f32.mrf.mxu0
    %v1367 = vadd.f32 0.0, %v1366
    %v1368 = vpop.f32.mrf.mxu0
    %1369 = vmatprep.mubr.f32.mxu0 0.0
    %1370 = vmatmul.mubr.f32.gmra.mxu0 %v85
    %v1371 = vpop.f32.mrf.mxu0
    %v1372 = vadd.f32 0.0, %v1371
    %v1373 = vpop.f32.mrf.mxu0
    %1374 = vmatprep.mubr.f32.mxu0 0.0
    %1375 = vmatmul.mubr.f32.gmra.mxu0 %v88
    %v1376 = vpop.f32.mrf.mxu0
    %v1377 = vadd.f32 0.0, %v1376
    %v1378 = vpop.f32.mrf.mxu0
    %1379 = vmatprep.mubr.f32.mxu0 0.0
    %1380 = vmatmul.mubr.f32.gmra.mxu0 %v91
    %v1381 = vpop.f32.mrf.mxu0
    %v1382 = vadd.f32 0.0, %v1381
    %v1383 = vpop.f32.mrf.mxu0
    %1384 = vdwg.mxu0
    %vm1385 = vcmask 261120
    %v1387 = vsel %vm1385, %v325, 0
    %v1390 = vsel %vm1385, %v429, 0
    %v1393 = vsel %vm1385, %v533, 0
    %v1396 = vsel %vm1385, %v637, 0
    %v1399 = vsel %vm1385, %v741, 0
    %v1402 = vsel %vm1385, %v845, 0
    %v1405 = vsel %vm1385, %v949, 0
    %v1408 = vsel %vm1385, %v1053, 0
    %v1411 = vsel %vm1385, %v1157, 0
    %v1414 = vsel %vm1385, %v1261, 0
    %1416 = vmatprep.subr.mxu0 0.0
    %1417 = vmatpush1.msra.mxu0 0.0
    %1418 = vmatprep.subr.mxu0 0.0
    %1419 = vmatpush1.msra.mxu0 0.0
    %1420 = vmatprep.subr.mxu0 0.0
    %1421 = vmatpush1.msra.mxu0 0.0
    %1422 = vmatprep.subr.mxu0 0.0
    %1423 = vmatpush1.msra.mxu0 0.0
    %1424 = vmatprep.subr.mxu0 0.0
    %1425 = vmatpush1.msra.mxu0 0.0
    %1426 = vmatprep.subr.mxu0 0.0
    %1427 = vmatpush1.msra.mxu0 0.0
    %1428 = vmatprep.subr.mxu0 0.0
    %1429 = vmatpush1.msra.mxu0 0.0
    %1430 = vmatprep.subr.mxu0 0.0
    %1431 = vmatpush1.msra.mxu0 0.0
    %1432 = vmatprep.subr.mxu0 0.0
    %1433 = vmatpush1.msra.mxu0 0.0
    %1434 = vmatprep.subr.mxu0 0.0
    %1435 = vmatpush1.msra.mxu0 0.0
    %1436 = vmatprep.subr.mxu0 0.0
    %1437 = vmatpush1.msra.mxu0 0.0
    %1438 = vmatprep.subr.mxu0 0.0
    %1439 = vmatpush1.msra.mxu0 0.0
    %1440 = vmatprep.subr.mxu0 0.0
    %1441 = vmatpush1.msra.mxu0 %v1265
    %1442 = vmatprep.subr.mxu0 0.0
    %1443 = vmatpush1.msra.mxu0 %v1264
    %1444 = vmatprep.subr.mxu0 0.0
    %1445 = vmatpush1.msra.mxu0 %v1263
    %1446 = vmatprep.subr.mxu0 0.0
    %1447 = vmatpush1.msra.mxu0 %v1262
    %1448 = vmatprep.subr.mxu0 0.0
    %1449 = vmatpush2.msra.mxu0 0.0
    %1450 = vmatprep.subr.mxu0 0.0
    %1451 = vmatpush2.msra.mxu0 0.0
    %1452 = vmatprep.subr.mxu0 0.0
    %1453 = vmatpush2.msra.mxu0 0.0
    %1454 = vmatprep.subr.mxu0 0.0
    %1455 = vmatpush2.msra.mxu0 0.0
    %1456 = vmatprep.subr.mxu0 0.0
    %1457 = vmatpush2.msra.mxu0 0.0
    %1458 = vmatprep.subr.mxu0 0.0
    %1459 = vmatpush2.msra.mxu0 0.0
    %1460 = vmatprep.subr.mxu0 0.0
    %1461 = vmatpush2.msra.mxu0 0.0
    %1462 = vmatprep.subr.mxu0 0.0
    %1463 = vmatpush2.msra.mxu0 0.0
    %1464 = vmatprep.subr.mxu0 0.0
    %1465 = vmatpush2.msra.mxu0 0.0
    %1466 = vmatprep.subr.mxu0 0.0
    %1467 = vmatpush2.msra.mxu0 0.0
    %1468 = vmatprep.subr.mxu0 0.0
    %1469 = vmatpush2.msra.mxu0 0.0
    %1470 = vmatprep.subr.mxu0 0.0
    %1471 = vmatpush2.msra.mxu0 0.0
    %1472 = vmatprep.subr.mxu0 0.0
    %1473 = vmatpush2.msra.mxu0 0.0
    %1474 = vmatprep.subr.mxu0 0.0
    %1475 = vmatpush2.msra.mxu0 0.0
    %1476 = vmatprep.subr.mxu0 0.0
    %1477 = vmatpush2.msra.mxu0 0.0
    %1478 = vmatprep.subr.mxu0 0.0
    %1479 = vmatpush2.msra.mxu0 0.0
    %1480 = vmatprep.mubr.f32.mxu0 0.0
    %1481 = vmatmul.mubr.f32.gmra.mxu0 %v1387
    %v1482 = vpop.f32.mrf.mxu0
    %v1483 = vadd.f32 %v1337, %v1482
    %v1484 = vpop.f32.mrf.mxu0
    %1485 = vmatprep.mubr.f32.mxu0 0.0
    %1486 = vmatmul.mubr.f32.gmra.mxu0 %v1390
    %v1487 = vpop.f32.mrf.mxu0
    %v1488 = vadd.f32 %v1342, %v1487
    %v1489 = vpop.f32.mrf.mxu0
    %1490 = vmatprep.mubr.f32.mxu0 0.0
    %1491 = vmatmul.mubr.f32.gmra.mxu0 %v1393
    %v1492 = vpop.f32.mrf.mxu0
    %v1493 = vadd.f32 %v1347, %v1492
    %v1494 = vpop.f32.mrf.mxu0
    %1495 = vmatprep.mubr.f32.mxu0 0.0
    %1496 = vmatmul.mubr.f32.gmra.mxu0 %v1396
    %v1497 = vpop.f32.mrf.mxu0
    %v1498 = vadd.f32 %v1352, %v1497
    %v1499 = vpop.f32.mrf.mxu0
    %1500 = vmatprep.mubr.f32.mxu0 0.0
    %1501 = vmatmul.mubr.f32.gmra.mxu0 %v1399
    %v1502 = vpop.f32.mrf.mxu0
    %v1503 = vadd.f32 %v1357, %v1502
    %v1504 = vpop.f32.mrf.mxu0
    %1505 = vmatprep.mubr.f32.mxu0 0.0
    %1506 = vmatmul.mubr.f32.gmra.mxu0 %v1402
    %v1507 = vpop.f32.mrf.mxu0
    %v1508 = vadd.f32 %v1362, %v1507
    %v1509 = vpop.f32.mrf.mxu0
    %1510 = vmatprep.mubr.f32.mxu0 0.0
    %1511 = vmatmul.mubr.f32.gmra.mxu0 %v1405
    %v1512 = vpop.f32.mrf.mxu0
    %v1513 = vadd.f32 %v1367, %v1512
    %v1514 = vpop.f32.mrf.mxu0
    %1515 = vmatprep.mubr.f32.mxu0 0.0
    %1516 = vmatmul.mubr.f32.gmra.mxu0 %v1408
    %v1517 = vpop.f32.mrf.mxu0
    %v1518 = vadd.f32 %v1372, %v1517
    %v1519 = vpop.f32.mrf.mxu0
    %1520 = vmatprep.mubr.f32.mxu0 0.0
    %1521 = vmatmul.mubr.f32.gmra.mxu0 %v1411
    %v1522 = vpop.f32.mrf.mxu0
    %v1523 = vadd.f32 %v1377, %v1522
    %v1524 = vpop.f32.mrf.mxu0
    %1525 = vmatprep.mubr.f32.mxu0 0.0
    %1526 = vmatmul.mubr.f32.gmra.mxu0 %v1414
    %v1527 = vpop.f32.mrf.mxu0
    %v1528 = vadd.f32 %v1382, %v1527
    %v1529 = vpop.f32.mrf.mxu0
    %1530 = vdwg.mxu0
    %v1531 = vld [vmem:[%s5] sm:$0x1]
    %v1533 = vlaneseq
    %v1534 = vshrl.u32 %v1533, 7
    %v1535 = vsub.s32 0, %v1534
    %v1536 = vrot.slane %v1531, %v1535
    %v1538 = vadd.f32 %v1483, %v1536
    %v1539 = vadd.f32 %v1488, %v1536
    %v1540 = vadd.f32 %v1493, %v1536
    %v1541 = vadd.f32 %v1498, %v1536
    %v1542 = vadd.f32 %v1503, %v1536
    %v1543 = vadd.f32 %v1508, %v1536
    %v1544 = vadd.f32 %v1513, %v1536
    %v1545 = vadd.f32 %v1518, %v1536
    %v1546 = vadd.f32 %v1523, %v1536
    %v1547 = vadd.f32 %v1528, %v1536
    %v1548 = vmul.f32 %v1538, 30.0
    %v1549 = vmul.f32 %v1539, 30.0
    %v1550 = vmul.f32 %v1540, 30.0
    %v1551 = vmul.f32 %v1541, 30.0
    %v1552 = vmul.f32 %v1542, 30.0
    %v1553 = vmul.f32 %v1543, 30.0
    %v1554 = vmul.f32 %v1544, 30.0
    %v1555 = vmul.f32 %v1545, 30.0
    %v1556 = vmul.f32 %v1546, 30.0
    %v1557 = vmul.f32 %v1547, 30.0
    %v1558 = vand.u32 2147483647, %v1548
    %vm1559 = vcmp.le.f32.partialorder %v1558, 0.7853982
    %vm1560 = vcmp.lt.s32.totalorder %v1548, 0
    %v1561 = vand.u32 %v1548, 2139095040
    %v1562 = vshrl.u32 %v1561, 23
    %v1563 = vsub.s32 %v1562, 127
    %v1564 = vand.u32 2147483647, %v1548
    %v1565 = vand.u32 %v1564, 8388607
    %v1566 = vor.u32 %v1565, 8388608
    %v1567 = vsub.s32 0, %v1566
    %v1568 = vadd.s32 %v1563, 1
    %vm1569 = vcmp.gt.s32.totalorder %v1568, 0
    %v1570 = vsel %vm1569, %v1568, 0
    %v1571 = vshrl.u32 %v1570, 5
    %v1572 = vand.u32 %v1570, 31
    %v1573 = vsub.s32 32, %v1572
    %v1574 = vshrl.u32 683565275, %v1573
    %v1575 = vshll.u32 683565275, %v1572
    %v1576 = vshrl.u32 2475754826, %v1573
    %v1577 = vor.u32 %v1575, %v1576
    %v1578 = vshll.u32 2475754826, %v1572
    %v1579 = vshrl.u32 2131351028, %v1573
    %v1580 = vor.u32 %v1578, %v1579
    %v1581 = vshll.u32 2131351028, %v1572
    %v1582 = vshrl.u32 2102212464, %v1573
    %v1583 = vor.u32 %v1581, %v1582
    %v1584 = vshll.u32 2102212464, %v1572
    %v1585 = vshrl.u32 920167782, %v1573
    %v1586 = vor.u32 %v1584, %v1585
    %v1587 = vshll.u32 920167782, %v1572
    %v1588 = vshrl.u32 1326507024, %v1573
    %v1589 = vor.u32 %v1587, %v1588
    %vm1590 = vcmp.lt.s32.totalorder %v1571, 1
    %vm1591 = vcmp.lt.s32.totalorder %v1571, 2
    %vm1592 = vcmp.lt.s32.totalorder %v1571, 3
    %vm1593 = vcmp.lt.s32.totalorder %v1571, 4
    %v1594 = vsel %vm1590, %v1574, %v1577
    %v1595 = vsel %vm1593, %v1583, 2102212464
    %v1596 = vsel %vm1592, %v1580, %v1595
    %v1597 = vsel %vm1591, %v1594, %v1596
    %v1598 = vsel %vm1590, %v1577, %v1580
    %v1599 = vsel %vm1593, %v1586, 920167782
    %v1600 = vsel %vm1592, %v1583, %v1599
    %v1601 = vsel %vm1591, %v1598, %v1600
    %v1602 = vsel %vm1590, %v1580, %v1583
    %v1603 = vsel %vm1593, %v1589, 1326507024
    %v1604 = vsel %vm1592, %v1586, %v1603
    %v1605 = vsel %vm1591, %v1602, %v1604
    %v1606 = vshll.u32 %v1566, 8
    %v1607 = vmul.u32.u64.compose %v1606, %v1605
    %v1608 = vextract.low.u32 %v1607
    %v1609 = vextract.high.u32 %v1607
    %v1610 = vmul.u32.u64.compose %v1606, %v1601
    %v1611 = vextract.low.u32 %v1610
    %v1612 = vextract.high.u32 %v1610
    %v1613 = vmul.u32 %v1606, %v1597
    %v1614 = vadd.s32 %v1609, %v1611
    %vm1615 = vc.u32 %v1609, %v1611
    %v1616 = vadd.s32 %v1612, 1
    %v1617 = vsel %vm1615, %v1616, %v1612
    %v1618 = vadd.s32 %v1613, %v1617
    %v1619 = vadd.s32 %v1618, 536870912
    %v1620 = vshrl.u32 %v1619, 30
    %v1621 = vshll.u32 %v1620, 30
    %v1622 = vsub.s32 %v1618, %v1621
    %vm1623 = vcmp.lt.s32.totalorder %v1622, 0
    %v1624 = vsub.s32 0, %v1622
    %v1625 = vsel %vm1623, %v1624, %v1622
    %v1626 = vclz %v1625
    %v1627 = vsub.s32 %v1626, 2
    %vm1628 = vcmp.gt.s32.totalorder 0, %v1627
    %v1629 = vsel %vm1628, 0, %v1627
    %v1630 = vsub.s32 32, %v1629
    %v1631 = vshll.u32 %v1622, %v1629
    %v1632 = vshrl.u32 %v1614, %v1630
    %v1633 = vor.u32 %v1631, %v1632
    %v1634 = vsub.s32 4294967266, %v1629
    %v1635 = vadd.s32 %v1634, 127
    %v1636 = vshll.u32 %v1635, 23
    %v1637 = vor.u32 4788187, %v1636
    %v1638 = vand.u32 2147483647, %v1637
    %v1640 = vcvt.s32.f32 %v1633
    %v1641 = vmul.f32 %v1640, %v1638
    %v1642 = vxor.u32 %v1641, 2147483648
    %v1643 = vsel %vm1560, %v1642, %v1641
    %v1644 = vsub.s32 4, %v1620
    %v1645 = vsel %vm1560, %v1644, %v1620
    %v1646 = vsel %vm1559, %v1548, %v1643
    %v1647 = vsel %vm1559, 0, %v1645
    %v1648 = vcosq.f32.pop %v1646
    %v1649 = vsinq.f32.pop %v1646
    %vm1650 = vweird.f32 %v1548
    %v1651 = vadd.s32 %v1647, 3
    %v1652 = vand.u32 %v1651, 3
    %vm1653 = vcmp.lt.s32.totalorder %v1652, 2
    %vm1654 = vcmp.eq.s32.totalorder %v1652, 0
    %v1655 = vxor.u32 %v1649, 2147483648
    %v1656 = vsel %vm1654, %v1648, %v1655
    %vm1657 = vcmp.eq.s32.totalorder %v1652, 2
    %v1658 = vxor.u32 %v1648, 2147483648
    %v1659 = vsel %vm1657, %v1658, %v1649
    %v1660 = vsel %vm1653, %v1656, %v1659
    %v1661 = vsel %vm1650, nan, %v1660
    %v1662 = vand.u32 2147483647, %v1549
    %vm1663 = vcmp.le.f32.partialorder %v1662, 0.7853982
    %vm1664 = vcmp.lt.s32.totalorder %v1549, 0
    %v1665 = vand.u32 %v1549, 2139095040
    %v1666 = vshrl.u32 %v1665, 23
    %v1667 = vsub.s32 %v1666, 127
    %v1668 = vand.u32 2147483647, %v1549
    %v1669 = vand.u32 %v1668, 8388607
    %v1670 = vor.u32 %v1669, 8388608
    %v1671 = vsub.s32 0, %v1670
    %v1672 = vadd.s32 %v1667, 1
    %vm1673 = vcmp.gt.s32.totalorder %v1672, 0
    %v1674 = vsel %vm1673, %v1672, 0
    %v1675 = vshrl.u32 %v1674, 5
    %v1676 = vand.u32 %v1674, 31
    %v1677 = vsub.s32 32, %v1676
    %v1678 = vshrl.u32 683565275, %v1677
    %v1679 = vshll.u32 683565275, %v1676
    %v1680 = vshrl.u32 2475754826, %v1677
    %v1681 = vor.u32 %v1679, %v1680
    %v1682 = vshll.u32 2475754826, %v1676
    %v1683 = vshrl.u32 2131351028, %v1677
    %v1684 = vor.u32 %v1682, %v1683
    %v1685 = vshll.u32 2131351028, %v1676
    %v1686 = vshrl.u32 2102212464, %v1677
    %v1687 = vor.u32 %v1685, %v1686
    %v1688 = vshll.u32 2102212464, %v1676
    %v1689 = vshrl.u32 920167782, %v1677
    %v1690 = vor.u32 %v1688, %v1689
    %v1691 = vshll.u32 920167782, %v1676
    %v1692 = vshrl.u32 1326507024, %v1677
    %v1693 = vor.u32 %v1691, %v1692
    %vm1694 = vcmp.lt.s32.totalorder %v1675, 1
    %vm1695 = vcmp.lt.s32.totalorder %v1675, 2
    %vm1696 = vcmp.lt.s32.totalorder %v1675, 3
    %vm1697 = vcmp.lt.s32.totalorder %v1675, 4
    %v1698 = vsel %vm1694, %v1678, %v1681
    %v1699 = vsel %vm1697, %v1687, 2102212464
    %v1700 = vsel %vm1696, %v1684, %v1699
    %v1701 = vsel %vm1695, %v1698, %v1700
    %v1702 = vsel %vm1694, %v1681, %v1684
    %v1703 = vsel %vm1697, %v1690, 920167782
    %v1704 = vsel %vm1696, %v1687, %v1703
    %v1705 = vsel %vm1695, %v1702, %v1704
    %v1706 = vsel %vm1694, %v1684, %v1687
    %v1707 = vsel %vm1697, %v1693, 1326507024
    %v1708 = vsel %vm1696, %v1690, %v1707
    %v1709 = vsel %vm1695, %v1706, %v1708
    %v1710 = vshll.u32 %v1670, 8
    %v1711 = vmul.u32.u64.compose %v1710, %v1709
    %v1712 = vextract.low.u32 %v1711
    %v1713 = vextract.high.u32 %v1711
    %v1714 = vmul.u32.u64.compose %v1710, %v1705
    %v1715 = vextract.low.u32 %v1714
    %v1716 = vextract.high.u32 %v1714
    %v1717 = vmul.u32 %v1710, %v1701
    %v1718 = vadd.s32 %v1713, %v1715
    %vm1719 = vc.u32 %v1713, %v1715
    %v1720 = vadd.s32 %v1716, 1
    %v1721 = vsel %vm1719, %v1720, %v1716
    %v1722 = vadd.s32 %v1717, %v1721
    %v1723 = vadd.s32 %v1722, 536870912
    %v1724 = vshrl.u32 %v1723, 30
    %v1725 = vshll.u32 %v1724, 30
    %v1726 = vsub.s32 %v1722, %v1725
    %vm1727 = vcmp.lt.s32.totalorder %v1726, 0
    %v1728 = vsub.s32 0, %v1726
    %v1729 = vsel %vm1727, %v1728, %v1726
    %v1730 = vclz %v1729
    %v1731 = vsub.s32 %v1730, 2
    %vm1732 = vcmp.gt.s32.totalorder 0, %v1731
    %v1733 = vsel %vm1732, 0, %v1731
    %v1734 = vsub.s32 32, %v1733
    %v1735 = vshll.u32 %v1726, %v1733
    %v1736 = vshrl.u32 %v1718, %v1734
    %v1737 = vor.u32 %v1735, %v1736
    %v1738 = vsub.s32 4294967266, %v1733
    %v1739 = vadd.s32 %v1738, 127
    %v1740 = vshll.u32 %v1739, 23
    %v1741 = vor.u32 4788187, %v1740
    %v1742 = vand.u32 2147483647, %v1741
    %v1744 = vcvt.s32.f32 %v1737
    %v1745 = vmul.f32 %v1744, %v1742
    %v1746 = vxor.u32 %v1745, 2147483648
    %v1747 = vsel %vm1664, %v1746, %v1745
    %v1748 = vsub.s32 4, %v1724
    %v1749 = vsel %vm1664, %v1748, %v1724
    %v1750 = vsel %vm1663, %v1549, %v1747
    %v1751 = vsel %vm1663, 0, %v1749
    %v1752 = vcosq.f32.pop %v1750
    %v1753 = vsinq.f32.pop %v1750
    %vm1754 = vweird.f32 %v1549
    %v1755 = vadd.s32 %v1751, 3
    %v1756 = vand.u32 %v1755, 3
    %vm1757 = vcmp.lt.s32.totalorder %v1756, 2
    %vm1758 = vcmp.eq.s32.totalorder %v1756, 0
    %v1759 = vxor.u32 %v1753, 2147483648
    %v1760 = vsel %vm1758, %v1752, %v1759
    %vm1761 = vcmp.eq.s32.totalorder %v1756, 2
    %v1762 = vxor.u32 %v1752, 2147483648
    %v1763 = vsel %vm1761, %v1762, %v1753
    %v1764 = vsel %vm1757, %v1760, %v1763
    %v1765 = vsel %vm1754, nan, %v1764
    %v1766 = vand.u32 2147483647, %v1550
    %vm1767 = vcmp.le.f32.partialorder %v1766, 0.7853982
    %vm1768 = vcmp.lt.s32.totalorder %v1550, 0
    %v1769 = vand.u32 %v1550, 2139095040
    %v1770 = vshrl.u32 %v1769, 23
    %v1771 = vsub.s32 %v1770, 127
    %v1772 = vand.u32 2147483647, %v1550
    %v1773 = vand.u32 %v1772, 8388607
    %v1774 = vor.u32 %v1773, 8388608
    %v1775 = vsub.s32 0, %v1774
    %v1776 = vadd.s32 %v1771, 1
    %vm1777 = vcmp.gt.s32.totalorder %v1776, 0
    %v1778 = vsel %vm1777, %v1776, 0
    %v1779 = vshrl.u32 %v1778, 5
    %v1780 = vand.u32 %v1778, 31
    %v1781 = vsub.s32 32, %v1780
    %v1782 = vshrl.u32 683565275, %v1781
    %v1783 = vshll.u32 683565275, %v1780
    %v1784 = vshrl.u32 2475754826, %v1781
    %v1785 = vor.u32 %v1783, %v1784
    %v1786 = vshll.u32 2475754826, %v1780
    %v1787 = vshrl.u32 2131351028, %v1781
    %v1788 = vor.u32 %v1786, %v1787
    %v1789 = vshll.u32 2131351028, %v1780
    %v1790 = vshrl.u32 2102212464, %v1781
    %v1791 = vor.u32 %v1789, %v1790
    %v1792 = vshll.u32 2102212464, %v1780
    %v1793 = vshrl.u32 920167782, %v1781
    %v1794 = vor.u32 %v1792, %v1793
    %v1795 = vshll.u32 920167782, %v1780
    %v1796 = vshrl.u32 1326507024, %v1781
    %v1797 = vor.u32 %v1795, %v1796
    %vm1798 = vcmp.lt.s32.totalorder %v1779, 1
    %vm1799 = vcmp.lt.s32.totalorder %v1779, 2
    %vm1800 = vcmp.lt.s32.totalorder %v1779, 3
    %vm1801 = vcmp.lt.s32.totalorder %v1779, 4
    %v1802 = vsel %vm1798, %v1782, %v1785
    %v1803 = vsel %vm1801, %v1791, 2102212464
    %v1804 = vsel %vm1800, %v1788, %v1803
    %v1805 = vsel %vm1799, %v1802, %v1804
    %v1806 = vsel %vm1798, %v1785, %v1788
    %v1807 = vsel %vm1801, %v1794, 920167782
    %v1808 = vsel %vm1800, %v1791, %v1807
    %v1809 = vsel %vm1799, %v1806, %v1808
    %v1810 = vsel %vm1798, %v1788, %v1791
    %v1811 = vsel %vm1801, %v1797, 1326507024
    %v1812 = vsel %vm1800, %v1794, %v1811
    %v1813 = vsel %vm1799, %v1810, %v1812
    %v1814 = vshll.u32 %v1774, 8
    %v1815 = vmul.u32.u64.compose %v1814, %v1813
    %v1816 = vextract.low.u32 %v1815
    %v1817 = vextract.high.u32 %v1815
    %v1818 = vmul.u32.u64.compose %v1814, %v1809
    %v1819 = vextract.low.u32 %v1818
    %v1820 = vextract.high.u32 %v1818
    %v1821 = vmul.u32 %v1814, %v1805
    %v1822 = vadd.s32 %v1817, %v1819
    %vm1823 = vc.u32 %v1817, %v1819
    %v1824 = vadd.s32 %v1820, 1
    %v1825 = vsel %vm1823, %v1824, %v1820
    %v1826 = vadd.s32 %v1821, %v1825
    %v1827 = vadd.s32 %v1826, 536870912
    %v1828 = vshrl.u32 %v1827, 30
    %v1829 = vshll.u32 %v1828, 30
    %v1830 = vsub.s32 %v1826, %v1829
    %vm1831 = vcmp.lt.s32.totalorder %v1830, 0
    %v1832 = vsub.s32 0, %v1830
    %v1833 = vsel %vm1831, %v1832, %v1830
    %v1834 = vclz %v1833
    %v1835 = vsub.s32 %v1834, 2
    %vm1836 = vcmp.gt.s32.totalorder 0, %v1835
    %v1837 = vsel %vm1836, 0, %v1835
    %v1838 = vsub.s32 32, %v1837
    %v1839 = vshll.u32 %v1830, %v1837
    %v1840 = vshrl.u32 %v1822, %v1838
    %v1841 = vor.u32 %v1839, %v1840
    %v1842 = vsub.s32 4294967266, %v1837
    %v1843 = vadd.s32 %v1842, 127
    %v1844 = vshll.u32 %v1843, 23
    %v1845 = vor.u32 4788187, %v1844
    %v1846 = vand.u32 2147483647, %v1845
    %v1848 = vcvt.s32.f32 %v1841
    %v1849 = vmul.f32 %v1848, %v1846
    %v1850 = vxor.u32 %v1849, 2147483648
    %v1851 = vsel %vm1768, %v1850, %v1849
    %v1852 = vsub.s32 4, %v1828
    %v1853 = vsel %vm1768, %v1852, %v1828
    %v1854 = vsel %vm1767, %v1550, %v1851
    %v1855 = vsel %vm1767, 0, %v1853
    %v1856 = vcosq.f32.pop %v1854
    %v1857 = vsinq.f32.pop %v1854
    %vm1858 = vweird.f32 %v1550
    %v1859 = vadd.s32 %v1855, 3
    %v1860 = vand.u32 %v1859, 3
    %vm1861 = vcmp.lt.s32.totalorder %v1860, 2
    %vm1862 = vcmp.eq.s32.totalorder %v1860, 0
    %v1863 = vxor.u32 %v1857, 2147483648
    %v1864 = vsel %vm1862, %v1856, %v1863
    %vm1865 = vcmp.eq.s32.totalorder %v1860, 2
    %v1866 = vxor.u32 %v1856, 2147483648
    %v1867 = vsel %vm1865, %v1866, %v1857
    %v1868 = vsel %vm1861, %v1864, %v1867
    %v1869 = vsel %vm1858, nan, %v1868
    %v1870 = vand.u32 2147483647, %v1551
    %vm1871 = vcmp.le.f32.partialorder %v1870, 0.7853982
    %vm1872 = vcmp.lt.s32.totalorder %v1551, 0
    %v1873 = vand.u32 %v1551, 2139095040
    %v1874 = vshrl.u32 %v1873, 23
    %v1875 = vsub.s32 %v1874, 127
    %v1876 = vand.u32 2147483647, %v1551
    %v1877 = vand.u32 %v1876, 8388607
    %v1878 = vor.u32 %v1877, 8388608
    %v1879 = vsub.s32 0, %v1878
    %v1880 = vadd.s32 %v1875, 1
    %vm1881 = vcmp.gt.s32.totalorder %v1880, 0
    %v1882 = vsel %vm1881, %v1880, 0
    %v1883 = vshrl.u32 %v1882, 5
    %v1884 = vand.u32 %v1882, 31
    %v1885 = vsub.s32 32, %v1884
    %v1886 = vshrl.u32 683565275, %v1885
    %v1887 = vshll.u32 683565275, %v1884
    %v1888 = vshrl.u32 2475754826, %v1885
    %v1889 = vor.u32 %v1887, %v1888
    %v1890 = vshll.u32 2475754826, %v1884
    %v1891 = vshrl.u32 2131351028, %v1885
    %v1892 = vor.u32 %v1890, %v1891
    %v1893 = vshll.u32 2131351028, %v1884
    %v1894 = vshrl.u32 2102212464, %v1885
    %v1895 = vor.u32 %v1893, %v1894
    %v1896 = vshll.u32 2102212464, %v1884
    %v1897 = vshrl.u32 920167782, %v1885
    %v1898 = vor.u32 %v1896, %v1897
    %v1899 = vshll.u32 920167782, %v1884
    %v1900 = vshrl.u32 1326507024, %v1885
    %v1901 = vor.u32 %v1899, %v1900
    %vm1902 = vcmp.lt.s32.totalorder %v1883, 1
    %vm1903 = vcmp.lt.s32.totalorder %v1883, 2
    %vm1904 = vcmp.lt.s32.totalorder %v1883, 3
    %vm1905 = vcmp.lt.s32.totalorder %v1883, 4
    %v1906 = vsel %vm1902, %v1886, %v1889
    %v1907 = vsel %vm1905, %v1895, 2102212464
    %v1908 = vsel %vm1904, %v1892, %v1907
    %v1909 = vsel %vm1903, %v1906, %v1908
    %v1910 = vsel %vm1902, %v1889, %v1892
    %v1911 = vsel %vm1905, %v1898, 920167782
    %v1912 = vsel %vm1904, %v1895, %v1911
    %v1913 = vsel %vm1903, %v1910, %v1912
    %v1914 = vsel %vm1902, %v1892, %v1895
    %v1915 = vsel %vm1905, %v1901, 1326507024
    %v1916 = vsel %vm1904, %v1898, %v1915
    %v1917 = vsel %vm1903, %v1914, %v1916
    %v1918 = vshll.u32 %v1878, 8
    %v1919 = vmul.u32.u64.compose %v1918, %v1917
    %v1920 = vextract.low.u32 %v1919
    %v1921 = vextract.high.u32 %v1919
    %v1922 = vmul.u32.u64.compose %v1918, %v1913
    %v1923 = vextract.low.u32 %v1922
    %v1924 = vextract.high.u32 %v1922
    %v1925 = vmul.u32 %v1918, %v1909
    %v1926 = vadd.s32 %v1921, %v1923
    %vm1927 = vc.u32 %v1921, %v1923
    %v1928 = vadd.s32 %v1924, 1
    %v1929 = vsel %vm1927, %v1928, %v1924
    %v1930 = vadd.s32 %v1925, %v1929
    %v1931 = vadd.s32 %v1930, 536870912
    %v1932 = vshrl.u32 %v1931, 30
    %v1933 = vshll.u32 %v1932, 30
    %v1934 = vsub.s32 %v1930, %v1933
    %vm1935 = vcmp.lt.s32.totalorder %v1934, 0
    %v1936 = vsub.s32 0, %v1934
    %v1937 = vsel %vm1935, %v1936, %v1934
    %v1938 = vclz %v1937
    %v1939 = vsub.s32 %v1938, 2
    %vm1940 = vcmp.gt.s32.totalorder 0, %v1939
    %v1941 = vsel %vm1940, 0, %v1939
    %v1942 = vsub.s32 32, %v1941
    %v1943 = vshll.u32 %v1934, %v1941
    %v1944 = vshrl.u32 %v1926, %v1942
    %v1945 = vor.u32 %v1943, %v1944
    %v1946 = vsub.s32 4294967266, %v1941
    %v1947 = vadd.s32 %v1946, 127
    %v1948 = vshll.u32 %v1947, 23
    %v1949 = vor.u32 4788187, %v1948
    %v1950 = vand.u32 2147483647, %v1949
    %v1952 = vcvt.s32.f32 %v1945
    %v1953 = vmul.f32 %v1952, %v1950
    %v1954 = vxor.u32 %v1953, 2147483648
    %v1955 = vsel %vm1872, %v1954, %v1953
    %v1956 = vsub.s32 4, %v1932
    %v1957 = vsel %vm1872, %v1956, %v1932
    %v1958 = vsel %vm1871, %v1551, %v1955
    %v1959 = vsel %vm1871, 0, %v1957
    %v1960 = vcosq.f32.pop %v1958
    %v1961 = vsinq.f32.pop %v1958
    %vm1962 = vweird.f32 %v1551
    %v1963 = vadd.s32 %v1959, 3
    %v1964 = vand.u32 %v1963, 3
    %vm1965 = vcmp.lt.s32.totalorder %v1964, 2
    %vm1966 = vcmp.eq.s32.totalorder %v1964, 0
    %v1967 = vxor.u32 %v1961, 2147483648
    %v1968 = vsel %vm1966, %v1960, %v1967
    %vm1969 = vcmp.eq.s32.totalorder %v1964, 2
    %v1970 = vxor.u32 %v1960, 2147483648
    %v1971 = vsel %vm1969, %v1970, %v1961
    %v1972 = vsel %vm1965, %v1968, %v1971
    %v1973 = vsel %vm1962, nan, %v1972
    %v1974 = vand.u32 2147483647, %v1552
    %vm1975 = vcmp.le.f32.partialorder %v1974, 0.7853982
    %vm1976 = vcmp.lt.s32.totalorder %v1552, 0
    %v1977 = vand.u32 %v1552, 2139095040
    %v1978 = vshrl.u32 %v1977, 23
    %v1979 = vsub.s32 %v1978, 127
    %v1980 = vand.u32 2147483647, %v1552
    %v1981 = vand.u32 %v1980, 8388607
    %v1982 = vor.u32 %v1981, 8388608
    %v1983 = vsub.s32 0, %v1982
    %v1984 = vadd.s32 %v1979, 1
    %vm1985 = vcmp.gt.s32.totalorder %v1984, 0
    %v1986 = vsel %vm1985, %v1984, 0
    %v1987 = vshrl.u32 %v1986, 5
    %v1988 = vand.u32 %v1986, 31
    %v1989 = vsub.s32 32, %v1988
    %v1990 = vshrl.u32 683565275, %v1989
    %v1991 = vshll.u32 683565275, %v1988
    %v1992 = vshrl.u32 2475754826, %v1989
    %v1993 = vor.u32 %v1991, %v1992
    %v1994 = vshll.u32 2475754826, %v1988
    %v1995 = vshrl.u32 2131351028, %v1989
    %v1996 = vor.u32 %v1994, %v1995
    %v1997 = vshll.u32 2131351028, %v1988
    %v1998 = vshrl.u32 2102212464, %v1989
    %v1999 = vor.u32 %v1997, %v1998
    %v2000 = vshll.u32 2102212464, %v1988
    %v2001 = vshrl.u32 920167782, %v1989
    %v2002 = vor.u32 %v2000, %v2001
    %v2003 = vshll.u32 920167782, %v1988
    %v2004 = vshrl.u32 1326507024, %v1989
    %v2005 = vor.u32 %v2003, %v2004
    %vm2006 = vcmp.lt.s32.totalorder %v1987, 1
    %vm2007 = vcmp.lt.s32.totalorder %v1987, 2
    %vm2008 = vcmp.lt.s32.totalorder %v1987, 3
    %vm2009 = vcmp.lt.s32.totalorder %v1987, 4
    %v2010 = vsel %vm2006, %v1990, %v1993
    %v2011 = vsel %vm2009, %v1999, 2102212464
    %v2012 = vsel %vm2008, %v1996, %v2011
    %v2013 = vsel %vm2007, %v2010, %v2012
    %v2014 = vsel %vm2006, %v1993, %v1996
    %v2015 = vsel %vm2009, %v2002, 920167782
    %v2016 = vsel %vm2008, %v1999, %v2015
    %v2017 = vsel %vm2007, %v2014, %v2016
    %v2018 = vsel %vm2006, %v1996, %v1999
    %v2019 = vsel %vm2009, %v2005, 1326507024
    %v2020 = vsel %vm2008, %v2002, %v2019
    %v2021 = vsel %vm2007, %v2018, %v2020
    %v2022 = vshll.u32 %v1982, 8
    %v2023 = vmul.u32.u64.compose %v2022, %v2021
    %v2024 = vextract.low.u32 %v2023
    %v2025 = vextract.high.u32 %v2023
    %v2026 = vmul.u32.u64.compose %v2022, %v2017
    %v2027 = vextract.low.u32 %v2026
    %v2028 = vextract.high.u32 %v2026
    %v2029 = vmul.u32 %v2022, %v2013
    %v2030 = vadd.s32 %v2025, %v2027
    %vm2031 = vc.u32 %v2025, %v2027
    %v2032 = vadd.s32 %v2028, 1
    %v2033 = vsel %vm2031, %v2032, %v2028
    %v2034 = vadd.s32 %v2029, %v2033
    %v2035 = vadd.s32 %v2034, 536870912
    %v2036 = vshrl.u32 %v2035, 30
    %v2037 = vshll.u32 %v2036, 30
    %v2038 = vsub.s32 %v2034, %v2037
    %vm2039 = vcmp.lt.s32.totalorder %v2038, 0
    %v2040 = vsub.s32 0, %v2038
    %v2041 = vsel %vm2039, %v2040, %v2038
    %v2042 = vclz %v2041
    %v2043 = vsub.s32 %v2042, 2
    %vm2044 = vcmp.gt.s32.totalorder 0, %v2043
    %v2045 = vsel %vm2044, 0, %v2043
    %v2046 = vsub.s32 32, %v2045
    %v2047 = vshll.u32 %v2038, %v2045
    %v2048 = vshrl.u32 %v2030, %v2046
    %v2049 = vor.u32 %v2047, %v2048
    %v2050 = vsub.s32 4294967266, %v2045
    %v2051 = vadd.s32 %v2050, 127
    %v2052 = vshll.u32 %v2051, 23
    %v2053 = vor.u32 4788187, %v2052
    %v2054 = vand.u32 2147483647, %v2053
    %v2056 = vcvt.s32.f32 %v2049
    %v2057 = vmul.f32 %v2056, %v2054
    %v2058 = vxor.u32 %v2057, 2147483648
    %v2059 = vsel %vm1976, %v2058, %v2057
    %v2060 = vsub.s32 4, %v2036
    %v2061 = vsel %vm1976, %v2060, %v2036
    %v2062 = vsel %vm1975, %v1552, %v2059
    %v2063 = vsel %vm1975, 0, %v2061
    %v2064 = vcosq.f32.pop %v2062
    %v2065 = vsinq.f32.pop %v2062
    %vm2066 = vweird.f32 %v1552
    %v2067 = vadd.s32 %v2063, 3
    %v2068 = vand.u32 %v2067, 3
    %vm2069 = vcmp.lt.s32.totalorder %v2068, 2
    %vm2070 = vcmp.eq.s32.totalorder %v2068, 0
    %v2071 = vxor.u32 %v2065, 2147483648
    %v2072 = vsel %vm2070, %v2064, %v2071
    %vm2073 = vcmp.eq.s32.totalorder %v2068, 2
    %v2074 = vxor.u32 %v2064, 2147483648
    %v2075 = vsel %vm2073, %v2074, %v2065
    %v2076 = vsel %vm2069, %v2072, %v2075
    %v2077 = vsel %vm2066, nan, %v2076
    %v2078 = vand.u32 2147483647, %v1553
    %vm2079 = vcmp.le.f32.partialorder %v2078, 0.7853982
    %vm2080 = vcmp.lt.s32.totalorder %v1553, 0
    %v2081 = vand.u32 %v1553, 2139095040
    %v2082 = vshrl.u32 %v2081, 23
    %v2083 = vsub.s32 %v2082, 127
    %v2084 = vand.u32 2147483647, %v1553
    %v2085 = vand.u32 %v2084, 8388607
    %v2086 = vor.u32 %v2085, 8388608
    %v2087 = vsub.s32 0, %v2086
    %v2088 = vadd.s32 %v2083, 1
    %vm2089 = vcmp.gt.s32.totalorder %v2088, 0
    %v2090 = vsel %vm2089, %v2088, 0
    %v2091 = vshrl.u32 %v2090, 5
    %v2092 = vand.u32 %v2090, 31
    %v2093 = vsub.s32 32, %v2092
    %v2094 = vshrl.u32 683565275, %v2093
    %v2095 = vshll.u32 683565275, %v2092
    %v2096 = vshrl.u32 2475754826, %v2093
    %v2097 = vor.u32 %v2095, %v2096
    %v2098 = vshll.u32 2475754826, %v2092
    %v2099 = vshrl.u32 2131351028, %v2093
    %v2100 = vor.u32 %v2098, %v2099
    %v2101 = vshll.u32 2131351028, %v2092
    %v2102 = vshrl.u32 2102212464, %v2093
    %v2103 = vor.u32 %v2101, %v2102
    %v2104 = vshll.u32 2102212464, %v2092
    %v2105 = vshrl.u32 920167782, %v2093
    %v2106 = vor.u32 %v2104, %v2105
    %v2107 = vshll.u32 920167782, %v2092
    %v2108 = vshrl.u32 1326507024, %v2093
    %v2109 = vor.u32 %v2107, %v2108
    %vm2110 = vcmp.lt.s32.totalorder %v2091, 1
    %vm2111 = vcmp.lt.s32.totalorder %v2091, 2
    %vm2112 = vcmp.lt.s32.totalorder %v2091, 3
    %vm2113 = vcmp.lt.s32.totalorder %v2091, 4
    %v2114 = vsel %vm2110, %v2094, %v2097
    %v2115 = vsel %vm2113, %v2103, 2102212464
    %v2116 = vsel %vm2112, %v2100, %v2115
    %v2117 = vsel %vm2111, %v2114, %v2116
    %v2118 = vsel %vm2110, %v2097, %v2100
    %v2119 = vsel %vm2113, %v2106, 920167782
    %v2120 = vsel %vm2112, %v2103, %v2119
    %v2121 = vsel %vm2111, %v2118, %v2120
    %v2122 = vsel %vm2110, %v2100, %v2103
    %v2123 = vsel %vm2113, %v2109, 1326507024
    %v2124 = vsel %vm2112, %v2106, %v2123
    %v2125 = vsel %vm2111, %v2122, %v2124
    %v2126 = vshll.u32 %v2086, 8
    %v2127 = vmul.u32.u64.compose %v2126, %v2125
    %v2128 = vextract.low.u32 %v2127
    %v2129 = vextract.high.u32 %v2127
    %v2130 = vmul.u32.u64.compose %v2126, %v2121
    %v2131 = vextract.low.u32 %v2130
    %v2132 = vextract.high.u32 %v2130
    %v2133 = vmul.u32 %v2126, %v2117
    %v2134 = vadd.s32 %v2129, %v2131
    %vm2135 = vc.u32 %v2129, %v2131
    %v2136 = vadd.s32 %v2132, 1
    %v2137 = vsel %vm2135, %v2136, %v2132
    %v2138 = vadd.s32 %v2133, %v2137
    %v2139 = vadd.s32 %v2138, 536870912
    %v2140 = vshrl.u32 %v2139, 30
    %v2141 = vshll.u32 %v2140, 30
    %v2142 = vsub.s32 %v2138, %v2141
    %vm2143 = vcmp.lt.s32.totalorder %v2142, 0
    %v2144 = vsub.s32 0, %v2142
    %v2145 = vsel %vm2143, %v2144, %v2142
    %v2146 = vclz %v2145
    %v2147 = vsub.s32 %v2146, 2
    %vm2148 = vcmp.gt.s32.totalorder 0, %v2147
    %v2149 = vsel %vm2148, 0, %v2147
    %v2150 = vsub.s32 32, %v2149
    %v2151 = vshll.u32 %v2142, %v2149
    %v2152 = vshrl.u32 %v2134, %v2150
    %v2153 = vor.u32 %v2151, %v2152
    %v2154 = vsub.s32 4294967266, %v2149
    %v2155 = vadd.s32 %v2154, 127
    %v2156 = vshll.u32 %v2155, 23
    %v2157 = vor.u32 4788187, %v2156
    %v2158 = vand.u32 2147483647, %v2157
    %v2160 = vcvt.s32.f32 %v2153
    %v2161 = vmul.f32 %v2160, %v2158
    %v2162 = vxor.u32 %v2161, 2147483648
    %v2163 = vsel %vm2080, %v2162, %v2161
    %v2164 = vsub.s32 4, %v2140
    %v2165 = vsel %vm2080, %v2164, %v2140
    %v2166 = vsel %vm2079, %v1553, %v2163
    %v2167 = vsel %vm2079, 0, %v2165
    %v2168 = vcosq.f32.pop %v2166
    %v2169 = vsinq.f32.pop %v2166
    %vm2170 = vweird.f32 %v1553
    %v2171 = vadd.s32 %v2167, 3
    %v2172 = vand.u32 %v2171, 3
    %vm2173 = vcmp.lt.s32.totalorder %v2172, 2
    %vm2174 = vcmp.eq.s32.totalorder %v2172, 0
    %v2175 = vxor.u32 %v2169, 2147483648
    %v2176 = vsel %vm2174, %v2168, %v2175
    %vm2177 = vcmp.eq.s32.totalorder %v2172, 2
    %v2178 = vxor.u32 %v2168, 2147483648
    %v2179 = vsel %vm2177, %v2178, %v2169
    %v2180 = vsel %vm2173, %v2176, %v2179
    %v2181 = vsel %vm2170, nan, %v2180
    %v2182 = vand.u32 2147483647, %v1554
    %vm2183 = vcmp.le.f32.partialorder %v2182, 0.7853982
    %vm2184 = vcmp.lt.s32.totalorder %v1554, 0
    %v2185 = vand.u32 %v1554, 2139095040
    %v2186 = vshrl.u32 %v2185, 23
    %v2187 = vsub.s32 %v2186, 127
    %v2188 = vand.u32 2147483647, %v1554
    %v2189 = vand.u32 %v2188, 8388607
    %v2190 = vor.u32 %v2189, 8388608
    %v2191 = vsub.s32 0, %v2190
    %v2192 = vadd.s32 %v2187, 1
    %vm2193 = vcmp.gt.s32.totalorder %v2192, 0
    %v2194 = vsel %vm2193, %v2192, 0
    %v2195 = vshrl.u32 %v2194, 5
    %v2196 = vand.u32 %v2194, 31
    %v2197 = vsub.s32 32, %v2196
    %v2198 = vshrl.u32 683565275, %v2197
    %v2199 = vshll.u32 683565275, %v2196
    %v2200 = vshrl.u32 2475754826, %v2197
    %v2201 = vor.u32 %v2199, %v2200
    %v2202 = vshll.u32 2475754826, %v2196
    %v2203 = vshrl.u32 2131351028, %v2197
    %v2204 = vor.u32 %v2202, %v2203
    %v2205 = vshll.u32 2131351028, %v2196
    %v2206 = vshrl.u32 2102212464, %v2197
    %v2207 = vor.u32 %v2205, %v2206
    %v2208 = vshll.u32 2102212464, %v2196
    %v2209 = vshrl.u32 920167782, %v2197
    %v2210 = vor.u32 %v2208, %v2209
    %v2211 = vshll.u32 920167782, %v2196
    %v2212 = vshrl.u32 1326507024, %v2197
    %v2213 = vor.u32 %v2211, %v2212
    %vm2214 = vcmp.lt.s32.totalorder %v2195, 1
    %vm2215 = vcmp.lt.s32.totalorder %v2195, 2
    %vm2216 = vcmp.lt.s32.totalorder %v2195, 3
    %vm2217 = vcmp.lt.s32.totalorder %v2195, 4
    %v2218 = vsel %vm2214, %v2198, %v2201
    %v2219 = vsel %vm2217, %v2207, 2102212464
    %v2220 = vsel %vm2216, %v2204, %v2219
    %v2221 = vsel %vm2215, %v2218, %v2220
    %v2222 = vsel %vm2214, %v2201, %v2204
    %v2223 = vsel %vm2217, %v2210, 920167782
    %v2224 = vsel %vm2216, %v2207, %v2223
    %v2225 = vsel %vm2215, %v2222, %v2224
    %v2226 = vsel %vm2214, %v2204, %v2207
    %v2227 = vsel %vm2217, %v2213, 1326507024
    %v2228 = vsel %vm2216, %v2210, %v2227
    %v2229 = vsel %vm2215, %v2226, %v2228
    %v2230 = vshll.u32 %v2190, 8
    %v2231 = vmul.u32.u64.compose %v2230, %v2229
    %v2232 = vextract.low.u32 %v2231
    %v2233 = vextract.high.u32 %v2231
    %v2234 = vmul.u32.u64.compose %v2230, %v2225
    %v2235 = vextract.low.u32 %v2234
    %v2236 = vextract.high.u32 %v2234
    %v2237 = vmul.u32 %v2230, %v2221
    %v2238 = vadd.s32 %v2233, %v2235
    %vm2239 = vc.u32 %v2233, %v2235
    %v2240 = vadd.s32 %v2236, 1
    %v2241 = vsel %vm2239, %v2240, %v2236
    %v2242 = vadd.s32 %v2237, %v2241
    %v2243 = vadd.s32 %v2242, 536870912
    %v2244 = vshrl.u32 %v2243, 30
    %v2245 = vshll.u32 %v2244, 30
    %v2246 = vsub.s32 %v2242, %v2245
    %vm2247 = vcmp.lt.s32.totalorder %v2246, 0
    %v2248 = vsub.s32 0, %v2246
    %v2249 = vsel %vm2247, %v2248, %v2246
    %v2250 = vclz %v2249
    %v2251 = vsub.s32 %v2250, 2
    %vm2252 = vcmp.gt.s32.totalorder 0, %v2251
    %v2253 = vsel %vm2252, 0, %v2251
    %v2254 = vsub.s32 32, %v2253
    %v2255 = vshll.u32 %v2246, %v2253
    %v2256 = vshrl.u32 %v2238, %v2254
    %v2257 = vor.u32 %v2255, %v2256
    %v2258 = vsub.s32 4294967266, %v2253
    %v2259 = vadd.s32 %v2258, 127
    %v2260 = vshll.u32 %v2259, 23
    %v2261 = vor.u32 4788187, %v2260
    %v2262 = vand.u32 2147483647, %v2261
    %v2264 = vcvt.s32.f32 %v2257
    %v2265 = vmul.f32 %v2264, %v2262
    %v2266 = vxor.u32 %v2265, 2147483648
    %v2267 = vsel %vm2184, %v2266, %v2265
    %v2268 = vsub.s32 4, %v2244
    %v2269 = vsel %vm2184, %v2268, %v2244
    %v2270 = vsel %vm2183, %v1554, %v2267
    %v2271 = vsel %vm2183, 0, %v2269
    %v2272 = vcosq.f32.pop %v2270
    %v2273 = vsinq.f32.pop %v2270
    %vm2274 = vweird.f32 %v1554
    %v2275 = vadd.s32 %v2271, 3
    %v2276 = vand.u32 %v2275, 3
    %vm2277 = vcmp.lt.s32.totalorder %v2276, 2
    %vm2278 = vcmp.eq.s32.totalorder %v2276, 0
    %v2279 = vxor.u32 %v2273, 2147483648
    %v2280 = vsel %vm2278, %v2272, %v2279
    %vm2281 = vcmp.eq.s32.totalorder %v2276, 2
    %v2282 = vxor.u32 %v2272, 2147483648
    %v2283 = vsel %vm2281, %v2282, %v2273
    %v2284 = vsel %vm2277, %v2280, %v2283
    %v2285 = vsel %vm2274, nan, %v2284
    %v2286 = vand.u32 2147483647, %v1555
    %vm2287 = vcmp.le.f32.partialorder %v2286, 0.7853982
    %vm2288 = vcmp.lt.s32.totalorder %v1555, 0
    %v2289 = vand.u32 %v1555, 2139095040
    %v2290 = vshrl.u32 %v2289, 23
    %v2291 = vsub.s32 %v2290, 127
    %v2292 = vand.u32 2147483647, %v1555
    %v2293 = vand.u32 %v2292, 8388607
    %v2294 = vor.u32 %v2293, 8388608
    %v2295 = vsub.s32 0, %v2294
    %v2296 = vadd.s32 %v2291, 1
    %vm2297 = vcmp.gt.s32.totalorder %v2296, 0
    %v2298 = vsel %vm2297, %v2296, 0
    %v2299 = vshrl.u32 %v2298, 5
    %v2300 = vand.u32 %v2298, 31
    %v2301 = vsub.s32 32, %v2300
    %v2302 = vshrl.u32 683565275, %v2301
    %v2303 = vshll.u32 683565275, %v2300
    %v2304 = vshrl.u32 2475754826, %v2301
    %v2305 = vor.u32 %v2303, %v2304
    %v2306 = vshll.u32 2475754826, %v2300
    %v2307 = vshrl.u32 2131351028, %v2301
    %v2308 = vor.u32 %v2306, %v2307
    %v2309 = vshll.u32 2131351028, %v2300
    %v2310 = vshrl.u32 2102212464, %v2301
    %v2311 = vor.u32 %v2309, %v2310
    %v2312 = vshll.u32 2102212464, %v2300
    %v2313 = vshrl.u32 920167782, %v2301
    %v2314 = vor.u32 %v2312, %v2313
    %v2315 = vshll.u32 920167782, %v2300
    %v2316 = vshrl.u32 1326507024, %v2301
    %v2317 = vor.u32 %v2315, %v2316
    %vm2318 = vcmp.lt.s32.totalorder %v2299, 1
    %vm2319 = vcmp.lt.s32.totalorder %v2299, 2
    %vm2320 = vcmp.lt.s32.totalorder %v2299, 3
    %vm2321 = vcmp.lt.s32.totalorder %v2299, 4
    %v2322 = vsel %vm2318, %v2302, %v2305
    %v2323 = vsel %vm2321, %v2311, 2102212464
    %v2324 = vsel %vm2320, %v2308, %v2323
    %v2325 = vsel %vm2319, %v2322, %v2324
    %v2326 = vsel %vm2318, %v2305, %v2308
    %v2327 = vsel %vm2321, %v2314, 920167782
    %v2328 = vsel %vm2320, %v2311, %v2327
    %v2329 = vsel %vm2319, %v2326, %v2328
    %v2330 = vsel %vm2318, %v2308, %v2311
    %v2331 = vsel %vm2321, %v2317, 1326507024
    %v2332 = vsel %vm2320, %v2314, %v2331
    %v2333 = vsel %vm2319, %v2330, %v2332
    %v2334 = vshll.u32 %v2294, 8
    %v2335 = vmul.u32.u64.compose %v2334, %v2333
    %v2336 = vextract.low.u32 %v2335
    %v2337 = vextract.high.u32 %v2335
    %v2338 = vmul.u32.u64.compose %v2334, %v2329
    %v2339 = vextract.low.u32 %v2338
    %v2340 = vextract.high.u32 %v2338
    %v2341 = vmul.u32 %v2334, %v2325
    %v2342 = vadd.s32 %v2337, %v2339
    %vm2343 = vc.u32 %v2337, %v2339
    %v2344 = vadd.s32 %v2340, 1
    %v2345 = vsel %vm2343, %v2344, %v2340
    %v2346 = vadd.s32 %v2341, %v2345
    %v2347 = vadd.s32 %v2346, 536870912
    %v2348 = vshrl.u32 %v2347, 30
    %v2349 = vshll.u32 %v2348, 30
    %v2350 = vsub.s32 %v2346, %v2349
    %vm2351 = vcmp.lt.s32.totalorder %v2350, 0
    %v2352 = vsub.s32 0, %v2350
    %v2353 = vsel %vm2351, %v2352, %v2350
    %v2354 = vclz %v2353
    %v2355 = vsub.s32 %v2354, 2
    %vm2356 = vcmp.gt.s32.totalorder 0, %v2355
    %v2357 = vsel %vm2356, 0, %v2355
    %v2358 = vsub.s32 32, %v2357
    %v2359 = vshll.u32 %v2350, %v2357
    %v2360 = vshrl.u32 %v2342, %v2358
    %v2361 = vor.u32 %v2359, %v2360
    %v2362 = vsub.s32 4294967266, %v2357
    %v2363 = vadd.s32 %v2362, 127
    %v2364 = vshll.u32 %v2363, 23
    %v2365 = vor.u32 4788187, %v2364
    %v2366 = vand.u32 2147483647, %v2365
    %v2368 = vcvt.s32.f32 %v2361
    %v2369 = vmul.f32 %v2368, %v2366
    %v2370 = vxor.u32 %v2369, 2147483648
    %v2371 = vsel %vm2288, %v2370, %v2369
    %v2372 = vsub.s32 4, %v2348
    %v2373 = vsel %vm2288, %v2372, %v2348
    %v2374 = vsel %vm2287, %v1555, %v2371
    %v2375 = vsel %vm2287, 0, %v2373
    %v2376 = vcosq.f32.pop %v2374
    %v2377 = vsinq.f32.pop %v2374
    %vm2378 = vweird.f32 %v1555
    %v2379 = vadd.s32 %v2375, 3
    %v2380 = vand.u32 %v2379, 3
    %vm2381 = vcmp.lt.s32.totalorder %v2380, 2
    %vm2382 = vcmp.eq.s32.totalorder %v2380, 0
    %v2383 = vxor.u32 %v2377, 2147483648
    %v2384 = vsel %vm2382, %v2376, %v2383
    %vm2385 = vcmp.eq.s32.totalorder %v2380, 2
    %v2386 = vxor.u32 %v2376, 2147483648
    %v2387 = vsel %vm2385, %v2386, %v2377
    %v2388 = vsel %vm2381, %v2384, %v2387
    %v2389 = vsel %vm2378, nan, %v2388
    %v2390 = vand.u32 2147483647, %v1556
    %vm2391 = vcmp.le.f32.partialorder %v2390, 0.7853982
    %vm2392 = vcmp.lt.s32.totalorder %v1556, 0
    %v2393 = vand.u32 %v1556, 2139095040
    %v2394 = vshrl.u32 %v2393, 23
    %v2395 = vsub.s32 %v2394, 127
    %v2396 = vand.u32 2147483647, %v1556
    %v2397 = vand.u32 %v2396, 8388607
    %v2398 = vor.u32 %v2397, 8388608
    %v2399 = vsub.s32 0, %v2398
    %v2400 = vadd.s32 %v2395, 1
    %vm2401 = vcmp.gt.s32.totalorder %v2400, 0
    %v2402 = vsel %vm2401, %v2400, 0
    %v2403 = vshrl.u32 %v2402, 5
    %v2404 = vand.u32 %v2402, 31
    %v2405 = vsub.s32 32, %v2404
    %v2406 = vshrl.u32 683565275, %v2405
    %v2407 = vshll.u32 683565275, %v2404
    %v2408 = vshrl.u32 2475754826, %v2405
    %v2409 = vor.u32 %v2407, %v2408
    %v2410 = vshll.u32 2475754826, %v2404
    %v2411 = vshrl.u32 2131351028, %v2405
    %v2412 = vor.u32 %v2410, %v2411
    %v2413 = vshll.u32 2131351028, %v2404
    %v2414 = vshrl.u32 2102212464, %v2405
    %v2415 = vor.u32 %v2413, %v2414
    %v2416 = vshll.u32 2102212464, %v2404
    %v2417 = vshrl.u32 920167782, %v2405
    %v2418 = vor.u32 %v2416, %v2417
    %v2419 = vshll.u32 920167782, %v2404
    %v2420 = vshrl.u32 1326507024, %v2405
    %v2421 = vor.u32 %v2419, %v2420
    %vm2422 = vcmp.lt.s32.totalorder %v2403, 1
    %vm2423 = vcmp.lt.s32.totalorder %v2403, 2
    %vm2424 = vcmp.lt.s32.totalorder %v2403, 3
    %vm2425 = vcmp.lt.s32.totalorder %v2403, 4
    %v2426 = vsel %vm2422, %v2406, %v2409
    %v2427 = vsel %vm2425, %v2415, 2102212464
    %v2428 = vsel %vm2424, %v2412, %v2427
    %v2429 = vsel %vm2423, %v2426, %v2428
    %v2430 = vsel %vm2422, %v2409, %v2412
    %v2431 = vsel %vm2425, %v2418, 920167782
    %v2432 = vsel %vm2424, %v2415, %v2431
    %v2433 = vsel %vm2423, %v2430, %v2432
    %v2434 = vsel %vm2422, %v2412, %v2415
    %v2435 = vsel %vm2425, %v2421, 1326507024
    %v2436 = vsel %vm2424, %v2418, %v2435
    %v2437 = vsel %vm2423, %v2434, %v2436
    %v2438 = vshll.u32 %v2398, 8
    %v2439 = vmul.u32.u64.compose %v2438, %v2437
    %v2440 = vextract.low.u32 %v2439
    %v2441 = vextract.high.u32 %v2439
    %v2442 = vmul.u32.u64.compose %v2438, %v2433
    %v2443 = vextract.low.u32 %v2442
    %v2444 = vextract.high.u32 %v2442
    %v2445 = vmul.u32 %v2438, %v2429
    %v2446 = vadd.s32 %v2441, %v2443
    %vm2447 = vc.u32 %v2441, %v2443
    %v2448 = vadd.s32 %v2444, 1
    %v2449 = vsel %vm2447, %v2448, %v2444
    %v2450 = vadd.s32 %v2445, %v2449
    %v2451 = vadd.s32 %v2450, 536870912
    %v2452 = vshrl.u32 %v2451, 30
    %v2453 = vshll.u32 %v2452, 30
    %v2454 = vsub.s32 %v2450, %v2453
    %vm2455 = vcmp.lt.s32.totalorder %v2454, 0
    %v2456 = vsub.s32 0, %v2454
    %v2457 = vsel %vm2455, %v2456, %v2454
    %v2458 = vclz %v2457
    %v2459 = vsub.s32 %v2458, 2
    %vm2460 = vcmp.gt.s32.totalorder 0, %v2459
    %v2461 = vsel %vm2460, 0, %v2459
    %v2462 = vsub.s32 32, %v2461
    %v2463 = vshll.u32 %v2454, %v2461
    %v2464 = vshrl.u32 %v2446, %v2462
    %v2465 = vor.u32 %v2463, %v2464
    %v2466 = vsub.s32 4294967266, %v2461
    %v2467 = vadd.s32 %v2466, 127
    %v2468 = vshll.u32 %v2467, 23
    %v2469 = vor.u32 4788187, %v2468
    %v2470 = vand.u32 2147483647, %v2469
    %v2472 = vcvt.s32.f32 %v2465
    %v2473 = vmul.f32 %v2472, %v2470
    %v2474 = vxor.u32 %v2473, 2147483648
    %v2475 = vsel %vm2392, %v2474, %v2473
    %v2476 = vsub.s32 4, %v2452
    %v2477 = vsel %vm2392, %v2476, %v2452
    %v2478 = vsel %vm2391, %v1556, %v2475
    %v2479 = vsel %vm2391, 0, %v2477
    %v2480 = vcosq.f32.pop %v2478
    %v2481 = vsinq.f32.pop %v2478
    %vm2482 = vweird.f32 %v1556
    %v2483 = vadd.s32 %v2479, 3
    %v2484 = vand.u32 %v2483, 3
    %vm2485 = vcmp.lt.s32.totalorder %v2484, 2
    %vm2486 = vcmp.eq.s32.totalorder %v2484, 0
    %v2487 = vxor.u32 %v2481, 2147483648
    %v2488 = vsel %vm2486, %v2480, %v2487
    %vm2489 = vcmp.eq.s32.totalorder %v2484, 2
    %v2490 = vxor.u32 %v2480, 2147483648
    %v2491 = vsel %vm2489, %v2490, %v2481
    %v2492 = vsel %vm2485, %v2488, %v2491
    %v2493 = vsel %vm2482, nan, %v2492
    %v2494 = vand.u32 2147483647, %v1557
    %vm2495 = vcmp.le.f32.partialorder %v2494, 0.7853982
    %vm2496 = vcmp.lt.s32.totalorder %v1557, 0
    %v2497 = vand.u32 %v1557, 2139095040
    %v2498 = vshrl.u32 %v2497, 23
    %v2499 = vsub.s32 %v2498, 127
    %v2500 = vand.u32 2147483647, %v1557
    %v2501 = vand.u32 %v2500, 8388607
    %v2502 = vor.u32 %v2501, 8388608
    %v2503 = vsub.s32 0, %v2502
    %v2504 = vadd.s32 %v2499, 1
    %vm2505 = vcmp.gt.s32.totalorder %v2504, 0
    %v2506 = vsel %vm2505, %v2504, 0
    %v2507 = vshrl.u32 %v2506, 5
    %v2508 = vand.u32 %v2506, 31
    %v2509 = vsub.s32 32, %v2508
    %v2510 = vshrl.u32 683565275, %v2509
    %v2511 = vshll.u32 683565275, %v2508
    %v2512 = vshrl.u32 2475754826, %v2509
    %v2513 = vor.u32 %v2511, %v2512
    %v2514 = vshll.u32 2475754826, %v2508
    %v2515 = vshrl.u32 2131351028, %v2509
    %v2516 = vor.u32 %v2514, %v2515
    %v2517 = vshll.u32 2131351028, %v2508
    %v2518 = vshrl.u32 2102212464, %v2509
    %v2519 = vor.u32 %v2517, %v2518
    %v2520 = vshll.u32 2102212464, %v2508
    %v2521 = vshrl.u32 920167782, %v2509
    %v2522 = vor.u32 %v2520, %v2521
    %v2523 = vshll.u32 920167782, %v2508
    %v2524 = vshrl.u32 1326507024, %v2509
    %v2525 = vor.u32 %v2523, %v2524
    %vm2526 = vcmp.lt.s32.totalorder %v2507, 1
    %vm2527 = vcmp.lt.s32.totalorder %v2507, 2
    %vm2528 = vcmp.lt.s32.totalorder %v2507, 3
    %vm2529 = vcmp.lt.s32.totalorder %v2507, 4
    %v2530 = vsel %vm2526, %v2510, %v2513
    %v2531 = vsel %vm2529, %v2519, 2102212464
    %v2532 = vsel %vm2528, %v2516, %v2531
    %v2533 = vsel %vm2527, %v2530, %v2532
    %v2534 = vsel %vm2526, %v2513, %v2516
    %v2535 = vsel %vm2529, %v2522, 920167782
    %v2536 = vsel %vm2528, %v2519, %v2535
    %v2537 = vsel %vm2527, %v2534, %v2536
    %v2538 = vsel %vm2526, %v2516, %v2519
    %v2539 = vsel %vm2529, %v2525, 1326507024
    %v2540 = vsel %vm2528, %v2522, %v2539
    %v2541 = vsel %vm2527, %v2538, %v2540
    %v2542 = vshll.u32 %v2502, 8
    %v2543 = vmul.u32.u64.compose %v2542, %v2541
    %v2544 = vextract.low.u32 %v2543
    %v2545 = vextract.high.u32 %v2543
    %v2546 = vmul.u32.u64.compose %v2542, %v2537
    %v2547 = vextract.low.u32 %v2546
    %v2548 = vextract.high.u32 %v2546
    %v2549 = vmul.u32 %v2542, %v2533
    %v2550 = vadd.s32 %v2545, %v2547
    %vm2551 = vc.u32 %v2545, %v2547
    %v2552 = vadd.s32 %v2548, 1
    %v2553 = vsel %vm2551, %v2552, %v2548
    %v2554 = vadd.s32 %v2549, %v2553
    %v2555 = vadd.s32 %v2554, 536870912
    %v2556 = vshrl.u32 %v2555, 30
    %v2557 = vshll.u32 %v2556, 30
    %v2558 = vsub.s32 %v2554, %v2557
    %vm2559 = vcmp.lt.s32.totalorder %v2558, 0
    %v2560 = vsub.s32 0, %v2558
    %v2561 = vsel %vm2559, %v2560, %v2558
    %v2562 = vclz %v2561
    %v2563 = vsub.s32 %v2562, 2
    %vm2564 = vcmp.gt.s32.totalorder 0, %v2563
    %v2565 = vsel %vm2564, 0, %v2563
    %v2566 = vsub.s32 32, %v2565
    %v2567 = vshll.u32 %v2558, %v2565
    %v2568 = vshrl.u32 %v2550, %v2566
    %v2569 = vor.u32 %v2567, %v2568
    %v2570 = vsub.s32 4294967266, %v2565
    %v2571 = vadd.s32 %v2570, 127
    %v2572 = vshll.u32 %v2571, 23
    %v2573 = vor.u32 4788187, %v2572
    %v2574 = vand.u32 2147483647, %v2573
    %v2576 = vcvt.s32.f32 %v2569
    %v2577 = vmul.f32 %v2576, %v2574
    %v2578 = vxor.u32 %v2577, 2147483648
    %v2579 = vsel %vm2496, %v2578, %v2577
    %v2580 = vsub.s32 4, %v2556
    %v2581 = vsel %vm2496, %v2580, %v2556
    %v2582 = vsel %vm2495, %v1557, %v2579
    %v2583 = vsel %vm2495, 0, %v2581
    %v2584 = vcosq.f32.pop %v2582
    %v2585 = vsinq.f32.pop %v2582
    %vm2586 = vweird.f32 %v1557
    %v2587 = vadd.s32 %v2583, 3
    %v2588 = vand.u32 %v2587, 3
    %vm2589 = vcmp.lt.s32.totalorder %v2588, 2
    %vm2590 = vcmp.eq.s32.totalorder %v2588, 0
    %v2591 = vxor.u32 %v2585, 2147483648
    %v2592 = vsel %vm2590, %v2584, %v2591
    %vm2593 = vcmp.eq.s32.totalorder %v2588, 2
    %v2594 = vxor.u32 %v2584, 2147483648
    %v2595 = vsel %vm2593, %v2594, %v2585
    %v2596 = vsel %vm2589, %v2592, %v2595
    %v2597 = vsel %vm2586, nan, %v2596
    %s2598 = scalar_lea.vmem %s3, 32
    %v2599 = vld [vmem:[%s2598] sm:$0xff]
    %v2600 = vld [vmem:[%s2598 + $0x8] sm:$0xff]
    %v2601 = vld [vmem:[%s2598 + $0x10] sm:$0xff]
    %v2602 = vld [vmem:[%s2598 + $0x18] sm:$0xff]
    %s2603 = scalar_lea.vmem %s4, 2
    %v2604 = vld [vmem:[%s2603] sm:$0x3]
    %v2606 = vsel %vm93, %v2604, 0
    %2608 = vmatprep.subr.mxu0 0.0
    %2609 = vmatpush1.msra.mxu0 0.0
    %2610 = vmatprep.subr.mxu0 0.0
    %2611 = vmatpush1.msra.mxu0 0.0
    %2612 = vmatprep.subr.mxu0 0.0
    %2613 = vmatpush1.msra.mxu0 0.0
    %2614 = vmatprep.subr.mxu0 0.0
    %2615 = vmatpush1.msra.mxu0 0.0
    %2616 = vmatprep.subr.mxu0 0.0
    %2617 = vmatpush1.msra.mxu0 0.0
    %2618 = vmatprep.subr.mxu0 0.0
    %2619 = vmatpush1.msra.mxu0 0.0
    %2620 = vmatprep.subr.mxu0 0.0
    %2621 = vmatpush1.msra.mxu0 0.0
    %2622 = vmatprep.subr.mxu0 0.0
    %2623 = vmatpush1.msra.mxu0 0.0
    %2624 = vmatprep.subr.mxu0 0.0
    %2625 = vmatpush1.msra.mxu0 0.0
    %2626 = vmatprep.subr.mxu0 0.0
    %2627 = vmatpush1.msra.mxu0 0.0
    %2628 = vmatprep.subr.mxu0 0.0
    %2629 = vmatpush1.msra.mxu0 0.0
    %2630 = vmatprep.subr.mxu0 0.0
    %2631 = vmatpush1.msra.mxu0 0.0
    %2632 = vmatprep.subr.mxu0 0.0
    %2633 = vmatpush1.msra.mxu0 0.0
    %2634 = vmatprep.subr.mxu0 0.0
    %2635 = vmatpush1.msra.mxu0 0.0
    %2636 = vmatprep.subr.mxu0 0.0
    %2637 = vmatpush1.msra.mxu0 0.0
    %2638 = vmatprep.subr.mxu0 0.0
    %2639 = vmatpush1.msra.mxu0 %v2606
    %2640 = vmatprep.subr.mxu0 0.0
    %2641 = vmatpush2.msra.mxu0 0.0
    %2642 = vmatprep.subr.mxu0 0.0
    %2643 = vmatpush2.msra.mxu0 0.0
    %2644 = vmatprep.subr.mxu0 0.0
    %2645 = vmatpush2.msra.mxu0 0.0
    %2646 = vmatprep.subr.mxu0 0.0
    %2647 = vmatpush2.msra.mxu0 0.0
    %2648 = vmatprep.subr.mxu0 0.0
    %2649 = vmatpush2.msra.mxu0 0.0
    %2650 = vmatprep.subr.mxu0 0.0
    %2651 = vmatpush2.msra.mxu0 0.0
    %2652 = vmatprep.subr.mxu0 0.0
    %2653 = vmatpush2.msra.mxu0 0.0
    %2654 = vmatprep.subr.mxu0 0.0
    %2655 = vmatpush2.msra.mxu0 0.0
    %2656 = vmatprep.subr.mxu0 0.0
    %2657 = vmatpush2.msra.mxu0 0.0
    %2658 = vmatprep.subr.mxu0 0.0
    %2659 = vmatpush2.msra.mxu0 0.0
    %2660 = vmatprep.subr.mxu0 0.0
    %2661 = vmatpush2.msra.mxu0 0.0
    %2662 = vmatprep.subr.mxu0 0.0
    %2663 = vmatpush2.msra.mxu0 0.0
    %2664 = vmatprep.subr.mxu0 0.0
    %2665 = vmatpush2.msra.mxu0 0.0
    %2666 = vmatprep.subr.mxu0 0.0
    %2667 = vmatpush2.msra.mxu0 0.0
    %2668 = vmatprep.subr.mxu0 0.0
    %2669 = vmatpush2.msra.mxu0 0.0
    %2670 = vmatprep.subr.mxu0 0.0
    %2671 = vmatpush2.msra.mxu0 0.0
    %2672 = vmatprep.mubr.f32.mxu0 0.0
    %2673 = vmatmul.mubr.f32.gmra.mxu0 %v64
    %v2674 = vpop.f32.mrf.mxu0
    %v2675 = vadd.f32 0.0, %v2674
    %v2676 = vpop.f32.mrf.mxu0
    %2677 = vmatprep.mubr.f32.mxu0 0.0
    %2678 = vmatmul.mubr.f32.gmra.mxu0 %v67
    %v2679 = vpop.f32.mrf.mxu0
    %v2680 = vadd.f32 0.0, %v2679
    %v2681 = vpop.f32.mrf.mxu0
    %2682 = vmatprep.mubr.f32.mxu0 0.0
    %2683 = vmatmul.mubr.f32.gmra.mxu0 %v70
    %v2684 = vpop.f32.mrf.mxu0
    %v2685 = vadd.f32 0.0, %v2684
    %v2686 = vpop.f32.mrf.mxu0
    %2687 = vmatprep.mubr.f32.mxu0 0.0
    %2688 = vmatmul.mubr.f32.gmra.mxu0 %v73
    %v2689 = vpop.f32.mrf.mxu0
    %v2690 = vadd.f32 0.0, %v2689
    %v2691 = vpop.f32.mrf.mxu0
    %2692 = vmatprep.mubr.f32.mxu0 0.0
    %2693 = vmatmul.mubr.f32.gmra.mxu0 %v76
    %v2694 = vpop.f32.mrf.mxu0
    %v2695 = vadd.f32 0.0, %v2694
    %v2696 = vpop.f32.mrf.mxu0
    %2697 = vmatprep.mubr.f32.mxu0 0.0
    %2698 = vmatmul.mubr.f32.gmra.mxu0 %v79
    %v2699 = vpop.f32.mrf.mxu0
    %v2700 = vadd.f32 0.0, %v2699
    %v2701 = vpop.f32.mrf.mxu0
    %2702 = vmatprep.mubr.f32.mxu0 0.0
    %2703 = vmatmul.mubr.f32.gmra.mxu0 %v82
    %v2704 = vpop.f32.mrf.mxu0
    %v2705 = vadd.f32 0.0, %v2704
    %v2706 = vpop.f32.mrf.mxu0
    %2707 = vmatprep.mubr.f32.mxu0 0.0
    %2708 = vmatmul.mubr.f32.gmra.mxu0 %v85
    %v2709 = vpop.f32.mrf.mxu0
    %v2710 = vadd.f32 0.0, %v2709
    %v2711 = vpop.f32.mrf.mxu0
    %2712 = vmatprep.mubr.f32.mxu0 0.0
    %2713 = vmatmul.mubr.f32.gmra.mxu0 %v88
    %v2714 = vpop.f32.mrf.mxu0
    %v2715 = vadd.f32 0.0, %v2714
    %v2716 = vpop.f32.mrf.mxu0
    %2717 = vmatprep.mubr.f32.mxu0 0.0
    %2718 = vmatmul.mubr.f32.gmra.mxu0 %v91
    %v2719 = vpop.f32.mrf.mxu0
    %v2720 = vadd.f32 0.0, %v2719
    %v2721 = vpop.f32.mrf.mxu0
    %2722 = vdwg.mxu0
    %v2724 = vsel %vm1385, %v1661, 0
    %v2727 = vsel %vm1385, %v1765, 0
    %v2730 = vsel %vm1385, %v1869, 0
    %v2733 = vsel %vm1385, %v1973, 0
    %v2736 = vsel %vm1385, %v2077, 0
    %v2739 = vsel %vm1385, %v2181, 0
    %v2742 = vsel %vm1385, %v2285, 0
    %v2745 = vsel %vm1385, %v2389, 0
    %v2748 = vsel %vm1385, %v2493, 0
    %v2751 = vsel %vm1385, %v2597, 0
    %2753 = vmatprep.subr.mxu0 0.0
    %2754 = vmatpush1.msra.mxu0 0.0
    %2755 = vmatprep.subr.mxu0 0.0
    %2756 = vmatpush1.msra.mxu0 0.0
    %2757 = vmatprep.subr.mxu0 0.0
    %2758 = vmatpush1.msra.mxu0 0.0
    %2759 = vmatprep.subr.mxu0 0.0
    %2760 = vmatpush1.msra.mxu0 0.0
    %2761 = vmatprep.subr.mxu0 0.0
    %2762 = vmatpush1.msra.mxu0 0.0
    %2763 = vmatprep.subr.mxu0 0.0
    %2764 = vmatpush1.msra.mxu0 0.0
    %2765 = vmatprep.subr.mxu0 0.0
    %2766 = vmatpush1.msra.mxu0 0.0
    %2767 = vmatprep.subr.mxu0 0.0
    %2768 = vmatpush1.msra.mxu0 0.0
    %2769 = vmatprep.subr.mxu0 0.0
    %2770 = vmatpush1.msra.mxu0 0.0
    %2771 = vmatprep.subr.mxu0 0.0
    %2772 = vmatpush1.msra.mxu0 0.0
    %2773 = vmatprep.subr.mxu0 0.0
    %2774 = vmatpush1.msra.mxu0 0.0
    %2775 = vmatprep.subr.mxu0 0.0
    %2776 = vmatpush1.msra.mxu0 0.0
    %2777 = vmatprep.subr.mxu0 0.0
    %2778 = vmatpush1.msra.mxu0 %v2602
    %2779 = vmatprep.subr.mxu0 0.0
    %2780 = vmatpush1.msra.mxu0 %v2601
    %2781 = vmatprep.subr.mxu0 0.0
    %2782 = vmatpush1.msra.mxu0 %v2600
    %2783 = vmatprep.subr.mxu0 0.0
    %2784 = vmatpush1.msra.mxu0 %v2599
    %2785 = vmatprep.subr.mxu0 0.0
    %2786 = vmatpush2.msra.mxu0 0.0
    %2787 = vmatprep.subr.mxu0 0.0
    %2788 = vmatpush2.msra.mxu0 0.0
    %2789 = vmatprep.subr.mxu0 0.0
    %2790 = vmatpush2.msra.mxu0 0.0
    %2791 = vmatprep.subr.mxu0 0.0
    %2792 = vmatpush2.msra.mxu0 0.0
    %2793 = vmatprep.subr.mxu0 0.0
    %2794 = vmatpush2.msra.mxu0 0.0
    %2795 = vmatprep.subr.mxu0 0.0
    %2796 = vmatpush2.msra.mxu0 0.0
    %2797 = vmatprep.subr.mxu0 0.0
    %2798 = vmatpush2.msra.mxu0 0.0
    %2799 = vmatprep.subr.mxu0 0.0
    %2800 = vmatpush2.msra.mxu0 0.0
    %2801 = vmatprep.subr.mxu0 0.0
    %2802 = vmatpush2.msra.mxu0 0.0
    %2803 = vmatprep.subr.mxu0 0.0
    %2804 = vmatpush2.msra.mxu0 0.0
    %2805 = vmatprep.subr.mxu0 0.0
    %2806 = vmatpush2.msra.mxu0 0.0
    %2807 = vmatprep.subr.mxu0 0.0
    %2808 = vmatpush2.msra.mxu0 0.0
    %2809 = vmatprep.subr.mxu0 0.0
    %2810 = vmatpush2.msra.mxu0 0.0
    %2811 = vmatprep.subr.mxu0 0.0
    %2812 = vmatpush2.msra.mxu0 0.0
    %2813 = vmatprep.subr.mxu0 0.0
    %2814 = vmatpush2.msra.mxu0 0.0
    %2815 = vmatprep.subr.mxu0 0.0
    %2816 = vmatpush2.msra.mxu0 0.0
    %2817 = vmatprep.mubr.f32.mxu0 0.0
    %2818 = vmatmul.mubr.f32.gmra.mxu0 %v2724
    %v2819 = vpop.f32.mrf.mxu0
    %v2820 = vadd.f32 %v2675, %v2819
    %v2821 = vpop.f32.mrf.mxu0
    %2822 = vmatprep.mubr.f32.mxu0 0.0
    %2823 = vmatmul.mubr.f32.gmra.mxu0 %v2727
    %v2824 = vpop.f32.mrf.mxu0
    %v2825 = vadd.f32 %v2680, %v2824
    %v2826 = vpop.f32.mrf.mxu0
    %2827 = vmatprep.mubr.f32.mxu0 0.0
    %2828 = vmatmul.mubr.f32.gmra.mxu0 %v2730
    %v2829 = vpop.f32.mrf.mxu0
    %v2830 = vadd.f32 %v2685, %v2829
    %v2831 = vpop.f32.mrf.mxu0
    %2832 = vmatprep.mubr.f32.mxu0 0.0
    %2833 = vmatmul.mubr.f32.gmra.mxu0 %v2733
    %v2834 = vpop.f32.mrf.mxu0
    %v2835 = vadd.f32 %v2690, %v2834
    %v2836 = vpop.f32.mrf.mxu0
    %2837 = vmatprep.mubr.f32.mxu0 0.0
    %2838 = vmatmul.mubr.f32.gmra.mxu0 %v2736
    %v2839 = vpop.f32.mrf.mxu0
    %v2840 = vadd.f32 %v2695, %v2839
    %v2841 = vpop.f32.mrf.mxu0
    %2842 = vmatprep.mubr.f32.mxu0 0.0
    %2843 = vmatmul.mubr.f32.gmra.mxu0 %v2739
    %v2844 = vpop.f32.mrf.mxu0
    %v2845 = vadd.f32 %v2700, %v2844
    %v2846 = vpop.f32.mrf.mxu0
    %2847 = vmatprep.mubr.f32.mxu0 0.0
    %2848 = vmatmul.mubr.f32.gmra.mxu0 %v2742
    %v2849 = vpop.f32.mrf.mxu0
    %v2850 = vadd.f32 %v2705, %v2849
    %v2851 = vpop.f32.mrf.mxu0
    %2852 = vmatprep.mubr.f32.mxu0 0.0
    %2853 = vmatmul.mubr.f32.gmra.mxu0 %v2745
    %v2854 = vpop.f32.mrf.mxu0
    %v2855 = vadd.f32 %v2710, %v2854
    %v2856 = vpop.f32.mrf.mxu0
    %2857 = vmatprep.mubr.f32.mxu0 0.0
    %2858 = vmatmul.mubr.f32.gmra.mxu0 %v2748
    %v2859 = vpop.f32.mrf.mxu0
    %v2860 = vadd.f32 %v2715, %v2859
    %v2861 = vpop.f32.mrf.mxu0
    %2862 = vmatprep.mubr.f32.mxu0 0.0
    %2863 = vmatmul.mubr.f32.gmra.mxu0 %v2751
    %v2864 = vpop.f32.mrf.mxu0
    %v2865 = vadd.f32 %v2720, %v2864
    %v2866 = vpop.f32.mrf.mxu0
    %2867 = vdwg.mxu0
    %s2868 = scalar_lea.vmem %s5, 1
    %v2869 = vld [vmem:[%s2868] sm:$0x1]
    %v2871 = vlaneseq
    %v2872 = vshrl.u32 %v2871, 7
    %v2873 = vsub.s32 0, %v2872
    %v2874 = vrot.slane %v2869, %v2873
    %v2876 = vadd.f32 %v2820, %v2874
    %v2877 = vadd.f32 %v2825, %v2874
    %v2878 = vadd.f32 %v2830, %v2874
    %v2879 = vadd.f32 %v2835, %v2874
    %v2880 = vadd.f32 %v2840, %v2874
    %v2881 = vadd.f32 %v2845, %v2874
    %v2882 = vadd.f32 %v2850, %v2874
    %v2883 = vadd.f32 %v2855, %v2874
    %v2884 = vadd.f32 %v2860, %v2874
    %v2885 = vadd.f32 %v2865, %v2874
    %v2886 = vmul.f32 %v2876, 30.0
    %v2887 = vmul.f32 %v2877, 30.0
    %v2888 = vmul.f32 %v2878, 30.0
    %v2889 = vmul.f32 %v2879, 30.0
    %v2890 = vmul.f32 %v2880, 30.0
    %v2891 = vmul.f32 %v2881, 30.0
    %v2892 = vmul.f32 %v2882, 30.0
    %v2893 = vmul.f32 %v2883, 30.0
    %v2894 = vmul.f32 %v2884, 30.0
    %v2895 = vmul.f32 %v2885, 30.0
    %v2896 = vand.u32 2147483647, %v2886
    %vm2897 = vcmp.le.f32.partialorder %v2896, 0.7853982
    %vm2898 = vcmp.lt.s32.totalorder %v2886, 0
    %v2899 = vand.u32 %v2886, 2139095040
    %v2900 = vshrl.u32 %v2899, 23
    %v2901 = vsub.s32 %v2900, 127
    %v2902 = vand.u32 2147483647, %v2886
    %v2903 = vand.u32 %v2902, 8388607
    %v2904 = vor.u32 %v2903, 8388608
    %v2905 = vsub.s32 0, %v2904
    %v2906 = vadd.s32 %v2901, 1
    %vm2907 = vcmp.gt.s32.totalorder %v2906, 0
    %v2908 = vsel %vm2907, %v2906, 0
    %v2909 = vshrl.u32 %v2908, 5
    %v2910 = vand.u32 %v2908, 31
    %v2911 = vsub.s32 32, %v2910
    %v2912 = vshrl.u32 683565275, %v2911
    %v2913 = vshll.u32 683565275, %v2910
    %v2914 = vshrl.u32 2475754826, %v2911
    %v2915 = vor.u32 %v2913, %v2914
    %v2916 = vshll.u32 2475754826, %v2910
    %v2917 = vshrl.u32 2131351028, %v2911
    %v2918 = vor.u32 %v2916, %v2917
    %v2919 = vshll.u32 2131351028, %v2910
    %v2920 = vshrl.u32 2102212464, %v2911
    %v2921 = vor.u32 %v2919, %v2920
    %v2922 = vshll.u32 2102212464, %v2910
    %v2923 = vshrl.u32 920167782, %v2911
    %v2924 = vor.u32 %v2922, %v2923
    %v2925 = vshll.u32 920167782, %v2910
    %v2926 = vshrl.u32 1326507024, %v2911
    %v2927 = vor.u32 %v2925, %v2926
    %vm2928 = vcmp.lt.s32.totalorder %v2909, 1
    %vm2929 = vcmp.lt.s32.totalorder %v2909, 2
    %vm2930 = vcmp.lt.s32.totalorder %v2909, 3
    %vm2931 = vcmp.lt.s32.totalorder %v2909, 4
    %v2932 = vsel %vm2928, %v2912, %v2915
    %v2933 = vsel %vm2931, %v2921, 2102212464
    %v2934 = vsel %vm2930, %v2918, %v2933
    %v2935 = vsel %vm2929, %v2932, %v2934
    %v2936 = vsel %vm2928, %v2915, %v2918
    %v2937 = vsel %vm2931, %v2924, 920167782
    %v2938 = vsel %vm2930, %v2921, %v2937
    %v2939 = vsel %vm2929, %v2936, %v2938
    %v2940 = vsel %vm2928, %v2918, %v2921
    %v2941 = vsel %vm2931, %v2927, 1326507024
    %v2942 = vsel %vm2930, %v2924, %v2941
    %v2943 = vsel %vm2929, %v2940, %v2942
    %v2944 = vshll.u32 %v2904, 8
    %v2945 = vmul.u32.u64.compose %v2944, %v2943
    %v2946 = vextract.low.u32 %v2945
    %v2947 = vextract.high.u32 %v2945
    %v2948 = vmul.u32.u64.compose %v2944, %v2939
    %v2949 = vextract.low.u32 %v2948
    %v2950 = vextract.high.u32 %v2948
    %v2951 = vmul.u32 %v2944, %v2935
    %v2952 = vadd.s32 %v2947, %v2949
    %vm2953 = vc.u32 %v2947, %v2949
    %v2954 = vadd.s32 %v2950, 1
    %v2955 = vsel %vm2953, %v2954, %v2950
    %v2956 = vadd.s32 %v2951, %v2955
    %v2957 = vadd.s32 %v2956, 536870912
    %v2958 = vshrl.u32 %v2957, 30
    %v2959 = vshll.u32 %v2958, 30
    %v2960 = vsub.s32 %v2956, %v2959
    %vm2961 = vcmp.lt.s32.totalorder %v2960, 0
    %v2962 = vsub.s32 0, %v2960
    %v2963 = vsel %vm2961, %v2962, %v2960
    %v2964 = vclz %v2963
    %v2965 = vsub.s32 %v2964, 2
    %vm2966 = vcmp.gt.s32.totalorder 0, %v2965
    %v2967 = vsel %vm2966, 0, %v2965
    %v2968 = vsub.s32 32, %v2967
    %v2969 = vshll.u32 %v2960, %v2967
    %v2970 = vshrl.u32 %v2952, %v2968
    %v2971 = vor.u32 %v2969, %v2970
    %v2972 = vsub.s32 4294967266, %v2967
    %v2973 = vadd.s32 %v2972, 127
    %v2974 = vshll.u32 %v2973, 23
    %v2975 = vor.u32 4788187, %v2974
    %v2976 = vand.u32 2147483647, %v2975
    %v2978 = vcvt.s32.f32 %v2971
    %v2979 = vmul.f32 %v2978, %v2976
    %v2980 = vxor.u32 %v2979, 2147483648
    %v2981 = vsel %vm2898, %v2980, %v2979
    %v2982 = vsub.s32 4, %v2958
    %v2983 = vsel %vm2898, %v2982, %v2958
    %v2984 = vsel %vm2897, %v2886, %v2981
    %v2985 = vsel %vm2897, 0, %v2983
    %v2986 = vcosq.f32.pop %v2984
    %v2987 = vsinq.f32.pop %v2984
    %vm2988 = vweird.f32 %v2886
    %v2989 = vadd.s32 %v2985, 3
    %v2990 = vand.u32 %v2989, 3
    %vm2991 = vcmp.lt.s32.totalorder %v2990, 2
    %vm2992 = vcmp.eq.s32.totalorder %v2990, 0
    %v2993 = vxor.u32 %v2987, 2147483648
    %v2994 = vsel %vm2992, %v2986, %v2993
    %vm2995 = vcmp.eq.s32.totalorder %v2990, 2
    %v2996 = vxor.u32 %v2986, 2147483648
    %v2997 = vsel %vm2995, %v2996, %v2987
    %v2998 = vsel %vm2991, %v2994, %v2997
    %v2999 = vsel %vm2988, nan, %v2998
    %v3000 = vand.u32 2147483647, %v2887
    %vm3001 = vcmp.le.f32.partialorder %v3000, 0.7853982
    %vm3002 = vcmp.lt.s32.totalorder %v2887, 0
    %v3003 = vand.u32 %v2887, 2139095040
    %v3004 = vshrl.u32 %v3003, 23
    %v3005 = vsub.s32 %v3004, 127
    %v3006 = vand.u32 2147483647, %v2887
    %v3007 = vand.u32 %v3006, 8388607
    %v3008 = vor.u32 %v3007, 8388608
    %v3009 = vsub.s32 0, %v3008
    %v3010 = vadd.s32 %v3005, 1
    %vm3011 = vcmp.gt.s32.totalorder %v3010, 0
    %v3012 = vsel %vm3011, %v3010, 0
    %v3013 = vshrl.u32 %v3012, 5
    %v3014 = vand.u32 %v3012, 31
    %v3015 = vsub.s32 32, %v3014
    %v3016 = vshrl.u32 683565275, %v3015
    %v3017 = vshll.u32 683565275, %v3014
    %v3018 = vshrl.u32 2475754826, %v3015
    %v3019 = vor.u32 %v3017, %v3018
    %v3020 = vshll.u32 2475754826, %v3014
    %v3021 = vshrl.u32 2131351028, %v3015
    %v3022 = vor.u32 %v3020, %v3021
    %v3023 = vshll.u32 2131351028, %v3014
    %v3024 = vshrl.u32 2102212464, %v3015
    %v3025 = vor.u32 %v3023, %v3024
    %v3026 = vshll.u32 2102212464, %v3014
    %v3027 = vshrl.u32 920167782, %v3015
    %v3028 = vor.u32 %v3026, %v3027
    %v3029 = vshll.u32 920167782, %v3014
    %v3030 = vshrl.u32 1326507024, %v3015
    %v3031 = vor.u32 %v3029, %v3030
    %vm3032 = vcmp.lt.s32.totalorder %v3013, 1
    %vm3033 = vcmp.lt.s32.totalorder %v3013, 2
    %vm3034 = vcmp.lt.s32.totalorder %v3013, 3
    %vm3035 = vcmp.lt.s32.totalorder %v3013, 4
    %v3036 = vsel %vm3032, %v3016, %v3019
    %v3037 = vsel %vm3035, %v3025, 2102212464
    %v3038 = vsel %vm3034, %v3022, %v3037
    %v3039 = vsel %vm3033, %v3036, %v3038
    %v3040 = vsel %vm3032, %v3019, %v3022
    %v3041 = vsel %vm3035, %v3028, 920167782
    %v3042 = vsel %vm3034, %v3025, %v3041
    %v3043 = vsel %vm3033, %v3040, %v3042
    %v3044 = vsel %vm3032, %v3022, %v3025
    %v3045 = vsel %vm3035, %v3031, 1326507024
    %v3046 = vsel %vm3034, %v3028, %v3045
    %v3047 = vsel %vm3033, %v3044, %v3046
    %v3048 = vshll.u32 %v3008, 8
    %v3049 = vmul.u32.u64.compose %v3048, %v3047
    %v3050 = vextract.low.u32 %v3049
    %v3051 = vextract.high.u32 %v3049
    %v3052 = vmul.u32.u64.compose %v3048, %v3043
    %v3053 = vextract.low.u32 %v3052
    %v3054 = vextract.high.u32 %v3052
    %v3055 = vmul.u32 %v3048, %v3039
    %v3056 = vadd.s32 %v3051, %v3053
    %vm3057 = vc.u32 %v3051, %v3053
    %v3058 = vadd.s32 %v3054, 1
    %v3059 = vsel %vm3057, %v3058, %v3054
    %v3060 = vadd.s32 %v3055, %v3059
    %v3061 = vadd.s32 %v3060, 536870912
    %v3062 = vshrl.u32 %v3061, 30
    %v3063 = vshll.u32 %v3062, 30
    %v3064 = vsub.s32 %v3060, %v3063
    %vm3065 = vcmp.lt.s32.totalorder %v3064, 0
    %v3066 = vsub.s32 0, %v3064
    %v3067 = vsel %vm3065, %v3066, %v3064
    %v3068 = vclz %v3067
    %v3069 = vsub.s32 %v3068, 2
    %vm3070 = vcmp.gt.s32.totalorder 0, %v3069
    %v3071 = vsel %vm3070, 0, %v3069
    %v3072 = vsub.s32 32, %v3071
    %v3073 = vshll.u32 %v3064, %v3071
    %v3074 = vshrl.u32 %v3056, %v3072
    %v3075 = vor.u32 %v3073, %v3074
    %v3076 = vsub.s32 4294967266, %v3071
    %v3077 = vadd.s32 %v3076, 127
    %v3078 = vshll.u32 %v3077, 23
    %v3079 = vor.u32 4788187, %v3078
    %v3080 = vand.u32 2147483647, %v3079
    %v3082 = vcvt.s32.f32 %v3075
    %v3083 = vmul.f32 %v3082, %v3080
    %v3084 = vxor.u32 %v3083, 2147483648
    %v3085 = vsel %vm3002, %v3084, %v3083
    %v3086 = vsub.s32 4, %v3062
    %v3087 = vsel %vm3002, %v3086, %v3062
    %v3088 = vsel %vm3001, %v2887, %v3085
    %v3089 = vsel %vm3001, 0, %v3087
    %v3090 = vcosq.f32.pop %v3088
    %v3091 = vsinq.f32.pop %v3088
    %vm3092 = vweird.f32 %v2887
    %v3093 = vadd.s32 %v3089, 3
    %v3094 = vand.u32 %v3093, 3
    %vm3095 = vcmp.lt.s32.totalorder %v3094, 2
    %vm3096 = vcmp.eq.s32.totalorder %v3094, 0
    %v3097 = vxor.u32 %v3091, 2147483648
    %v3098 = vsel %vm3096, %v3090, %v3097
    %vm3099 = vcmp.eq.s32.totalorder %v3094, 2
    %v3100 = vxor.u32 %v3090, 2147483648
    %v3101 = vsel %vm3099, %v3100, %v3091
    %v3102 = vsel %vm3095, %v3098, %v3101
    %v3103 = vsel %vm3092, nan, %v3102
    %v3104 = vand.u32 2147483647, %v2888
    %vm3105 = vcmp.le.f32.partialorder %v3104, 0.7853982
    %vm3106 = vcmp.lt.s32.totalorder %v2888, 0
    %v3107 = vand.u32 %v2888, 2139095040
    %v3108 = vshrl.u32 %v3107, 23
    %v3109 = vsub.s32 %v3108, 127
    %v3110 = vand.u32 2147483647, %v2888
    %v3111 = vand.u32 %v3110, 8388607
    %v3112 = vor.u32 %v3111, 8388608
    %v3113 = vsub.s32 0, %v3112
    %v3114 = vadd.s32 %v3109, 1
    %vm3115 = vcmp.gt.s32.totalorder %v3114, 0
    %v3116 = vsel %vm3115, %v3114, 0
    %v3117 = vshrl.u32 %v3116, 5
    %v3118 = vand.u32 %v3116, 31
    %v3119 = vsub.s32 32, %v3118
    %v3120 = vshrl.u32 683565275, %v3119
    %v3121 = vshll.u32 683565275, %v3118
    %v3122 = vshrl.u32 2475754826, %v3119
    %v3123 = vor.u32 %v3121, %v3122
    %v3124 = vshll.u32 2475754826, %v3118
    %v3125 = vshrl.u32 2131351028, %v3119
    %v3126 = vor.u32 %v3124, %v3125
    %v3127 = vshll.u32 2131351028, %v3118
    %v3128 = vshrl.u32 2102212464, %v3119
    %v3129 = vor.u32 %v3127, %v3128
    %v3130 = vshll.u32 2102212464, %v3118
    %v3131 = vshrl.u32 920167782, %v3119
    %v3132 = vor.u32 %v3130, %v3131
    %v3133 = vshll.u32 920167782, %v3118
    %v3134 = vshrl.u32 1326507024, %v3119
    %v3135 = vor.u32 %v3133, %v3134
    %vm3136 = vcmp.lt.s32.totalorder %v3117, 1
    %vm3137 = vcmp.lt.s32.totalorder %v3117, 2
    %vm3138 = vcmp.lt.s32.totalorder %v3117, 3
    %vm3139 = vcmp.lt.s32.totalorder %v3117, 4
    %v3140 = vsel %vm3136, %v3120, %v3123
    %v3141 = vsel %vm3139, %v3129, 2102212464
    %v3142 = vsel %vm3138, %v3126, %v3141
    %v3143 = vsel %vm3137, %v3140, %v3142
    %v3144 = vsel %vm3136, %v3123, %v3126
    %v3145 = vsel %vm3139, %v3132, 920167782
    %v3146 = vsel %vm3138, %v3129, %v3145
    %v3147 = vsel %vm3137, %v3144, %v3146
    %v3148 = vsel %vm3136, %v3126, %v3129
    %v3149 = vsel %vm3139, %v3135, 1326507024
    %v3150 = vsel %vm3138, %v3132, %v3149
    %v3151 = vsel %vm3137, %v3148, %v3150
    %v3152 = vshll.u32 %v3112, 8
    %v3153 = vmul.u32.u64.compose %v3152, %v3151
    %v3154 = vextract.low.u32 %v3153
    %v3155 = vextract.high.u32 %v3153
    %v3156 = vmul.u32.u64.compose %v3152, %v3147
    %v3157 = vextract.low.u32 %v3156
    %v3158 = vextract.high.u32 %v3156
    %v3159 = vmul.u32 %v3152, %v3143
    %v3160 = vadd.s32 %v3155, %v3157
    %vm3161 = vc.u32 %v3155, %v3157
    %v3162 = vadd.s32 %v3158, 1
    %v3163 = vsel %vm3161, %v3162, %v3158
    %v3164 = vadd.s32 %v3159, %v3163
    %v3165 = vadd.s32 %v3164, 536870912
    %v3166 = vshrl.u32 %v3165, 30
    %v3167 = vshll.u32 %v3166, 30
    %v3168 = vsub.s32 %v3164, %v3167
    %vm3169 = vcmp.lt.s32.totalorder %v3168, 0
    %v3170 = vsub.s32 0, %v3168
    %v3171 = vsel %vm3169, %v3170, %v3168
    %v3172 = vclz %v3171
    %v3173 = vsub.s32 %v3172, 2
    %vm3174 = vcmp.gt.s32.totalorder 0, %v3173
    %v3175 = vsel %vm3174, 0, %v3173
    %v3176 = vsub.s32 32, %v3175
    %v3177 = vshll.u32 %v3168, %v3175
    %v3178 = vshrl.u32 %v3160, %v3176
    %v3179 = vor.u32 %v3177, %v3178
    %v3180 = vsub.s32 4294967266, %v3175
    %v3181 = vadd.s32 %v3180, 127
    %v3182 = vshll.u32 %v3181, 23
    %v3183 = vor.u32 4788187, %v3182
    %v3184 = vand.u32 2147483647, %v3183
    %v3186 = vcvt.s32.f32 %v3179
    %v3187 = vmul.f32 %v3186, %v3184
    %v3188 = vxor.u32 %v3187, 2147483648
    %v3189 = vsel %vm3106, %v3188, %v3187
    %v3190 = vsub.s32 4, %v3166
    %v3191 = vsel %vm3106, %v3190, %v3166
    %v3192 = vsel %vm3105, %v2888, %v3189
    %v3193 = vsel %vm3105, 0, %v3191
    %v3194 = vcosq.f32.pop %v3192
    %v3195 = vsinq.f32.pop %v3192
    %vm3196 = vweird.f32 %v2888
    %v3197 = vadd.s32 %v3193, 3
    %v3198 = vand.u32 %v3197, 3
    %vm3199 = vcmp.lt.s32.totalorder %v3198, 2
    %vm3200 = vcmp.eq.s32.totalorder %v3198, 0
    %v3201 = vxor.u32 %v3195, 2147483648
    %v3202 = vsel %vm3200, %v3194, %v3201
    %vm3203 = vcmp.eq.s32.totalorder %v3198, 2
    %v3204 = vxor.u32 %v3194, 2147483648
    %v3205 = vsel %vm3203, %v3204, %v3195
    %v3206 = vsel %vm3199, %v3202, %v3205
    %v3207 = vsel %vm3196, nan, %v3206
    %v3208 = vand.u32 2147483647, %v2889
    %vm3209 = vcmp.le.f32.partialorder %v3208, 0.7853982
    %vm3210 = vcmp.lt.s32.totalorder %v2889, 0
    %v3211 = vand.u32 %v2889, 2139095040
    %v3212 = vshrl.u32 %v3211, 23
    %v3213 = vsub.s32 %v3212, 127
    %v3214 = vand.u32 2147483647, %v2889
    %v3215 = vand.u32 %v3214, 8388607
    %v3216 = vor.u32 %v3215, 8388608
    %v3217 = vsub.s32 0, %v3216
    %v3218 = vadd.s32 %v3213, 1
    %vm3219 = vcmp.gt.s32.totalorder %v3218, 0
    %v3220 = vsel %vm3219, %v3218, 0
    %v3221 = vshrl.u32 %v3220, 5
    %v3222 = vand.u32 %v3220, 31
    %v3223 = vsub.s32 32, %v3222
    %v3224 = vshrl.u32 683565275, %v3223
    %v3225 = vshll.u32 683565275, %v3222
    %v3226 = vshrl.u32 2475754826, %v3223
    %v3227 = vor.u32 %v3225, %v3226
    %v3228 = vshll.u32 2475754826, %v3222
    %v3229 = vshrl.u32 2131351028, %v3223
    %v3230 = vor.u32 %v3228, %v3229
    %v3231 = vshll.u32 2131351028, %v3222
    %v3232 = vshrl.u32 2102212464, %v3223
    %v3233 = vor.u32 %v3231, %v3232
    %v3234 = vshll.u32 2102212464, %v3222
    %v3235 = vshrl.u32 920167782, %v3223
    %v3236 = vor.u32 %v3234, %v3235
    %v3237 = vshll.u32 920167782, %v3222
    %v3238 = vshrl.u32 1326507024, %v3223
    %v3239 = vor.u32 %v3237, %v3238
    %vm3240 = vcmp.lt.s32.totalorder %v3221, 1
    %vm3241 = vcmp.lt.s32.totalorder %v3221, 2
    %vm3242 = vcmp.lt.s32.totalorder %v3221, 3
    %vm3243 = vcmp.lt.s32.totalorder %v3221, 4
    %v3244 = vsel %vm3240, %v3224, %v3227
    %v3245 = vsel %vm3243, %v3233, 2102212464
    %v3246 = vsel %vm3242, %v3230, %v3245
    %v3247 = vsel %vm3241, %v3244, %v3246
    %v3248 = vsel %vm3240, %v3227, %v3230
    %v3249 = vsel %vm3243, %v3236, 920167782
    %v3250 = vsel %vm3242, %v3233, %v3249
    %v3251 = vsel %vm3241, %v3248, %v3250
    %v3252 = vsel %vm3240, %v3230, %v3233
    %v3253 = vsel %vm3243, %v3239, 1326507024
    %v3254 = vsel %vm3242, %v3236, %v3253
    %v3255 = vsel %vm3241, %v3252, %v3254
    %v3256 = vshll.u32 %v3216, 8
    %v3257 = vmul.u32.u64.compose %v3256, %v3255
    %v3258 = vextract.low.u32 %v3257
    %v3259 = vextract.high.u32 %v3257
    %v3260 = vmul.u32.u64.compose %v3256, %v3251
    %v3261 = vextract.low.u32 %v3260
    %v3262 = vextract.high.u32 %v3260
    %v3263 = vmul.u32 %v3256, %v3247
    %v3264 = vadd.s32 %v3259, %v3261
    %vm3265 = vc.u32 %v3259, %v3261
    %v3266 = vadd.s32 %v3262, 1
    %v3267 = vsel %vm3265, %v3266, %v3262
    %v3268 = vadd.s32 %v3263, %v3267
    %v3269 = vadd.s32 %v3268, 536870912
    %v3270 = vshrl.u32 %v3269, 30
    %v3271 = vshll.u32 %v3270, 30
    %v3272 = vsub.s32 %v3268, %v3271
    %vm3273 = vcmp.lt.s32.totalorder %v3272, 0
    %v3274 = vsub.s32 0, %v3272
    %v3275 = vsel %vm3273, %v3274, %v3272
    %v3276 = vclz %v3275
    %v3277 = vsub.s32 %v3276, 2
    %vm3278 = vcmp.gt.s32.totalorder 0, %v3277
    %v3279 = vsel %vm3278, 0, %v3277
    %v3280 = vsub.s32 32, %v3279
    %v3281 = vshll.u32 %v3272, %v3279
    %v3282 = vshrl.u32 %v3264, %v3280
    %v3283 = vor.u32 %v3281, %v3282
    %v3284 = vsub.s32 4294967266, %v3279
    %v3285 = vadd.s32 %v3284, 127
    %v3286 = vshll.u32 %v3285, 23
    %v3287 = vor.u32 4788187, %v3286
    %v3288 = vand.u32 2147483647, %v3287
    %v3290 = vcvt.s32.f32 %v3283
    %v3291 = vmul.f32 %v3290, %v3288
    %v3292 = vxor.u32 %v3291, 2147483648
    %v3293 = vsel %vm3210, %v3292, %v3291
    %v3294 = vsub.s32 4, %v3270
    %v3295 = vsel %vm3210, %v3294, %v3270
    %v3296 = vsel %vm3209, %v2889, %v3293
    %v3297 = vsel %vm3209, 0, %v3295
    %v3298 = vcosq.f32.pop %v3296
    %v3299 = vsinq.f32.pop %v3296
    %vm3300 = vweird.f32 %v2889
    %v3301 = vadd.s32 %v3297, 3
    %v3302 = vand.u32 %v3301, 3
    %vm3303 = vcmp.lt.s32.totalorder %v3302, 2
    %vm3304 = vcmp.eq.s32.totalorder %v3302, 0
    %v3305 = vxor.u32 %v3299, 2147483648
    %v3306 = vsel %vm3304, %v3298, %v3305
    %vm3307 = vcmp.eq.s32.totalorder %v3302, 2
    %v3308 = vxor.u32 %v3298, 2147483648
    %v3309 = vsel %vm3307, %v3308, %v3299
    %v3310 = vsel %vm3303, %v3306, %v3309
    %v3311 = vsel %vm3300, nan, %v3310
    %v3312 = vand.u32 2147483647, %v2890
    %vm3313 = vcmp.le.f32.partialorder %v3312, 0.7853982
    %vm3314 = vcmp.lt.s32.totalorder %v2890, 0
    %v3315 = vand.u32 %v2890, 2139095040
    %v3316 = vshrl.u32 %v3315, 23
    %v3317 = vsub.s32 %v3316, 127
    %v3318 = vand.u32 2147483647, %v2890
    %v3319 = vand.u32 %v3318, 8388607
    %v3320 = vor.u32 %v3319, 8388608
    %v3321 = vsub.s32 0, %v3320
    %v3322 = vadd.s32 %v3317, 1
    %vm3323 = vcmp.gt.s32.totalorder %v3322, 0
    %v3324 = vsel %vm3323, %v3322, 0
    %v3325 = vshrl.u32 %v3324, 5
    %v3326 = vand.u32 %v3324, 31
    %v3327 = vsub.s32 32, %v3326
    %v3328 = vshrl.u32 683565275, %v3327
    %v3329 = vshll.u32 683565275, %v3326
    %v3330 = vshrl.u32 2475754826, %v3327
    %v3331 = vor.u32 %v3329, %v3330
    %v3332 = vshll.u32 2475754826, %v3326
    %v3333 = vshrl.u32 2131351028, %v3327
    %v3334 = vor.u32 %v3332, %v3333
    %v3335 = vshll.u32 2131351028, %v3326
    %v3336 = vshrl.u32 2102212464, %v3327
    %v3337 = vor.u32 %v3335, %v3336
    %v3338 = vshll.u32 2102212464, %v3326
    %v3339 = vshrl.u32 920167782, %v3327
    %v3340 = vor.u32 %v3338, %v3339
    %v3341 = vshll.u32 920167782, %v3326
    %v3342 = vshrl.u32 1326507024, %v3327
    %v3343 = vor.u32 %v3341, %v3342
    %vm3344 = vcmp.lt.s32.totalorder %v3325, 1
    %vm3345 = vcmp.lt.s32.totalorder %v3325, 2
    %vm3346 = vcmp.lt.s32.totalorder %v3325, 3
    %vm3347 = vcmp.lt.s32.totalorder %v3325, 4
    %v3348 = vsel %vm3344, %v3328, %v3331
    %v3349 = vsel %vm3347, %v3337, 2102212464
    %v3350 = vsel %vm3346, %v3334, %v3349
    %v3351 = vsel %vm3345, %v3348, %v3350
    %v3352 = vsel %vm3344, %v3331, %v3334
    %v3353 = vsel %vm3347, %v3340, 920167782
    %v3354 = vsel %vm3346, %v3337, %v3353
    %v3355 = vsel %vm3345, %v3352, %v3354
    %v3356 = vsel %vm3344, %v3334, %v3337
    %v3357 = vsel %vm3347, %v3343, 1326507024
    %v3358 = vsel %vm3346, %v3340, %v3357
    %v3359 = vsel %vm3345, %v3356, %v3358
    %v3360 = vshll.u32 %v3320, 8
    %v3361 = vmul.u32.u64.compose %v3360, %v3359
    %v3362 = vextract.low.u32 %v3361
    %v3363 = vextract.high.u32 %v3361
    %v3364 = vmul.u32.u64.compose %v3360, %v3355
    %v3365 = vextract.low.u32 %v3364
    %v3366 = vextract.high.u32 %v3364
    %v3367 = vmul.u32 %v3360, %v3351
    %v3368 = vadd.s32 %v3363, %v3365
    %vm3369 = vc.u32 %v3363, %v3365
    %v3370 = vadd.s32 %v3366, 1
    %v3371 = vsel %vm3369, %v3370, %v3366
    %v3372 = vadd.s32 %v3367, %v3371
    %v3373 = vadd.s32 %v3372, 536870912
    %v3374 = vshrl.u32 %v3373, 30
    %v3375 = vshll.u32 %v3374, 30
    %v3376 = vsub.s32 %v3372, %v3375
    %vm3377 = vcmp.lt.s32.totalorder %v3376, 0
    %v3378 = vsub.s32 0, %v3376
    %v3379 = vsel %vm3377, %v3378, %v3376
    %v3380 = vclz %v3379
    %v3381 = vsub.s32 %v3380, 2
    %vm3382 = vcmp.gt.s32.totalorder 0, %v3381
    %v3383 = vsel %vm3382, 0, %v3381
    %v3384 = vsub.s32 32, %v3383
    %v3385 = vshll.u32 %v3376, %v3383
    %v3386 = vshrl.u32 %v3368, %v3384
    %v3387 = vor.u32 %v3385, %v3386
    %v3388 = vsub.s32 4294967266, %v3383
    %v3389 = vadd.s32 %v3388, 127
    %v3390 = vshll.u32 %v3389, 23
    %v3391 = vor.u32 4788187, %v3390
    %v3392 = vand.u32 2147483647, %v3391
    %v3394 = vcvt.s32.f32 %v3387
    %v3395 = vmul.f32 %v3394, %v3392
    %v3396 = vxor.u32 %v3395, 2147483648
    %v3397 = vsel %vm3314, %v3396, %v3395
    %v3398 = vsub.s32 4, %v3374
    %v3399 = vsel %vm3314, %v3398, %v3374
    %v3400 = vsel %vm3313, %v2890, %v3397
    %v3401 = vsel %vm3313, 0, %v3399
    %v3402 = vcosq.f32.pop %v3400
    %v3403 = vsinq.f32.pop %v3400
    %vm3404 = vweird.f32 %v2890
    %v3405 = vadd.s32 %v3401, 3
    %v3406 = vand.u32 %v3405, 3
    %vm3407 = vcmp.lt.s32.totalorder %v3406, 2
    %vm3408 = vcmp.eq.s32.totalorder %v3406, 0
    %v3409 = vxor.u32 %v3403, 2147483648
    %v3410 = vsel %vm3408, %v3402, %v3409
    %vm3411 = vcmp.eq.s32.totalorder %v3406, 2
    %v3412 = vxor.u32 %v3402, 2147483648
    %v3413 = vsel %vm3411, %v3412, %v3403
    %v3414 = vsel %vm3407, %v3410, %v3413
    %v3415 = vsel %vm3404, nan, %v3414
    %v3416 = vand.u32 2147483647, %v2891
    %vm3417 = vcmp.le.f32.partialorder %v3416, 0.7853982
    %vm3418 = vcmp.lt.s32.totalorder %v2891, 0
    %v3419 = vand.u32 %v2891, 2139095040
    %v3420 = vshrl.u32 %v3419, 23
    %v3421 = vsub.s32 %v3420, 127
    %v3422 = vand.u32 2147483647, %v2891
    %v3423 = vand.u32 %v3422, 8388607
    %v3424 = vor.u32 %v3423, 8388608
    %v3425 = vsub.s32 0, %v3424
    %v3426 = vadd.s32 %v3421, 1
    %vm3427 = vcmp.gt.s32.totalorder %v3426, 0
    %v3428 = vsel %vm3427, %v3426, 0
    %v3429 = vshrl.u32 %v3428, 5
    %v3430 = vand.u32 %v3428, 31
    %v3431 = vsub.s32 32, %v3430
    %v3432 = vshrl.u32 683565275, %v3431
    %v3433 = vshll.u32 683565275, %v3430
    %v3434 = vshrl.u32 2475754826, %v3431
    %v3435 = vor.u32 %v3433, %v3434
    %v3436 = vshll.u32 2475754826, %v3430
    %v3437 = vshrl.u32 2131351028, %v3431
    %v3438 = vor.u32 %v3436, %v3437
    %v3439 = vshll.u32 2131351028, %v3430
    %v3440 = vshrl.u32 2102212464, %v3431
    %v3441 = vor.u32 %v3439, %v3440
    %v3442 = vshll.u32 2102212464, %v3430
    %v3443 = vshrl.u32 920167782, %v3431
    %v3444 = vor.u32 %v3442, %v3443
    %v3445 = vshll.u32 920167782, %v3430
    %v3446 = vshrl.u32 1326507024, %v3431
    %v3447 = vor.u32 %v3445, %v3446
    %vm3448 = vcmp.lt.s32.totalorder %v3429, 1
    %vm3449 = vcmp.lt.s32.totalorder %v3429, 2
    %vm3450 = vcmp.lt.s32.totalorder %v3429, 3
    %vm3451 = vcmp.lt.s32.totalorder %v3429, 4
    %v3452 = vsel %vm3448, %v3432, %v3435
    %v3453 = vsel %vm3451, %v3441, 2102212464
    %v3454 = vsel %vm3450, %v3438, %v3453
    %v3455 = vsel %vm3449, %v3452, %v3454
    %v3456 = vsel %vm3448, %v3435, %v3438
    %v3457 = vsel %vm3451, %v3444, 920167782
    %v3458 = vsel %vm3450, %v3441, %v3457
    %v3459 = vsel %vm3449, %v3456, %v3458
    %v3460 = vsel %vm3448, %v3438, %v3441
    %v3461 = vsel %vm3451, %v3447, 1326507024
    %v3462 = vsel %vm3450, %v3444, %v3461
    %v3463 = vsel %vm3449, %v3460, %v3462
    %v3464 = vshll.u32 %v3424, 8
    %v3465 = vmul.u32.u64.compose %v3464, %v3463
    %v3466 = vextract.low.u32 %v3465
    %v3467 = vextract.high.u32 %v3465
    %v3468 = vmul.u32.u64.compose %v3464, %v3459
    %v3469 = vextract.low.u32 %v3468
    %v3470 = vextract.high.u32 %v3468
    %v3471 = vmul.u32 %v3464, %v3455
    %v3472 = vadd.s32 %v3467, %v3469
    %vm3473 = vc.u32 %v3467, %v3469
    %v3474 = vadd.s32 %v3470, 1
    %v3475 = vsel %vm3473, %v3474, %v3470
    %v3476 = vadd.s32 %v3471, %v3475
    %v3477 = vadd.s32 %v3476, 536870912
    %v3478 = vshrl.u32 %v3477, 30
    %v3479 = vshll.u32 %v3478, 30
    %v3480 = vsub.s32 %v3476, %v3479
    %vm3481 = vcmp.lt.s32.totalorder %v3480, 0
    %v3482 = vsub.s32 0, %v3480
    %v3483 = vsel %vm3481, %v3482, %v3480
    %v3484 = vclz %v3483
    %v3485 = vsub.s32 %v3484, 2
    %vm3486 = vcmp.gt.s32.totalorder 0, %v3485
    %v3487 = vsel %vm3486, 0, %v3485
    %v3488 = vsub.s32 32, %v3487
    %v3489 = vshll.u32 %v3480, %v3487
    %v3490 = vshrl.u32 %v3472, %v3488
    %v3491 = vor.u32 %v3489, %v3490
    %v3492 = vsub.s32 4294967266, %v3487
    %v3493 = vadd.s32 %v3492, 127
    %v3494 = vshll.u32 %v3493, 23
    %v3495 = vor.u32 4788187, %v3494
    %v3496 = vand.u32 2147483647, %v3495
    %v3498 = vcvt.s32.f32 %v3491
    %v3499 = vmul.f32 %v3498, %v3496
    %v3500 = vxor.u32 %v3499, 2147483648
    %v3501 = vsel %vm3418, %v3500, %v3499
    %v3502 = vsub.s32 4, %v3478
    %v3503 = vsel %vm3418, %v3502, %v3478
    %v3504 = vsel %vm3417, %v2891, %v3501
    %v3505 = vsel %vm3417, 0, %v3503
    %v3506 = vcosq.f32.pop %v3504
    %v3507 = vsinq.f32.pop %v3504
    %vm3508 = vweird.f32 %v2891
    %v3509 = vadd.s32 %v3505, 3
    %v3510 = vand.u32 %v3509, 3
    %vm3511 = vcmp.lt.s32.totalorder %v3510, 2
    %vm3512 = vcmp.eq.s32.totalorder %v3510, 0
    %v3513 = vxor.u32 %v3507, 2147483648
    %v3514 = vsel %vm3512, %v3506, %v3513
    %vm3515 = vcmp.eq.s32.totalorder %v3510, 2
    %v3516 = vxor.u32 %v3506, 2147483648
    %v3517 = vsel %vm3515, %v3516, %v3507
    %v3518 = vsel %vm3511, %v3514, %v3517
    %v3519 = vsel %vm3508, nan, %v3518
    %v3520 = vand.u32 2147483647, %v2892
    %vm3521 = vcmp.le.f32.partialorder %v3520, 0.7853982
    %vm3522 = vcmp.lt.s32.totalorder %v2892, 0
    %v3523 = vand.u32 %v2892, 2139095040
    %v3524 = vshrl.u32 %v3523, 23
    %v3525 = vsub.s32 %v3524, 127
    %v3526 = vand.u32 2147483647, %v2892
    %v3527 = vand.u32 %v3526, 8388607
    %v3528 = vor.u32 %v3527, 8388608
    %v3529 = vsub.s32 0, %v3528
    %v3530 = vadd.s32 %v3525, 1
    %vm3531 = vcmp.gt.s32.totalorder %v3530, 0
    %v3532 = vsel %vm3531, %v3530, 0
    %v3533 = vshrl.u32 %v3532, 5
    %v3534 = vand.u32 %v3532, 31
    %v3535 = vsub.s32 32, %v3534
    %v3536 = vshrl.u32 683565275, %v3535
    %v3537 = vshll.u32 683565275, %v3534
    %v3538 = vshrl.u32 2475754826, %v3535
    %v3539 = vor.u32 %v3537, %v3538
    %v3540 = vshll.u32 2475754826, %v3534
    %v3541 = vshrl.u32 2131351028, %v3535
    %v3542 = vor.u32 %v3540, %v3541
    %v3543 = vshll.u32 2131351028, %v3534
    %v3544 = vshrl.u32 2102212464, %v3535
    %v3545 = vor.u32 %v3543, %v3544
    %v3546 = vshll.u32 2102212464, %v3534
    %v3547 = vshrl.u32 920167782, %v3535
    %v3548 = vor.u32 %v3546, %v3547
    %v3549 = vshll.u32 920167782, %v3534
    %v3550 = vshrl.u32 1326507024, %v3535
    %v3551 = vor.u32 %v3549, %v3550
    %vm3552 = vcmp.lt.s32.totalorder %v3533, 1
    %vm3553 = vcmp.lt.s32.totalorder %v3533, 2
    %vm3554 = vcmp.lt.s32.totalorder %v3533, 3
    %vm3555 = vcmp.lt.s32.totalorder %v3533, 4
    %v3556 = vsel %vm3552, %v3536, %v3539
    %v3557 = vsel %vm3555, %v3545, 2102212464
    %v3558 = vsel %vm3554, %v3542, %v3557
    %v3559 = vsel %vm3553, %v3556, %v3558
    %v3560 = vsel %vm3552, %v3539, %v3542
    %v3561 = vsel %vm3555, %v3548, 920167782
    %v3562 = vsel %vm3554, %v3545, %v3561
    %v3563 = vsel %vm3553, %v3560, %v3562
    %v3564 = vsel %vm3552, %v3542, %v3545
    %v3565 = vsel %vm3555, %v3551, 1326507024
    %v3566 = vsel %vm3554, %v3548, %v3565
    %v3567 = vsel %vm3553, %v3564, %v3566
    %v3568 = vshll.u32 %v3528, 8
    %v3569 = vmul.u32.u64.compose %v3568, %v3567
    %v3570 = vextract.low.u32 %v3569
    %v3571 = vextract.high.u32 %v3569
    %v3572 = vmul.u32.u64.compose %v3568, %v3563
    %v3573 = vextract.low.u32 %v3572
    %v3574 = vextract.high.u32 %v3572
    %v3575 = vmul.u32 %v3568, %v3559
    %v3576 = vadd.s32 %v3571, %v3573
    %vm3577 = vc.u32 %v3571, %v3573
    %v3578 = vadd.s32 %v3574, 1
    %v3579 = vsel %vm3577, %v3578, %v3574
    %v3580 = vadd.s32 %v3575, %v3579
    %v3581 = vadd.s32 %v3580, 536870912
    %v3582 = vshrl.u32 %v3581, 30
    %v3583 = vshll.u32 %v3582, 30
    %v3584 = vsub.s32 %v3580, %v3583
    %vm3585 = vcmp.lt.s32.totalorder %v3584, 0
    %v3586 = vsub.s32 0, %v3584
    %v3587 = vsel %vm3585, %v3586, %v3584
    %v3588 = vclz %v3587
    %v3589 = vsub.s32 %v3588, 2
    %vm3590 = vcmp.gt.s32.totalorder 0, %v3589
    %v3591 = vsel %vm3590, 0, %v3589
    %v3592 = vsub.s32 32, %v3591
    %v3593 = vshll.u32 %v3584, %v3591
    %v3594 = vshrl.u32 %v3576, %v3592
    %v3595 = vor.u32 %v3593, %v3594
    %v3596 = vsub.s32 4294967266, %v3591
    %v3597 = vadd.s32 %v3596, 127
    %v3598 = vshll.u32 %v3597, 23
    %v3599 = vor.u32 4788187, %v3598
    %v3600 = vand.u32 2147483647, %v3599
    %v3602 = vcvt.s32.f32 %v3595
    %v3603 = vmul.f32 %v3602, %v3600
    %v3604 = vxor.u32 %v3603, 2147483648
    %v3605 = vsel %vm3522, %v3604, %v3603
    %v3606 = vsub.s32 4, %v3582
    %v3607 = vsel %vm3522, %v3606, %v3582
    %v3608 = vsel %vm3521, %v2892, %v3605
    %v3609 = vsel %vm3521, 0, %v3607
    %v3610 = vcosq.f32.pop %v3608
    %v3611 = vsinq.f32.pop %v3608
    %vm3612 = vweird.f32 %v2892
    %v3613 = vadd.s32 %v3609, 3
    %v3614 = vand.u32 %v3613, 3
    %vm3615 = vcmp.lt.s32.totalorder %v3614, 2
    %vm3616 = vcmp.eq.s32.totalorder %v3614, 0
    %v3617 = vxor.u32 %v3611, 2147483648
    %v3618 = vsel %vm3616, %v3610, %v3617
    %vm3619 = vcmp.eq.s32.totalorder %v3614, 2
    %v3620 = vxor.u32 %v3610, 2147483648
    %v3621 = vsel %vm3619, %v3620, %v3611
    %v3622 = vsel %vm3615, %v3618, %v3621
    %v3623 = vsel %vm3612, nan, %v3622
    %v3624 = vand.u32 2147483647, %v2893
    %vm3625 = vcmp.le.f32.partialorder %v3624, 0.7853982
    %vm3626 = vcmp.lt.s32.totalorder %v2893, 0
    %v3627 = vand.u32 %v2893, 2139095040
    %v3628 = vshrl.u32 %v3627, 23
    %v3629 = vsub.s32 %v3628, 127
    %v3630 = vand.u32 2147483647, %v2893
    %v3631 = vand.u32 %v3630, 8388607
    %v3632 = vor.u32 %v3631, 8388608
    %v3633 = vsub.s32 0, %v3632
    %v3634 = vadd.s32 %v3629, 1
    %vm3635 = vcmp.gt.s32.totalorder %v3634, 0
    %v3636 = vsel %vm3635, %v3634, 0
    %v3637 = vshrl.u32 %v3636, 5
    %v3638 = vand.u32 %v3636, 31
    %v3639 = vsub.s32 32, %v3638
    %v3640 = vshrl.u32 683565275, %v3639
    %v3641 = vshll.u32 683565275, %v3638
    %v3642 = vshrl.u32 2475754826, %v3639
    %v3643 = vor.u32 %v3641, %v3642
    %v3644 = vshll.u32 2475754826, %v3638
    %v3645 = vshrl.u32 2131351028, %v3639
    %v3646 = vor.u32 %v3644, %v3645
    %v3647 = vshll.u32 2131351028, %v3638
    %v3648 = vshrl.u32 2102212464, %v3639
    %v3649 = vor.u32 %v3647, %v3648
    %v3650 = vshll.u32 2102212464, %v3638
    %v3651 = vshrl.u32 920167782, %v3639
    %v3652 = vor.u32 %v3650, %v3651
    %v3653 = vshll.u32 920167782, %v3638
    %v3654 = vshrl.u32 1326507024, %v3639
    %v3655 = vor.u32 %v3653, %v3654
    %vm3656 = vcmp.lt.s32.totalorder %v3637, 1
    %vm3657 = vcmp.lt.s32.totalorder %v3637, 2
    %vm3658 = vcmp.lt.s32.totalorder %v3637, 3
    %vm3659 = vcmp.lt.s32.totalorder %v3637, 4
    %v3660 = vsel %vm3656, %v3640, %v3643
    %v3661 = vsel %vm3659, %v3649, 2102212464
    %v3662 = vsel %vm3658, %v3646, %v3661
    %v3663 = vsel %vm3657, %v3660, %v3662
    %v3664 = vsel %vm3656, %v3643, %v3646
    %v3665 = vsel %vm3659, %v3652, 920167782
    %v3666 = vsel %vm3658, %v3649, %v3665
    %v3667 = vsel %vm3657, %v3664, %v3666
    %v3668 = vsel %vm3656, %v3646, %v3649
    %v3669 = vsel %vm3659, %v3655, 1326507024
    %v3670 = vsel %vm3658, %v3652, %v3669
    %v3671 = vsel %vm3657, %v3668, %v3670
    %v3672 = vshll.u32 %v3632, 8
    %v3673 = vmul.u32.u64.compose %v3672, %v3671
    %v3674 = vextract.low.u32 %v3673
    %v3675 = vextract.high.u32 %v3673
    %v3676 = vmul.u32.u64.compose %v3672, %v3667
    %v3677 = vextract.low.u32 %v3676
    %v3678 = vextract.high.u32 %v3676
    %v3679 = vmul.u32 %v3672, %v3663
    %v3680 = vadd.s32 %v3675, %v3677
    %vm3681 = vc.u32 %v3675, %v3677
    %v3682 = vadd.s32 %v3678, 1
    %v3683 = vsel %vm3681, %v3682, %v3678
    %v3684 = vadd.s32 %v3679, %v3683
    %v3685 = vadd.s32 %v3684, 536870912
    %v3686 = vshrl.u32 %v3685, 30
    %v3687 = vshll.u32 %v3686, 30
    %v3688 = vsub.s32 %v3684, %v3687
    %vm3689 = vcmp.lt.s32.totalorder %v3688, 0
    %v3690 = vsub.s32 0, %v3688
    %v3691 = vsel %vm3689, %v3690, %v3688
    %v3692 = vclz %v3691
    %v3693 = vsub.s32 %v3692, 2
    %vm3694 = vcmp.gt.s32.totalorder 0, %v3693
    %v3695 = vsel %vm3694, 0, %v3693
    %v3696 = vsub.s32 32, %v3695
    %v3697 = vshll.u32 %v3688, %v3695
    %v3698 = vshrl.u32 %v3680, %v3696
    %v3699 = vor.u32 %v3697, %v3698
    %v3700 = vsub.s32 4294967266, %v3695
    %v3701 = vadd.s32 %v3700, 127
    %v3702 = vshll.u32 %v3701, 23
    %v3703 = vor.u32 4788187, %v3702
    %v3704 = vand.u32 2147483647, %v3703
    %v3706 = vcvt.s32.f32 %v3699
    %v3707 = vmul.f32 %v3706, %v3704
    %v3708 = vxor.u32 %v3707, 2147483648
    %v3709 = vsel %vm3626, %v3708, %v3707
    %v3710 = vsub.s32 4, %v3686
    %v3711 = vsel %vm3626, %v3710, %v3686
    %v3712 = vsel %vm3625, %v2893, %v3709
    %v3713 = vsel %vm3625, 0, %v3711
    %v3714 = vcosq.f32.pop %v3712
    %v3715 = vsinq.f32.pop %v3712
    %vm3716 = vweird.f32 %v2893
    %v3717 = vadd.s32 %v3713, 3
    %v3718 = vand.u32 %v3717, 3
    %vm3719 = vcmp.lt.s32.totalorder %v3718, 2
    %vm3720 = vcmp.eq.s32.totalorder %v3718, 0
    %v3721 = vxor.u32 %v3715, 2147483648
    %v3722 = vsel %vm3720, %v3714, %v3721
    %vm3723 = vcmp.eq.s32.totalorder %v3718, 2
    %v3724 = vxor.u32 %v3714, 2147483648
    %v3725 = vsel %vm3723, %v3724, %v3715
    %v3726 = vsel %vm3719, %v3722, %v3725
    %v3727 = vsel %vm3716, nan, %v3726
    %v3728 = vand.u32 2147483647, %v2894
    %vm3729 = vcmp.le.f32.partialorder %v3728, 0.7853982
    %vm3730 = vcmp.lt.s32.totalorder %v2894, 0
    %v3731 = vand.u32 %v2894, 2139095040
    %v3732 = vshrl.u32 %v3731, 23
    %v3733 = vsub.s32 %v3732, 127
    %v3734 = vand.u32 2147483647, %v2894
    %v3735 = vand.u32 %v3734, 8388607
    %v3736 = vor.u32 %v3735, 8388608
    %v3737 = vsub.s32 0, %v3736
    %v3738 = vadd.s32 %v3733, 1
    %vm3739 = vcmp.gt.s32.totalorder %v3738, 0
    %v3740 = vsel %vm3739, %v3738, 0
    %v3741 = vshrl.u32 %v3740, 5
    %v3742 = vand.u32 %v3740, 31
    %v3743 = vsub.s32 32, %v3742
    %v3744 = vshrl.u32 683565275, %v3743
    %v3745 = vshll.u32 683565275, %v3742
    %v3746 = vshrl.u32 2475754826, %v3743
    %v3747 = vor.u32 %v3745, %v3746
    %v3748 = vshll.u32 2475754826, %v3742
    %v3749 = vshrl.u32 2131351028, %v3743
    %v3750 = vor.u32 %v3748, %v3749
    %v3751 = vshll.u32 2131351028, %v3742
    %v3752 = vshrl.u32 2102212464, %v3743
    %v3753 = vor.u32 %v3751, %v3752
    %v3754 = vshll.u32 2102212464, %v3742
    %v3755 = vshrl.u32 920167782, %v3743
    %v3756 = vor.u32 %v3754, %v3755
    %v3757 = vshll.u32 920167782, %v3742
    %v3758 = vshrl.u32 1326507024, %v3743
    %v3759 = vor.u32 %v3757, %v3758
    %vm3760 = vcmp.lt.s32.totalorder %v3741, 1
    %vm3761 = vcmp.lt.s32.totalorder %v3741, 2
    %vm3762 = vcmp.lt.s32.totalorder %v3741, 3
    %vm3763 = vcmp.lt.s32.totalorder %v3741, 4
    %v3764 = vsel %vm3760, %v3744, %v3747
    %v3765 = vsel %vm3763, %v3753, 2102212464
    %v3766 = vsel %vm3762, %v3750, %v3765
    %v3767 = vsel %vm3761, %v3764, %v3766
    %v3768 = vsel %vm3760, %v3747, %v3750
    %v3769 = vsel %vm3763, %v3756, 920167782
    %v3770 = vsel %vm3762, %v3753, %v3769
    %v3771 = vsel %vm3761, %v3768, %v3770
    %v3772 = vsel %vm3760, %v3750, %v3753
    %v3773 = vsel %vm3763, %v3759, 1326507024
    %v3774 = vsel %vm3762, %v3756, %v3773
    %v3775 = vsel %vm3761, %v3772, %v3774
    %v3776 = vshll.u32 %v3736, 8
    %v3777 = vmul.u32.u64.compose %v3776, %v3775
    %v3778 = vextract.low.u32 %v3777
    %v3779 = vextract.high.u32 %v3777
    %v3780 = vmul.u32.u64.compose %v3776, %v3771
    %v3781 = vextract.low.u32 %v3780
    %v3782 = vextract.high.u32 %v3780
    %v3783 = vmul.u32 %v3776, %v3767
    %v3784 = vadd.s32 %v3779, %v3781
    %vm3785 = vc.u32 %v3779, %v3781
    %v3786 = vadd.s32 %v3782, 1
    %v3787 = vsel %vm3785, %v3786, %v3782
    %v3788 = vadd.s32 %v3783, %v3787
    %v3789 = vadd.s32 %v3788, 536870912
    %v3790 = vshrl.u32 %v3789, 30
    %v3791 = vshll.u32 %v3790, 30
    %v3792 = vsub.s32 %v3788, %v3791
    %vm3793 = vcmp.lt.s32.totalorder %v3792, 0
    %v3794 = vsub.s32 0, %v3792
    %v3795 = vsel %vm3793, %v3794, %v3792
    %v3796 = vclz %v3795
    %v3797 = vsub.s32 %v3796, 2
    %vm3798 = vcmp.gt.s32.totalorder 0, %v3797
    %v3799 = vsel %vm3798, 0, %v3797
    %v3800 = vsub.s32 32, %v3799
    %v3801 = vshll.u32 %v3792, %v3799
    %v3802 = vshrl.u32 %v3784, %v3800
    %v3803 = vor.u32 %v3801, %v3802
    %v3804 = vsub.s32 4294967266, %v3799
    %v3805 = vadd.s32 %v3804, 127
    %v3806 = vshll.u32 %v3805, 23
    %v3807 = vor.u32 4788187, %v3806
    %v3808 = vand.u32 2147483647, %v3807
    %v3810 = vcvt.s32.f32 %v3803
    %v3811 = vmul.f32 %v3810, %v3808
    %v3812 = vxor.u32 %v3811, 2147483648
    %v3813 = vsel %vm3730, %v3812, %v3811
    %v3814 = vsub.s32 4, %v3790
    %v3815 = vsel %vm3730, %v3814, %v3790
    %v3816 = vsel %vm3729, %v2894, %v3813
    %v3817 = vsel %vm3729, 0, %v3815
    %v3818 = vcosq.f32.pop %v3816
    %v3819 = vsinq.f32.pop %v3816
    %vm3820 = vweird.f32 %v2894
    %v3821 = vadd.s32 %v3817, 3
    %v3822 = vand.u32 %v3821, 3
    %vm3823 = vcmp.lt.s32.totalorder %v3822, 2
    %vm3824 = vcmp.eq.s32.totalorder %v3822, 0
    %v3825 = vxor.u32 %v3819, 2147483648
    %v3826 = vsel %vm3824, %v3818, %v3825
    %vm3827 = vcmp.eq.s32.totalorder %v3822, 2
    %v3828 = vxor.u32 %v3818, 2147483648
    %v3829 = vsel %vm3827, %v3828, %v3819
    %v3830 = vsel %vm3823, %v3826, %v3829
    %v3831 = vsel %vm3820, nan, %v3830
    %v3832 = vand.u32 2147483647, %v2895
    %vm3833 = vcmp.le.f32.partialorder %v3832, 0.7853982
    %vm3834 = vcmp.lt.s32.totalorder %v2895, 0
    %v3835 = vand.u32 %v2895, 2139095040
    %v3836 = vshrl.u32 %v3835, 23
    %v3837 = vsub.s32 %v3836, 127
    %v3838 = vand.u32 2147483647, %v2895
    %v3839 = vand.u32 %v3838, 8388607
    %v3840 = vor.u32 %v3839, 8388608
    %v3841 = vsub.s32 0, %v3840
    %v3842 = vadd.s32 %v3837, 1
    %vm3843 = vcmp.gt.s32.totalorder %v3842, 0
    %v3844 = vsel %vm3843, %v3842, 0
    %v3845 = vshrl.u32 %v3844, 5
    %v3846 = vand.u32 %v3844, 31
    %v3847 = vsub.s32 32, %v3846
    %v3848 = vshrl.u32 683565275, %v3847
    %v3849 = vshll.u32 683565275, %v3846
    %v3850 = vshrl.u32 2475754826, %v3847
    %v3851 = vor.u32 %v3849, %v3850
    %v3852 = vshll.u32 2475754826, %v3846
    %v3853 = vshrl.u32 2131351028, %v3847
    %v3854 = vor.u32 %v3852, %v3853
    %v3855 = vshll.u32 2131351028, %v3846
    %v3856 = vshrl.u32 2102212464, %v3847
    %v3857 = vor.u32 %v3855, %v3856
    %v3858 = vshll.u32 2102212464, %v3846
    %v3859 = vshrl.u32 920167782, %v3847
    %v3860 = vor.u32 %v3858, %v3859
    %v3861 = vshll.u32 920167782, %v3846
    %v3862 = vshrl.u32 1326507024, %v3847
    %v3863 = vor.u32 %v3861, %v3862
    %vm3864 = vcmp.lt.s32.totalorder %v3845, 1
    %vm3865 = vcmp.lt.s32.totalorder %v3845, 2
    %vm3866 = vcmp.lt.s32.totalorder %v3845, 3
    %vm3867 = vcmp.lt.s32.totalorder %v3845, 4
    %v3868 = vsel %vm3864, %v3848, %v3851
    %v3869 = vsel %vm3867, %v3857, 2102212464
    %v3870 = vsel %vm3866, %v3854, %v3869
    %v3871 = vsel %vm3865, %v3868, %v3870
    %v3872 = vsel %vm3864, %v3851, %v3854
    %v3873 = vsel %vm3867, %v3860, 920167782
    %v3874 = vsel %vm3866, %v3857, %v3873
    %v3875 = vsel %vm3865, %v3872, %v3874
    %v3876 = vsel %vm3864, %v3854, %v3857
    %v3877 = vsel %vm3867, %v3863, 1326507024
    %v3878 = vsel %vm3866, %v3860, %v3877
    %v3879 = vsel %vm3865, %v3876, %v3878
    %v3880 = vshll.u32 %v3840, 8
    %v3881 = vmul.u32.u64.compose %v3880, %v3879
    %v3882 = vextract.low.u32 %v3881
    %v3883 = vextract.high.u32 %v3881
    %v3884 = vmul.u32.u64.compose %v3880, %v3875
    %v3885 = vextract.low.u32 %v3884
    %v3886 = vextract.high.u32 %v3884
    %v3887 = vmul.u32 %v3880, %v3871
    %v3888 = vadd.s32 %v3883, %v3885
    %vm3889 = vc.u32 %v3883, %v3885
    %v3890 = vadd.s32 %v3886, 1
    %v3891 = vsel %vm3889, %v3890, %v3886
    %v3892 = vadd.s32 %v3887, %v3891
    %v3893 = vadd.s32 %v3892, 536870912
    %v3894 = vshrl.u32 %v3893, 30
    %v3895 = vshll.u32 %v3894, 30
    %v3896 = vsub.s32 %v3892, %v3895
    %vm3897 = vcmp.lt.s32.totalorder %v3896, 0
    %v3898 = vsub.s32 0, %v3896
    %v3899 = vsel %vm3897, %v3898, %v3896
    %v3900 = vclz %v3899
    %v3901 = vsub.s32 %v3900, 2
    %vm3902 = vcmp.gt.s32.totalorder 0, %v3901
    %v3903 = vsel %vm3902, 0, %v3901
    %v3904 = vsub.s32 32, %v3903
    %v3905 = vshll.u32 %v3896, %v3903
    %v3906 = vshrl.u32 %v3888, %v3904
    %v3907 = vor.u32 %v3905, %v3906
    %v3908 = vsub.s32 4294967266, %v3903
    %v3909 = vadd.s32 %v3908, 127
    %v3910 = vshll.u32 %v3909, 23
    %v3911 = vor.u32 4788187, %v3910
    %v3912 = vand.u32 2147483647, %v3911
    %v3914 = vcvt.s32.f32 %v3907
    %v3915 = vmul.f32 %v3914, %v3912
    %v3916 = vxor.u32 %v3915, 2147483648
    %v3917 = vsel %vm3834, %v3916, %v3915
    %v3918 = vsub.s32 4, %v3894
    %v3919 = vsel %vm3834, %v3918, %v3894
    %v3920 = vsel %vm3833, %v2895, %v3917
    %v3921 = vsel %vm3833, 0, %v3919
    %v3922 = vcosq.f32.pop %v3920
    %v3923 = vsinq.f32.pop %v3920
    %vm3924 = vweird.f32 %v2895
    %v3925 = vadd.s32 %v3921, 3
    %v3926 = vand.u32 %v3925, 3
    %vm3927 = vcmp.lt.s32.totalorder %v3926, 2
    %vm3928 = vcmp.eq.s32.totalorder %v3926, 0
    %v3929 = vxor.u32 %v3923, 2147483648
    %v3930 = vsel %vm3928, %v3922, %v3929
    %vm3931 = vcmp.eq.s32.totalorder %v3926, 2
    %v3932 = vxor.u32 %v3922, 2147483648
    %v3933 = vsel %vm3931, %v3932, %v3923
    %v3934 = vsel %vm3927, %v3930, %v3933
    %v3935 = vsel %vm3924, nan, %v3934
    %v3936 = vld [vmem:[#allocation2] sm:$0xff]
    %v3937 = vld [vmem:[#allocation2 + $0x8] sm:$0xff]
    %v3938 = vld [vmem:[#allocation2 + $0x10] sm:$0xff]
    %v3939 = vld [vmem:[#allocation2 + $0x18] sm:$0xff]
    %v3940 = vld [vmem:[%s7] sm:$0x1]
    %v3942 = vlaneseq
    %v3943 = vshrl.u32 %v3942, 7
    %v3944 = vsub.s32 0, %v3943
    %v3945 = vrot.slane %v3940, %v3944
    %v3948 = vsel %vm1385, %v2999, 0
    %v3951 = vsel %vm1385, %v3103, 0
    %v3954 = vsel %vm1385, %v3207, 0
    %v3957 = vsel %vm1385, %v3311, 0
    %v3960 = vsel %vm1385, %v3415, 0
    %v3963 = vsel %vm1385, %v3519, 0
    %v3966 = vsel %vm1385, %v3623, 0
    %v3969 = vsel %vm1385, %v3727, 0
    %v3972 = vsel %vm1385, %v3831, 0
    %v3975 = vsel %vm1385, %v3935, 0
    %3977 = vmatprep.subr.mxu0 0.0
    %3978 = vmatpush1.msra.mxu0 0.0
    %3979 = vmatprep.subr.mxu0 0.0
    %3980 = vmatpush1.msra.mxu0 0.0
    %3981 = vmatprep.subr.mxu0 0.0
    %3982 = vmatpush1.msra.mxu0 0.0
    %3983 = vmatprep.subr.mxu0 0.0
    %3984 = vmatpush1.msra.mxu0 0.0
    %3985 = vmatprep.subr.mxu0 0.0
    %3986 = vmatpush1.msra.mxu0 0.0
    %3987 = vmatprep.subr.mxu0 0.0
    %3988 = vmatpush1.msra.mxu0 0.0
    %3989 = vmatprep.subr.mxu0 0.0
    %3990 = vmatpush1.msra.mxu0 0.0
    %3991 = vmatprep.subr.mxu0 0.0
    %3992 = vmatpush1.msra.mxu0 0.0
    %3993 = vmatprep.subr.mxu0 0.0
    %3994 = vmatpush1.msra.mxu0 0.0
    %3995 = vmatprep.subr.mxu0 0.0
    %3996 = vmatpush1.msra.mxu0 0.0
    %3997 = vmatprep.subr.mxu0 0.0
    %3998 = vmatpush1.msra.mxu0 0.0
    %3999 = vmatprep.subr.mxu0 0.0
    %4000 = vmatpush1.msra.mxu0 0.0
    %4001 = vmatprep.subr.mxu0 0.0
    %4002 = vmatpush1.msra.mxu0 %v3939
    %4003 = vmatprep.subr.mxu0 0.0
    %4004 = vmatpush1.msra.mxu0 %v3938
    %4005 = vmatprep.subr.mxu0 0.0
    %4006 = vmatpush1.msra.mxu0 %v3937
    %4007 = vmatprep.subr.mxu0 0.0
    %4008 = vmatpush1.msra.mxu0 %v3936
    %4009 = vmatprep.subr.mxu0 0.0
    %4010 = vmatpush2.msra.mxu0 0.0
    %4011 = vmatprep.subr.mxu0 0.0
    %4012 = vmatpush2.msra.mxu0 0.0
    %4013 = vmatprep.subr.mxu0 0.0
    %4014 = vmatpush2.msra.mxu0 0.0
    %4015 = vmatprep.subr.mxu0 0.0
    %4016 = vmatpush2.msra.mxu0 0.0
    %4017 = vmatprep.subr.mxu0 0.0
    %4018 = vmatpush2.msra.mxu0 0.0
    %4019 = vmatprep.subr.mxu0 0.0
    %4020 = vmatpush2.msra.mxu0 0.0
    %4021 = vmatprep.subr.mxu0 0.0
    %4022 = vmatpush2.msra.mxu0 0.0
    %4023 = vmatprep.subr.mxu0 0.0
    %4024 = vmatpush2.msra.mxu0 0.0
    %4025 = vmatprep.subr.mxu0 0.0
    %4026 = vmatpush2.msra.mxu0 0.0
    %4027 = vmatprep.subr.mxu0 0.0
    %4028 = vmatpush2.msra.mxu0 0.0
    %4029 = vmatprep.subr.mxu0 0.0
    %4030 = vmatpush2.msra.mxu0 0.0
    %4031 = vmatprep.subr.mxu0 0.0
    %4032 = vmatpush2.msra.mxu0 0.0
    %4033 = vmatprep.subr.mxu0 0.0
    %4034 = vmatpush2.msra.mxu0 0.0
    %4035 = vmatprep.subr.mxu0 0.0
    %4036 = vmatpush2.msra.mxu0 0.0
    %4037 = vmatprep.subr.mxu0 0.0
    %4038 = vmatpush2.msra.mxu0 0.0
    %4039 = vmatprep.subr.mxu0 0.0
    %4040 = vmatpush2.msra.mxu0 0.0
    %4041 = vmatprep.mubr.f32.mxu0 0.0
    %4042 = vmatmul.mubr.f32.gmra.mxu0 %v3948
    %v4043 = vpop.f32.mrf.mxu0
    %v4044 = vadd.f32 %v3945, %v4043
    %v4045 = vpop.f32.mrf.mxu0
    %4046 = vmatprep.mubr.f32.mxu0 0.0
    %4047 = vmatmul.mubr.f32.gmra.mxu0 %v3951
    %v4048 = vpop.f32.mrf.mxu0
    %v4049 = vadd.f32 %v3945, %v4048
    %v4050 = vpop.f32.mrf.mxu0
    %4051 = vmatprep.mubr.f32.mxu0 0.0
    %4052 = vmatmul.mubr.f32.gmra.mxu0 %v3954
    %v4053 = vpop.f32.mrf.mxu0
    %v4054 = vadd.f32 %v3945, %v4053
    %v4055 = vpop.f32.mrf.mxu0
    %4056 = vmatprep.mubr.f32.mxu0 0.0
    %4057 = vmatmul.mubr.f32.gmra.mxu0 %v3957
    %v4058 = vpop.f32.mrf.mxu0
    %v4059 = vadd.f32 %v3945, %v4058
    %v4060 = vpop.f32.mrf.mxu0
    %4061 = vmatprep.mubr.f32.mxu0 0.0
    %4062 = vmatmul.mubr.f32.gmra.mxu0 %v3960
    %v4063 = vpop.f32.mrf.mxu0
    %v4064 = vadd.f32 %v3945, %v4063
    %v4065 = vpop.f32.mrf.mxu0
    %4066 = vmatprep.mubr.f32.mxu0 0.0
    %4067 = vmatmul.mubr.f32.gmra.mxu0 %v3963
    %v4068 = vpop.f32.mrf.mxu0
    %v4069 = vadd.f32 %v3945, %v4068
    %v4070 = vpop.f32.mrf.mxu0
    %4071 = vmatprep.mubr.f32.mxu0 0.0
    %4072 = vmatmul.mubr.f32.gmra.mxu0 %v3966
    %v4073 = vpop.f32.mrf.mxu0
    %v4074 = vadd.f32 %v3945, %v4073
    %v4075 = vpop.f32.mrf.mxu0
    %4076 = vmatprep.mubr.f32.mxu0 0.0
    %4077 = vmatmul.mubr.f32.gmra.mxu0 %v3969
    %v4078 = vpop.f32.mrf.mxu0
    %v4079 = vadd.f32 %v3945, %v4078
    %v4080 = vpop.f32.mrf.mxu0
    %4081 = vmatprep.mubr.f32.mxu0 0.0
    %4082 = vmatmul.mubr.f32.gmra.mxu0 %v3972
    %v4083 = vpop.f32.mrf.mxu0
    %v4084 = vadd.f32 %v3945, %v4083
    %v4085 = vpop.f32.mrf.mxu0
    %4086 = vmatprep.mubr.f32.mxu0 0.0
    %4087 = vmatmul.mubr.f32.gmra.mxu0 %v3975
    %v4088 = vpop.f32.mrf.mxu0
    %v4089 = vadd.f32 %v3945, %v4088
    %v4090 = vpop.f32.mrf.mxu0
    %4091 = vdwg.mxu0
    %v4092 = vmul.f32 %v4044, 30.0
    %v4093 = vmul.f32 %v4049, 30.0
    %v4094 = vmul.f32 %v4054, 30.0
    %v4095 = vmul.f32 %v4059, 30.0
    %v4096 = vmul.f32 %v4064, 30.0
    %v4097 = vmul.f32 %v4069, 30.0
    %v4098 = vmul.f32 %v4074, 30.0
    %v4099 = vmul.f32 %v4079, 30.0
    %v4100 = vmul.f32 %v4084, 30.0
    %v4101 = vmul.f32 %v4089, 30.0
    %v4102 = vand.u32 2147483647, %v4092
    %vm4103 = vcmp.le.f32.partialorder %v4102, 0.7853982
    %vm4104 = vcmp.lt.s32.totalorder %v4092, 0
    %v4105 = vand.u32 %v4092, 2139095040
    %v4106 = vshrl.u32 %v4105, 23
    %v4107 = vsub.s32 %v4106, 127
    %v4108 = vand.u32 2147483647, %v4092
    %v4109 = vand.u32 %v4108, 8388607
    %v4110 = vor.u32 %v4109, 8388608
    %v4111 = vsub.s32 0, %v4110
    %v4112 = vadd.s32 %v4107, 1
    %vm4113 = vcmp.gt.s32.totalorder %v4112, 0
    %v4114 = vsel %vm4113, %v4112, 0
    %v4115 = vshrl.u32 %v4114, 5
    %v4116 = vand.u32 %v4114, 31
    %v4117 = vsub.s32 32, %v4116
    %v4118 = vshrl.u32 683565275, %v4117
    %v4119 = vshll.u32 683565275, %v4116
    %v4120 = vshrl.u32 2475754826, %v4117
    %v4121 = vor.u32 %v4119, %v4120
    %v4122 = vshll.u32 2475754826, %v4116
    %v4123 = vshrl.u32 2131351028, %v4117
    %v4124 = vor.u32 %v4122, %v4123
    %v4125 = vshll.u32 2131351028, %v4116
    %v4126 = vshrl.u32 2102212464, %v4117
    %v4127 = vor.u32 %v4125, %v4126
    %v4128 = vshll.u32 2102212464, %v4116
    %v4129 = vshrl.u32 920167782, %v4117
    %v4130 = vor.u32 %v4128, %v4129
    %v4131 = vshll.u32 920167782, %v4116
    %v4132 = vshrl.u32 1326507024, %v4117
    %v4133 = vor.u32 %v4131, %v4132
    %vm4134 = vcmp.lt.s32.totalorder %v4115, 1
    %vm4135 = vcmp.lt.s32.totalorder %v4115, 2
    %vm4136 = vcmp.lt.s32.totalorder %v4115, 3
    %vm4137 = vcmp.lt.s32.totalorder %v4115, 4
    %v4138 = vsel %vm4134, %v4118, %v4121
    %v4139 = vsel %vm4137, %v4127, 2102212464
    %v4140 = vsel %vm4136, %v4124, %v4139
    %v4141 = vsel %vm4135, %v4138, %v4140
    %v4142 = vsel %vm4134, %v4121, %v4124
    %v4143 = vsel %vm4137, %v4130, 920167782
    %v4144 = vsel %vm4136, %v4127, %v4143
    %v4145 = vsel %vm4135, %v4142, %v4144
    %v4146 = vsel %vm4134, %v4124, %v4127
    %v4147 = vsel %vm4137, %v4133, 1326507024
    %v4148 = vsel %vm4136, %v4130, %v4147
    %v4149 = vsel %vm4135, %v4146, %v4148
    %v4150 = vshll.u32 %v4110, 8
    %v4151 = vmul.u32.u64.compose %v4150, %v4149
    %v4152 = vextract.low.u32 %v4151
    %v4153 = vextract.high.u32 %v4151
    %v4154 = vmul.u32.u64.compose %v4150, %v4145
    %v4155 = vextract.low.u32 %v4154
    %v4156 = vextract.high.u32 %v4154
    %v4157 = vmul.u32 %v4150, %v4141
    %v4158 = vadd.s32 %v4153, %v4155
    %vm4159 = vc.u32 %v4153, %v4155
    %v4160 = vadd.s32 %v4156, 1
    %v4161 = vsel %vm4159, %v4160, %v4156
    %v4162 = vadd.s32 %v4157, %v4161
    %v4163 = vadd.s32 %v4162, 536870912
    %v4164 = vshrl.u32 %v4163, 30
    %v4165 = vshll.u32 %v4164, 30
    %v4166 = vsub.s32 %v4162, %v4165
    %vm4167 = vcmp.lt.s32.totalorder %v4166, 0
    %v4168 = vsub.s32 0, %v4166
    %v4169 = vsel %vm4167, %v4168, %v4166
    %v4170 = vclz %v4169
    %v4171 = vsub.s32 %v4170, 2
    %vm4172 = vcmp.gt.s32.totalorder 0, %v4171
    %v4173 = vsel %vm4172, 0, %v4171
    %v4174 = vsub.s32 32, %v4173
    %v4175 = vshll.u32 %v4166, %v4173
    %v4176 = vshrl.u32 %v4158, %v4174
    %v4177 = vor.u32 %v4175, %v4176
    %v4178 = vsub.s32 4294967266, %v4173
    %v4179 = vadd.s32 %v4178, 127
    %v4180 = vshll.u32 %v4179, 23
    %v4181 = vor.u32 4788187, %v4180
    %v4182 = vand.u32 2147483647, %v4181
    %v4184 = vcvt.s32.f32 %v4177
    %v4185 = vmul.f32 %v4184, %v4182
    %v4186 = vxor.u32 %v4185, 2147483648
    %v4187 = vsel %vm4104, %v4186, %v4185
    %v4188 = vsub.s32 4, %v4164
    %v4189 = vsel %vm4104, %v4188, %v4164
    %v4190 = vsel %vm4103, %v4092, %v4187
    %v4191 = vsel %vm4103, 0, %v4189
    %v4192 = vcosq.f32.pop %v4190
    %v4193 = vsinq.f32.pop %v4190
    %vm4194 = vweird.f32 %v4092
    %v4195 = vadd.s32 %v4191, 3
    %v4196 = vand.u32 %v4195, 3
    %vm4197 = vcmp.lt.s32.totalorder %v4196, 2
    %vm4198 = vcmp.eq.s32.totalorder %v4196, 0
    %v4199 = vxor.u32 %v4193, 2147483648
    %v4200 = vsel %vm4198, %v4192, %v4199
    %vm4201 = vcmp.eq.s32.totalorder %v4196, 2
    %v4202 = vxor.u32 %v4192, 2147483648
    %v4203 = vsel %vm4201, %v4202, %v4193
    %v4204 = vsel %vm4197, %v4200, %v4203
    %v4205 = vsel %vm4194, nan, %v4204
    %v4206 = vand.u32 2147483647, %v4093
    %vm4207 = vcmp.le.f32.partialorder %v4206, 0.7853982
    %vm4208 = vcmp.lt.s32.totalorder %v4093, 0
    %v4209 = vand.u32 %v4093, 2139095040
    %v4210 = vshrl.u32 %v4209, 23
    %v4211 = vsub.s32 %v4210, 127
    %v4212 = vand.u32 2147483647, %v4093
    %v4213 = vand.u32 %v4212, 8388607
    %v4214 = vor.u32 %v4213, 8388608
    %v4215 = vsub.s32 0, %v4214
    %v4216 = vadd.s32 %v4211, 1
    %vm4217 = vcmp.gt.s32.totalorder %v4216, 0
    %v4218 = vsel %vm4217, %v4216, 0
    %v4219 = vshrl.u32 %v4218, 5
    %v4220 = vand.u32 %v4218, 31
    %v4221 = vsub.s32 32, %v4220
    %v4222 = vshrl.u32 683565275, %v4221
    %v4223 = vshll.u32 683565275, %v4220
    %v4224 = vshrl.u32 2475754826, %v4221
    %v4225 = vor.u32 %v4223, %v4224
    %v4226 = vshll.u32 2475754826, %v4220
    %v4227 = vshrl.u32 2131351028, %v4221
    %v4228 = vor.u32 %v4226, %v4227
    %v4229 = vshll.u32 2131351028, %v4220
    %v4230 = vshrl.u32 2102212464, %v4221
    %v4231 = vor.u32 %v4229, %v4230
    %v4232 = vshll.u32 2102212464, %v4220
    %v4233 = vshrl.u32 920167782, %v4221
    %v4234 = vor.u32 %v4232, %v4233
    %v4235 = vshll.u32 920167782, %v4220
    %v4236 = vshrl.u32 1326507024, %v4221
    %v4237 = vor.u32 %v4235, %v4236
    %vm4238 = vcmp.lt.s32.totalorder %v4219, 1
    %vm4239 = vcmp.lt.s32.totalorder %v4219, 2
    %vm4240 = vcmp.lt.s32.totalorder %v4219, 3
    %vm4241 = vcmp.lt.s32.totalorder %v4219, 4
    %v4242 = vsel %vm4238, %v4222, %v4225
    %v4243 = vsel %vm4241, %v4231, 2102212464
    %v4244 = vsel %vm4240, %v4228, %v4243
    %v4245 = vsel %vm4239, %v4242, %v4244
    %v4246 = vsel %vm4238, %v4225, %v4228
    %v4247 = vsel %vm4241, %v4234, 920167782
    %v4248 = vsel %vm4240, %v4231, %v4247
    %v4249 = vsel %vm4239, %v4246, %v4248
    %v4250 = vsel %vm4238, %v4228, %v4231
    %v4251 = vsel %vm4241, %v4237, 1326507024
    %v4252 = vsel %vm4240, %v4234, %v4251
    %v4253 = vsel %vm4239, %v4250, %v4252
    %v4254 = vshll.u32 %v4214, 8
    %v4255 = vmul.u32.u64.compose %v4254, %v4253
    %v4256 = vextract.low.u32 %v4255
    %v4257 = vextract.high.u32 %v4255
    %v4258 = vmul.u32.u64.compose %v4254, %v4249
    %v4259 = vextract.low.u32 %v4258
    %v4260 = vextract.high.u32 %v4258
    %v4261 = vmul.u32 %v4254, %v4245
    %v4262 = vadd.s32 %v4257, %v4259
    %vm4263 = vc.u32 %v4257, %v4259
    %v4264 = vadd.s32 %v4260, 1
    %v4265 = vsel %vm4263, %v4264, %v4260
    %v4266 = vadd.s32 %v4261, %v4265
    %v4267 = vadd.s32 %v4266, 536870912
    %v4268 = vshrl.u32 %v4267, 30
    %v4269 = vshll.u32 %v4268, 30
    %v4270 = vsub.s32 %v4266, %v4269
    %vm4271 = vcmp.lt.s32.totalorder %v4270, 0
    %v4272 = vsub.s32 0, %v4270
    %v4273 = vsel %vm4271, %v4272, %v4270
    %v4274 = vclz %v4273
    %v4275 = vsub.s32 %v4274, 2
    %vm4276 = vcmp.gt.s32.totalorder 0, %v4275
    %v4277 = vsel %vm4276, 0, %v4275
    %v4278 = vsub.s32 32, %v4277
    %v4279 = vshll.u32 %v4270, %v4277
    %v4280 = vshrl.u32 %v4262, %v4278
    %v4281 = vor.u32 %v4279, %v4280
    %v4282 = vsub.s32 4294967266, %v4277
    %v4283 = vadd.s32 %v4282, 127
    %v4284 = vshll.u32 %v4283, 23
    %v4285 = vor.u32 4788187, %v4284
    %v4286 = vand.u32 2147483647, %v4285
    %v4288 = vcvt.s32.f32 %v4281
    %v4289 = vmul.f32 %v4288, %v4286
    %v4290 = vxor.u32 %v4289, 2147483648
    %v4291 = vsel %vm4208, %v4290, %v4289
    %v4292 = vsub.s32 4, %v4268
    %v4293 = vsel %vm4208, %v4292, %v4268
    %v4294 = vsel %vm4207, %v4093, %v4291
    %v4295 = vsel %vm4207, 0, %v4293
    %v4296 = vcosq.f32.pop %v4294
    %v4297 = vsinq.f32.pop %v4294
    %vm4298 = vweird.f32 %v4093
    %v4299 = vadd.s32 %v4295, 3
    %v4300 = vand.u32 %v4299, 3
    %vm4301 = vcmp.lt.s32.totalorder %v4300, 2
    %vm4302 = vcmp.eq.s32.totalorder %v4300, 0
    %v4303 = vxor.u32 %v4297, 2147483648
    %v4304 = vsel %vm4302, %v4296, %v4303
    %vm4305 = vcmp.eq.s32.totalorder %v4300, 2
    %v4306 = vxor.u32 %v4296, 2147483648
    %v4307 = vsel %vm4305, %v4306, %v4297
    %v4308 = vsel %vm4301, %v4304, %v4307
    %v4309 = vsel %vm4298, nan, %v4308
    %v4310 = vand.u32 2147483647, %v4094
    %vm4311 = vcmp.le.f32.partialorder %v4310, 0.7853982
    %vm4312 = vcmp.lt.s32.totalorder %v4094, 0
    %v4313 = vand.u32 %v4094, 2139095040
    %v4314 = vshrl.u32 %v4313, 23
    %v4315 = vsub.s32 %v4314, 127
    %v4316 = vand.u32 2147483647, %v4094
    %v4317 = vand.u32 %v4316, 8388607
    %v4318 = vor.u32 %v4317, 8388608
    %v4319 = vsub.s32 0, %v4318
    %v4320 = vadd.s32 %v4315, 1
    %vm4321 = vcmp.gt.s32.totalorder %v4320, 0
    %v4322 = vsel %vm4321, %v4320, 0
    %v4323 = vshrl.u32 %v4322, 5
    %v4324 = vand.u32 %v4322, 31
    %v4325 = vsub.s32 32, %v4324
    %v4326 = vshrl.u32 683565275, %v4325
    %v4327 = vshll.u32 683565275, %v4324
    %v4328 = vshrl.u32 2475754826, %v4325
    %v4329 = vor.u32 %v4327, %v4328
    %v4330 = vshll.u32 2475754826, %v4324
    %v4331 = vshrl.u32 2131351028, %v4325
    %v4332 = vor.u32 %v4330, %v4331
    %v4333 = vshll.u32 2131351028, %v4324
    %v4334 = vshrl.u32 2102212464, %v4325
    %v4335 = vor.u32 %v4333, %v4334
    %v4336 = vshll.u32 2102212464, %v4324
    %v4337 = vshrl.u32 920167782, %v4325
    %v4338 = vor.u32 %v4336, %v4337
    %v4339 = vshll.u32 920167782, %v4324
    %v4340 = vshrl.u32 1326507024, %v4325
    %v4341 = vor.u32 %v4339, %v4340
    %vm4342 = vcmp.lt.s32.totalorder %v4323, 1
    %vm4343 = vcmp.lt.s32.totalorder %v4323, 2
    %vm4344 = vcmp.lt.s32.totalorder %v4323, 3
    %vm4345 = vcmp.lt.s32.totalorder %v4323, 4
    %v4346 = vsel %vm4342, %v4326, %v4329
    %v4347 = vsel %vm4345, %v4335, 2102212464
    %v4348 = vsel %vm4344, %v4332, %v4347
    %v4349 = vsel %vm4343, %v4346, %v4348
    %v4350 = vsel %vm4342, %v4329, %v4332
    %v4351 = vsel %vm4345, %v4338, 920167782
    %v4352 = vsel %vm4344, %v4335, %v4351
    %v4353 = vsel %vm4343, %v4350, %v4352
    %v4354 = vsel %vm4342, %v4332, %v4335
    %v4355 = vsel %vm4345, %v4341, 1326507024
    %v4356 = vsel %vm4344, %v4338, %v4355
    %v4357 = vsel %vm4343, %v4354, %v4356
    %v4358 = vshll.u32 %v4318, 8
    %v4359 = vmul.u32.u64.compose %v4358, %v4357
    %v4360 = vextract.low.u32 %v4359
    %v4361 = vextract.high.u32 %v4359
    %v4362 = vmul.u32.u64.compose %v4358, %v4353
    %v4363 = vextract.low.u32 %v4362
    %v4364 = vextract.high.u32 %v4362
    %v4365 = vmul.u32 %v4358, %v4349
    %v4366 = vadd.s32 %v4361, %v4363
    %vm4367 = vc.u32 %v4361, %v4363
    %v4368 = vadd.s32 %v4364, 1
    %v4369 = vsel %vm4367, %v4368, %v4364
    %v4370 = vadd.s32 %v4365, %v4369
    %v4371 = vadd.s32 %v4370, 536870912
    %v4372 = vshrl.u32 %v4371, 30
    %v4373 = vshll.u32 %v4372, 30
    %v4374 = vsub.s32 %v4370, %v4373
    %vm4375 = vcmp.lt.s32.totalorder %v4374, 0
    %v4376 = vsub.s32 0, %v4374
    %v4377 = vsel %vm4375, %v4376, %v4374
    %v4378 = vclz %v4377
    %v4379 = vsub.s32 %v4378, 2
    %vm4380 = vcmp.gt.s32.totalorder 0, %v4379
    %v4381 = vsel %vm4380, 0, %v4379
    %v4382 = vsub.s32 32, %v4381
    %v4383 = vshll.u32 %v4374, %v4381
    %v4384 = vshrl.u32 %v4366, %v4382
    %v4385 = vor.u32 %v4383, %v4384
    %v4386 = vsub.s32 4294967266, %v4381
    %v4387 = vadd.s32 %v4386, 127
    %v4388 = vshll.u32 %v4387, 23
    %v4389 = vor.u32 4788187, %v4388
    %v4390 = vand.u32 2147483647, %v4389
    %v4392 = vcvt.s32.f32 %v4385
    %v4393 = vmul.f32 %v4392, %v4390
    %v4394 = vxor.u32 %v4393, 2147483648
    %v4395 = vsel %vm4312, %v4394, %v4393
    %v4396 = vsub.s32 4, %v4372
    %v4397 = vsel %vm4312, %v4396, %v4372
    %v4398 = vsel %vm4311, %v4094, %v4395
    %v4399 = vsel %vm4311, 0, %v4397
    %v4400 = vcosq.f32.pop %v4398
    %v4401 = vsinq.f32.pop %v4398
    %vm4402 = vweird.f32 %v4094
    %v4403 = vadd.s32 %v4399, 3
    %v4404 = vand.u32 %v4403, 3
    %vm4405 = vcmp.lt.s32.totalorder %v4404, 2
    %vm4406 = vcmp.eq.s32.totalorder %v4404, 0
    %v4407 = vxor.u32 %v4401, 2147483648
    %v4408 = vsel %vm4406, %v4400, %v4407
    %vm4409 = vcmp.eq.s32.totalorder %v4404, 2
    %v4410 = vxor.u32 %v4400, 2147483648
    %v4411 = vsel %vm4409, %v4410, %v4401
    %v4412 = vsel %vm4405, %v4408, %v4411
    %v4413 = vsel %vm4402, nan, %v4412
    %v4414 = vand.u32 2147483647, %v4095
    %vm4415 = vcmp.le.f32.partialorder %v4414, 0.7853982
    %vm4416 = vcmp.lt.s32.totalorder %v4095, 0
    %v4417 = vand.u32 %v4095, 2139095040
    %v4418 = vshrl.u32 %v4417, 23
    %v4419 = vsub.s32 %v4418, 127
    %v4420 = vand.u32 2147483647, %v4095
    %v4421 = vand.u32 %v4420, 8388607
    %v4422 = vor.u32 %v4421, 8388608
    %v4423 = vsub.s32 0, %v4422
    %v4424 = vadd.s32 %v4419, 1
    %vm4425 = vcmp.gt.s32.totalorder %v4424, 0
    %v4426 = vsel %vm4425, %v4424, 0
    %v4427 = vshrl.u32 %v4426, 5
    %v4428 = vand.u32 %v4426, 31
    %v4429 = vsub.s32 32, %v4428
    %v4430 = vshrl.u32 683565275, %v4429
    %v4431 = vshll.u32 683565275, %v4428
    %v4432 = vshrl.u32 2475754826, %v4429
    %v4433 = vor.u32 %v4431, %v4432
    %v4434 = vshll.u32 2475754826, %v4428
    %v4435 = vshrl.u32 2131351028, %v4429
    %v4436 = vor.u32 %v4434, %v4435
    %v4437 = vshll.u32 2131351028, %v4428
    %v4438 = vshrl.u32 2102212464, %v4429
    %v4439 = vor.u32 %v4437, %v4438
    %v4440 = vshll.u32 2102212464, %v4428
    %v4441 = vshrl.u32 920167782, %v4429
    %v4442 = vor.u32 %v4440, %v4441
    %v4443 = vshll.u32 920167782, %v4428
    %v4444 = vshrl.u32 1326507024, %v4429
    %v4445 = vor.u32 %v4443, %v4444
    %vm4446 = vcmp.lt.s32.totalorder %v4427, 1
    %vm4447 = vcmp.lt.s32.totalorder %v4427, 2
    %vm4448 = vcmp.lt.s32.totalorder %v4427, 3
    %vm4449 = vcmp.lt.s32.totalorder %v4427, 4
    %v4450 = vsel %vm4446, %v4430, %v4433
    %v4451 = vsel %vm4449, %v4439, 2102212464
    %v4452 = vsel %vm4448, %v4436, %v4451
    %v4453 = vsel %vm4447, %v4450, %v4452
    %v4454 = vsel %vm4446, %v4433, %v4436
    %v4455 = vsel %vm4449, %v4442, 920167782
    %v4456 = vsel %vm4448, %v4439, %v4455
    %v4457 = vsel %vm4447, %v4454, %v4456
    %v4458 = vsel %vm4446, %v4436, %v4439
    %v4459 = vsel %vm4449, %v4445, 1326507024
    %v4460 = vsel %vm4448, %v4442, %v4459
    %v4461 = vsel %vm4447, %v4458, %v4460
    %v4462 = vshll.u32 %v4422, 8
    %v4463 = vmul.u32.u64.compose %v4462, %v4461
    %v4464 = vextract.low.u32 %v4463
    %v4465 = vextract.high.u32 %v4463
    %v4466 = vmul.u32.u64.compose %v4462, %v4457
    %v4467 = vextract.low.u32 %v4466
    %v4468 = vextract.high.u32 %v4466
    %v4469 = vmul.u32 %v4462, %v4453
    %v4470 = vadd.s32 %v4465, %v4467
    %vm4471 = vc.u32 %v4465, %v4467
    %v4472 = vadd.s32 %v4468, 1
    %v4473 = vsel %vm4471, %v4472, %v4468
    %v4474 = vadd.s32 %v4469, %v4473
    %v4475 = vadd.s32 %v4474, 536870912
    %v4476 = vshrl.u32 %v4475, 30
    %v4477 = vshll.u32 %v4476, 30
    %v4478 = vsub.s32 %v4474, %v4477
    %vm4479 = vcmp.lt.s32.totalorder %v4478, 0
    %v4480 = vsub.s32 0, %v4478
    %v4481 = vsel %vm4479, %v4480, %v4478
    %v4482 = vclz %v4481
    %v4483 = vsub.s32 %v4482, 2
    %vm4484 = vcmp.gt.s32.totalorder 0, %v4483
    %v4485 = vsel %vm4484, 0, %v4483
    %v4486 = vsub.s32 32, %v4485
    %v4487 = vshll.u32 %v4478, %v4485
    %v4488 = vshrl.u32 %v4470, %v4486
    %v4489 = vor.u32 %v4487, %v4488
    %v4490 = vsub.s32 4294967266, %v4485
    %v4491 = vadd.s32 %v4490, 127
    %v4492 = vshll.u32 %v4491, 23
    %v4493 = vor.u32 4788187, %v4492
    %v4494 = vand.u32 2147483647, %v4493
    %v4496 = vcvt.s32.f32 %v4489
    %v4497 = vmul.f32 %v4496, %v4494
    %v4498 = vxor.u32 %v4497, 2147483648
    %v4499 = vsel %vm4416, %v4498, %v4497
    %v4500 = vsub.s32 4, %v4476
    %v4501 = vsel %vm4416, %v4500, %v4476
    %v4502 = vsel %vm4415, %v4095, %v4499
    %v4503 = vsel %vm4415, 0, %v4501
    %v4504 = vcosq.f32.pop %v4502
    %v4505 = vsinq.f32.pop %v4502
    %vm4506 = vweird.f32 %v4095
    %v4507 = vadd.s32 %v4503, 3
    %v4508 = vand.u32 %v4507, 3
    %vm4509 = vcmp.lt.s32.totalorder %v4508, 2
    %vm4510 = vcmp.eq.s32.totalorder %v4508, 0
    %v4511 = vxor.u32 %v4505, 2147483648
    %v4512 = vsel %vm4510, %v4504, %v4511
    %vm4513 = vcmp.eq.s32.totalorder %v4508, 2
    %v4514 = vxor.u32 %v4504, 2147483648
    %v4515 = vsel %vm4513, %v4514, %v4505
    %v4516 = vsel %vm4509, %v4512, %v4515
    %v4517 = vsel %vm4506, nan, %v4516
    %v4518 = vand.u32 2147483647, %v4096
    %vm4519 = vcmp.le.f32.partialorder %v4518, 0.7853982
    %vm4520 = vcmp.lt.s32.totalorder %v4096, 0
    %v4521 = vand.u32 %v4096, 2139095040
    %v4522 = vshrl.u32 %v4521, 23
    %v4523 = vsub.s32 %v4522, 127
    %v4524 = vand.u32 2147483647, %v4096
    %v4525 = vand.u32 %v4524, 8388607
    %v4526 = vor.u32 %v4525, 8388608
    %v4527 = vsub.s32 0, %v4526
    %v4528 = vadd.s32 %v4523, 1
    %vm4529 = vcmp.gt.s32.totalorder %v4528, 0
    %v4530 = vsel %vm4529, %v4528, 0
    %v4531 = vshrl.u32 %v4530, 5
    %v4532 = vand.u32 %v4530, 31
    %v4533 = vsub.s32 32, %v4532
    %v4534 = vshrl.u32 683565275, %v4533
    %v4535 = vshll.u32 683565275, %v4532
    %v4536 = vshrl.u32 2475754826, %v4533
    %v4537 = vor.u32 %v4535, %v4536
    %v4538 = vshll.u32 2475754826, %v4532
    %v4539 = vshrl.u32 2131351028, %v4533
    %v4540 = vor.u32 %v4538, %v4539
    %v4541 = vshll.u32 2131351028, %v4532
    %v4542 = vshrl.u32 2102212464, %v4533
    %v4543 = vor.u32 %v4541, %v4542
    %v4544 = vshll.u32 2102212464, %v4532
    %v4545 = vshrl.u32 920167782, %v4533
    %v4546 = vor.u32 %v4544, %v4545
    %v4547 = vshll.u32 920167782, %v4532
    %v4548 = vshrl.u32 1326507024, %v4533
    %v4549 = vor.u32 %v4547, %v4548
    %vm4550 = vcmp.lt.s32.totalorder %v4531, 1
    %vm4551 = vcmp.lt.s32.totalorder %v4531, 2
    %vm4552 = vcmp.lt.s32.totalorder %v4531, 3
    %vm4553 = vcmp.lt.s32.totalorder %v4531, 4
    %v4554 = vsel %vm4550, %v4534, %v4537
    %v4555 = vsel %vm4553, %v4543, 2102212464
    %v4556 = vsel %vm4552, %v4540, %v4555
    %v4557 = vsel %vm4551, %v4554, %v4556
    %v4558 = vsel %vm4550, %v4537, %v4540
    %v4559 = vsel %vm4553, %v4546, 920167782
    %v4560 = vsel %vm4552, %v4543, %v4559
    %v4561 = vsel %vm4551, %v4558, %v4560
    %v4562 = vsel %vm4550, %v4540, %v4543
    %v4563 = vsel %vm4553, %v4549, 1326507024
    %v4564 = vsel %vm4552, %v4546, %v4563
    %v4565 = vsel %vm4551, %v4562, %v4564
    %v4566 = vshll.u32 %v4526, 8
    %v4567 = vmul.u32.u64.compose %v4566, %v4565
    %v4568 = vextract.low.u32 %v4567
    %v4569 = vextract.high.u32 %v4567
    %v4570 = vmul.u32.u64.compose %v4566, %v4561
    %v4571 = vextract.low.u32 %v4570
    %v4572 = vextract.high.u32 %v4570
    %v4573 = vmul.u32 %v4566, %v4557
    %v4574 = vadd.s32 %v4569, %v4571
    %vm4575 = vc.u32 %v4569, %v4571
    %v4576 = vadd.s32 %v4572, 1
    %v4577 = vsel %vm4575, %v4576, %v4572
    %v4578 = vadd.s32 %v4573, %v4577
    %v4579 = vadd.s32 %v4578, 536870912
    %v4580 = vshrl.u32 %v4579, 30
    %v4581 = vshll.u32 %v4580, 30
    %v4582 = vsub.s32 %v4578, %v4581
    %vm4583 = vcmp.lt.s32.totalorder %v4582, 0
    %v4584 = vsub.s32 0, %v4582
    %v4585 = vsel %vm4583, %v4584, %v4582
    %v4586 = vclz %v4585
    %v4587 = vsub.s32 %v4586, 2
    %vm4588 = vcmp.gt.s32.totalorder 0, %v4587
    %v4589 = vsel %vm4588, 0, %v4587
    %v4590 = vsub.s32 32, %v4589
    %v4591 = vshll.u32 %v4582, %v4589
    %v4592 = vshrl.u32 %v4574, %v4590
    %v4593 = vor.u32 %v4591, %v4592
    %v4594 = vsub.s32 4294967266, %v4589
    %v4595 = vadd.s32 %v4594, 127
    %v4596 = vshll.u32 %v4595, 23
    %v4597 = vor.u32 4788187, %v4596
    %v4598 = vand.u32 2147483647, %v4597
    %v4600 = vcvt.s32.f32 %v4593
    %v4601 = vmul.f32 %v4600, %v4598
    %v4602 = vxor.u32 %v4601, 2147483648
    %v4603 = vsel %vm4520, %v4602, %v4601
    %v4604 = vsub.s32 4, %v4580
    %v4605 = vsel %vm4520, %v4604, %v4580
    %v4606 = vsel %vm4519, %v4096, %v4603
    %v4607 = vsel %vm4519, 0, %v4605
    %v4608 = vcosq.f32.pop %v4606
    %v4609 = vsinq.f32.pop %v4606
    %vm4610 = vweird.f32 %v4096
    %v4611 = vadd.s32 %v4607, 3
    %v4612 = vand.u32 %v4611, 3
    %vm4613 = vcmp.lt.s32.totalorder %v4612, 2
    %vm4614 = vcmp.eq.s32.totalorder %v4612, 0
    %v4615 = vxor.u32 %v4609, 2147483648
    %v4616 = vsel %vm4614, %v4608, %v4615
    %vm4617 = vcmp.eq.s32.totalorder %v4612, 2
    %v4618 = vxor.u32 %v4608, 2147483648
    %v4619 = vsel %vm4617, %v4618, %v4609
    %v4620 = vsel %vm4613, %v4616, %v4619
    %v4621 = vsel %vm4610, nan, %v4620
    %v4622 = vand.u32 2147483647, %v4097
    %vm4623 = vcmp.le.f32.partialorder %v4622, 0.7853982
    %vm4624 = vcmp.lt.s32.totalorder %v4097, 0
    %v4625 = vand.u32 %v4097, 2139095040
    %v4626 = vshrl.u32 %v4625, 23
    %v4627 = vsub.s32 %v4626, 127
    %v4628 = vand.u32 2147483647, %v4097
    %v4629 = vand.u32 %v4628, 8388607
    %v4630 = vor.u32 %v4629, 8388608
    %v4631 = vsub.s32 0, %v4630
    %v4632 = vadd.s32 %v4627, 1
    %vm4633 = vcmp.gt.s32.totalorder %v4632, 0
    %v4634 = vsel %vm4633, %v4632, 0
    %v4635 = vshrl.u32 %v4634, 5
    %v4636 = vand.u32 %v4634, 31
    %v4637 = vsub.s32 32, %v4636
    %v4638 = vshrl.u32 683565275, %v4637
    %v4639 = vshll.u32 683565275, %v4636
    %v4640 = vshrl.u32 2475754826, %v4637
    %v4641 = vor.u32 %v4639, %v4640
    %v4642 = vshll.u32 2475754826, %v4636
    %v4643 = vshrl.u32 2131351028, %v4637
    %v4644 = vor.u32 %v4642, %v4643
    %v4645 = vshll.u32 2131351028, %v4636
    %v4646 = vshrl.u32 2102212464, %v4637
    %v4647 = vor.u32 %v4645, %v4646
    %v4648 = vshll.u32 2102212464, %v4636
    %v4649 = vshrl.u32 920167782, %v4637
    %v4650 = vor.u32 %v4648, %v4649
    %v4651 = vshll.u32 920167782, %v4636
    %v4652 = vshrl.u32 1326507024, %v4637
    %v4653 = vor.u32 %v4651, %v4652
    %vm4654 = vcmp.lt.s32.totalorder %v4635, 1
    %vm4655 = vcmp.lt.s32.totalorder %v4635, 2
    %vm4656 = vcmp.lt.s32.totalorder %v4635, 3
    %vm4657 = vcmp.lt.s32.totalorder %v4635, 4
    %v4658 = vsel %vm4654, %v4638, %v4641
    %v4659 = vsel %vm4657, %v4647, 2102212464
    %v4660 = vsel %vm4656, %v4644, %v4659
    %v4661 = vsel %vm4655, %v4658, %v4660
    %v4662 = vsel %vm4654, %v4641, %v4644
    %v4663 = vsel %vm4657, %v4650, 920167782
    %v4664 = vsel %vm4656, %v4647, %v4663
    %v4665 = vsel %vm4655, %v4662, %v4664
    %v4666 = vsel %vm4654, %v4644, %v4647
    %v4667 = vsel %vm4657, %v4653, 1326507024
    %v4668 = vsel %vm4656, %v4650, %v4667
    %v4669 = vsel %vm4655, %v4666, %v4668
    %v4670 = vshll.u32 %v4630, 8
    %v4671 = vmul.u32.u64.compose %v4670, %v4669
    %v4672 = vextract.low.u32 %v4671
    %v4673 = vextract.high.u32 %v4671
    %v4674 = vmul.u32.u64.compose %v4670, %v4665
    %v4675 = vextract.low.u32 %v4674
    %v4676 = vextract.high.u32 %v4674
    %v4677 = vmul.u32 %v4670, %v4661
    %v4678 = vadd.s32 %v4673, %v4675
    %vm4679 = vc.u32 %v4673, %v4675
    %v4680 = vadd.s32 %v4676, 1
    %v4681 = vsel %vm4679, %v4680, %v4676
    %v4682 = vadd.s32 %v4677, %v4681
    %v4683 = vadd.s32 %v4682, 536870912
    %v4684 = vshrl.u32 %v4683, 30
    %v4685 = vshll.u32 %v4684, 30
    %v4686 = vsub.s32 %v4682, %v4685
    %vm4687 = vcmp.lt.s32.totalorder %v4686, 0
    %v4688 = vsub.s32 0, %v4686
    %v4689 = vsel %vm4687, %v4688, %v4686
    %v4690 = vclz %v4689
    %v4691 = vsub.s32 %v4690, 2
    %vm4692 = vcmp.gt.s32.totalorder 0, %v4691
    %v4693 = vsel %vm4692, 0, %v4691
    %v4694 = vsub.s32 32, %v4693
    %v4695 = vshll.u32 %v4686, %v4693
    %v4696 = vshrl.u32 %v4678, %v4694
    %v4697 = vor.u32 %v4695, %v4696
    %v4698 = vsub.s32 4294967266, %v4693
    %v4699 = vadd.s32 %v4698, 127
    %v4700 = vshll.u32 %v4699, 23
    %v4701 = vor.u32 4788187, %v4700
    %v4702 = vand.u32 2147483647, %v4701
    %v4704 = vcvt.s32.f32 %v4697
    %v4705 = vmul.f32 %v4704, %v4702
    %v4706 = vxor.u32 %v4705, 2147483648
    %v4707 = vsel %vm4624, %v4706, %v4705
    %v4708 = vsub.s32 4, %v4684
    %v4709 = vsel %vm4624, %v4708, %v4684
    %v4710 = vsel %vm4623, %v4097, %v4707
    %v4711 = vsel %vm4623, 0, %v4709
    %v4712 = vcosq.f32.pop %v4710
    %v4713 = vsinq.f32.pop %v4710
    %vm4714 = vweird.f32 %v4097
    %v4715 = vadd.s32 %v4711, 3
    %v4716 = vand.u32 %v4715, 3
    %vm4717 = vcmp.lt.s32.totalorder %v4716, 2
    %vm4718 = vcmp.eq.s32.totalorder %v4716, 0
    %v4719 = vxor.u32 %v4713, 2147483648
    %v4720 = vsel %vm4718, %v4712, %v4719
    %vm4721 = vcmp.eq.s32.totalorder %v4716, 2
    %v4722 = vxor.u32 %v4712, 2147483648
    %v4723 = vsel %vm4721, %v4722, %v4713
    %v4724 = vsel %vm4717, %v4720, %v4723
    %v4725 = vsel %vm4714, nan, %v4724
    %v4726 = vand.u32 2147483647, %v4098
    %vm4727 = vcmp.le.f32.partialorder %v4726, 0.7853982
    %vm4728 = vcmp.lt.s32.totalorder %v4098, 0
    %v4729 = vand.u32 %v4098, 2139095040
    %v4730 = vshrl.u32 %v4729, 23
    %v4731 = vsub.s32 %v4730, 127
    %v4732 = vand.u32 2147483647, %v4098
    %v4733 = vand.u32 %v4732, 8388607
    %v4734 = vor.u32 %v4733, 8388608
    %v4735 = vsub.s32 0, %v4734
    %v4736 = vadd.s32 %v4731, 1
    %vm4737 = vcmp.gt.s32.totalorder %v4736, 0
    %v4738 = vsel %vm4737, %v4736, 0
    %v4739 = vshrl.u32 %v4738, 5
    %v4740 = vand.u32 %v4738, 31
    %v4741 = vsub.s32 32, %v4740
    %v4742 = vshrl.u32 683565275, %v4741
    %v4743 = vshll.u32 683565275, %v4740
    %v4744 = vshrl.u32 2475754826, %v4741
    %v4745 = vor.u32 %v4743, %v4744
    %v4746 = vshll.u32 2475754826, %v4740
    %v4747 = vshrl.u32 2131351028, %v4741
    %v4748 = vor.u32 %v4746, %v4747
    %v4749 = vshll.u32 2131351028, %v4740
    %v4750 = vshrl.u32 2102212464, %v4741
    %v4751 = vor.u32 %v4749, %v4750
    %v4752 = vshll.u32 2102212464, %v4740
    %v4753 = vshrl.u32 920167782, %v4741
    %v4754 = vor.u32 %v4752, %v4753
    %v4755 = vshll.u32 920167782, %v4740
    %v4756 = vshrl.u32 1326507024, %v4741
    %v4757 = vor.u32 %v4755, %v4756
    %vm4758 = vcmp.lt.s32.totalorder %v4739, 1
    %vm4759 = vcmp.lt.s32.totalorder %v4739, 2
    %vm4760 = vcmp.lt.s32.totalorder %v4739, 3
    %vm4761 = vcmp.lt.s32.totalorder %v4739, 4
    %v4762 = vsel %vm4758, %v4742, %v4745
    %v4763 = vsel %vm4761, %v4751, 2102212464
    %v4764 = vsel %vm4760, %v4748, %v4763
    %v4765 = vsel %vm4759, %v4762, %v4764
    %v4766 = vsel %vm4758, %v4745, %v4748
    %v4767 = vsel %vm4761, %v4754, 920167782
    %v4768 = vsel %vm4760, %v4751, %v4767
    %v4769 = vsel %vm4759, %v4766, %v4768
    %v4770 = vsel %vm4758, %v4748, %v4751
    %v4771 = vsel %vm4761, %v4757, 1326507024
    %v4772 = vsel %vm4760, %v4754, %v4771
    %v4773 = vsel %vm4759, %v4770, %v4772
    %v4774 = vshll.u32 %v4734, 8
    %v4775 = vmul.u32.u64.compose %v4774, %v4773
    %v4776 = vextract.low.u32 %v4775
    %v4777 = vextract.high.u32 %v4775
    %v4778 = vmul.u32.u64.compose %v4774, %v4769
    %v4779 = vextract.low.u32 %v4778
    %v4780 = vextract.high.u32 %v4778
    %v4781 = vmul.u32 %v4774, %v4765
    %v4782 = vadd.s32 %v4777, %v4779
    %vm4783 = vc.u32 %v4777, %v4779
    %v4784 = vadd.s32 %v4780, 1
    %v4785 = vsel %vm4783, %v4784, %v4780
    %v4786 = vadd.s32 %v4781, %v4785
    %v4787 = vadd.s32 %v4786, 536870912
    %v4788 = vshrl.u32 %v4787, 30
    %v4789 = vshll.u32 %v4788, 30
    %v4790 = vsub.s32 %v4786, %v4789
    %vm4791 = vcmp.lt.s32.totalorder %v4790, 0
    %v4792 = vsub.s32 0, %v4790
    %v4793 = vsel %vm4791, %v4792, %v4790
    %v4794 = vclz %v4793
    %v4795 = vsub.s32 %v4794, 2
    %vm4796 = vcmp.gt.s32.totalorder 0, %v4795
    %v4797 = vsel %vm4796, 0, %v4795
    %v4798 = vsub.s32 32, %v4797
    %v4799 = vshll.u32 %v4790, %v4797
    %v4800 = vshrl.u32 %v4782, %v4798
    %v4801 = vor.u32 %v4799, %v4800
    %v4802 = vsub.s32 4294967266, %v4797
    %v4803 = vadd.s32 %v4802, 127
    %v4804 = vshll.u32 %v4803, 23
    %v4805 = vor.u32 4788187, %v4804
    %v4806 = vand.u32 2147483647, %v4805
    %v4808 = vcvt.s32.f32 %v4801
    %v4809 = vmul.f32 %v4808, %v4806
    %v4810 = vxor.u32 %v4809, 2147483648
    %v4811 = vsel %vm4728, %v4810, %v4809
    %v4812 = vsub.s32 4, %v4788
    %v4813 = vsel %vm4728, %v4812, %v4788
    %v4814 = vsel %vm4727, %v4098, %v4811
    %v4815 = vsel %vm4727, 0, %v4813
    %v4816 = vcosq.f32.pop %v4814
    %v4817 = vsinq.f32.pop %v4814
    %vm4818 = vweird.f32 %v4098
    %v4819 = vadd.s32 %v4815, 3
    %v4820 = vand.u32 %v4819, 3
    %vm4821 = vcmp.lt.s32.totalorder %v4820, 2
    %vm4822 = vcmp.eq.s32.totalorder %v4820, 0
    %v4823 = vxor.u32 %v4817, 2147483648
    %v4824 = vsel %vm4822, %v4816, %v4823
    %vm4825 = vcmp.eq.s32.totalorder %v4820, 2
    %v4826 = vxor.u32 %v4816, 2147483648
    %v4827 = vsel %vm4825, %v4826, %v4817
    %v4828 = vsel %vm4821, %v4824, %v4827
    %v4829 = vsel %vm4818, nan, %v4828
    %v4830 = vand.u32 2147483647, %v4099
    %vm4831 = vcmp.le.f32.partialorder %v4830, 0.7853982
    %vm4832 = vcmp.lt.s32.totalorder %v4099, 0
    %v4833 = vand.u32 %v4099, 2139095040
    %v4834 = vshrl.u32 %v4833, 23
    %v4835 = vsub.s32 %v4834, 127
    %v4836 = vand.u32 2147483647, %v4099
    %v4837 = vand.u32 %v4836, 8388607
    %v4838 = vor.u32 %v4837, 8388608
    %v4839 = vsub.s32 0, %v4838
    %v4840 = vadd.s32 %v4835, 1
    %vm4841 = vcmp.gt.s32.totalorder %v4840, 0
    %v4842 = vsel %vm4841, %v4840, 0
    %v4843 = vshrl.u32 %v4842, 5
    %v4844 = vand.u32 %v4842, 31
    %v4845 = vsub.s32 32, %v4844
    %v4846 = vshrl.u32 683565275, %v4845
    %v4847 = vshll.u32 683565275, %v4844
    %v4848 = vshrl.u32 2475754826, %v4845
    %v4849 = vor.u32 %v4847, %v4848
    %v4850 = vshll.u32 2475754826, %v4844
    %v4851 = vshrl.u32 2131351028, %v4845
    %v4852 = vor.u32 %v4850, %v4851
    %v4853 = vshll.u32 2131351028, %v4844
    %v4854 = vshrl.u32 2102212464, %v4845
    %v4855 = vor.u32 %v4853, %v4854
    %v4856 = vshll.u32 2102212464, %v4844
    %v4857 = vshrl.u32 920167782, %v4845
    %v4858 = vor.u32 %v4856, %v4857
    %v4859 = vshll.u32 920167782, %v4844
    %v4860 = vshrl.u32 1326507024, %v4845
    %v4861 = vor.u32 %v4859, %v4860
    %vm4862 = vcmp.lt.s32.totalorder %v4843, 1
    %vm4863 = vcmp.lt.s32.totalorder %v4843, 2
    %vm4864 = vcmp.lt.s32.totalorder %v4843, 3
    %vm4865 = vcmp.lt.s32.totalorder %v4843, 4
    %v4866 = vsel %vm4862, %v4846, %v4849
    %v4867 = vsel %vm4865, %v4855, 2102212464
    %v4868 = vsel %vm4864, %v4852, %v4867
    %v4869 = vsel %vm4863, %v4866, %v4868
    %v4870 = vsel %vm4862, %v4849, %v4852
    %v4871 = vsel %vm4865, %v4858, 920167782
    %v4872 = vsel %vm4864, %v4855, %v4871
    %v4873 = vsel %vm4863, %v4870, %v4872
    %v4874 = vsel %vm4862, %v4852, %v4855
    %v4875 = vsel %vm4865, %v4861, 1326507024
    %v4876 = vsel %vm4864, %v4858, %v4875
    %v4877 = vsel %vm4863, %v4874, %v4876
    %v4878 = vshll.u32 %v4838, 8
    %v4879 = vmul.u32.u64.compose %v4878, %v4877
    %v4880 = vextract.low.u32 %v4879
    %v4881 = vextract.high.u32 %v4879
    %v4882 = vmul.u32.u64.compose %v4878, %v4873
    %v4883 = vextract.low.u32 %v4882
    %v4884 = vextract.high.u32 %v4882
    %v4885 = vmul.u32 %v4878, %v4869
    %v4886 = vadd.s32 %v4881, %v4883
    %vm4887 = vc.u32 %v4881, %v4883
    %v4888 = vadd.s32 %v4884, 1
    %v4889 = vsel %vm4887, %v4888, %v4884
    %v4890 = vadd.s32 %v4885, %v4889
    %v4891 = vadd.s32 %v4890, 536870912
    %v4892 = vshrl.u32 %v4891, 30
    %v4893 = vshll.u32 %v4892, 30
    %v4894 = vsub.s32 %v4890, %v4893
    %vm4895 = vcmp.lt.s32.totalorder %v4894, 0
    %v4896 = vsub.s32 0, %v4894
    %v4897 = vsel %vm4895, %v4896, %v4894
    %v4898 = vclz %v4897
    %v4899 = vsub.s32 %v4898, 2
    %vm4900 = vcmp.gt.s32.totalorder 0, %v4899
    %v4901 = vsel %vm4900, 0, %v4899
    %v4902 = vsub.s32 32, %v4901
    %v4903 = vshll.u32 %v4894, %v4901
    %v4904 = vshrl.u32 %v4886, %v4902
    %v4905 = vor.u32 %v4903, %v4904
    %v4906 = vsub.s32 4294967266, %v4901
    %v4907 = vadd.s32 %v4906, 127
    %v4908 = vshll.u32 %v4907, 23
    %v4909 = vor.u32 4788187, %v4908
    %v4910 = vand.u32 2147483647, %v4909
    %v4912 = vcvt.s32.f32 %v4905
    %v4913 = vmul.f32 %v4912, %v4910
    %v4914 = vxor.u32 %v4913, 2147483648
    %v4915 = vsel %vm4832, %v4914, %v4913
    %v4916 = vsub.s32 4, %v4892
    %v4917 = vsel %vm4832, %v4916, %v4892
    %v4918 = vsel %vm4831, %v4099, %v4915
    %v4919 = vsel %vm4831, 0, %v4917
    %v4920 = vcosq.f32.pop %v4918
    %v4921 = vsinq.f32.pop %v4918
    %vm4922 = vweird.f32 %v4099
    %v4923 = vadd.s32 %v4919, 3
    %v4924 = vand.u32 %v4923, 3
    %vm4925 = vcmp.lt.s32.totalorder %v4924, 2
    %vm4926 = vcmp.eq.s32.totalorder %v4924, 0
    %v4927 = vxor.u32 %v4921, 2147483648
    %v4928 = vsel %vm4926, %v4920, %v4927
    %vm4929 = vcmp.eq.s32.totalorder %v4924, 2
    %v4930 = vxor.u32 %v4920, 2147483648
    %v4931 = vsel %vm4929, %v4930, %v4921
    %v4932 = vsel %vm4925, %v4928, %v4931
    %v4933 = vsel %vm4922, nan, %v4932
    %v4934 = vand.u32 2147483647, %v4100
    %vm4935 = vcmp.le.f32.partialorder %v4934, 0.7853982
    %vm4936 = vcmp.lt.s32.totalorder %v4100, 0
    %v4937 = vand.u32 %v4100, 2139095040
    %v4938 = vshrl.u32 %v4937, 23
    %v4939 = vsub.s32 %v4938, 127
    %v4940 = vand.u32 2147483647, %v4100
    %v4941 = vand.u32 %v4940, 8388607
    %v4942 = vor.u32 %v4941, 8388608
    %v4943 = vsub.s32 0, %v4942
    %v4944 = vadd.s32 %v4939, 1
    %vm4945 = vcmp.gt.s32.totalorder %v4944, 0
    %v4946 = vsel %vm4945, %v4944, 0
    %v4947 = vshrl.u32 %v4946, 5
    %v4948 = vand.u32 %v4946, 31
    %v4949 = vsub.s32 32, %v4948
    %v4950 = vshrl.u32 683565275, %v4949
    %v4951 = vshll.u32 683565275, %v4948
    %v4952 = vshrl.u32 2475754826, %v4949
    %v4953 = vor.u32 %v4951, %v4952
    %v4954 = vshll.u32 2475754826, %v4948
    %v4955 = vshrl.u32 2131351028, %v4949
    %v4956 = vor.u32 %v4954, %v4955
    %v4957 = vshll.u32 2131351028, %v4948
    %v4958 = vshrl.u32 2102212464, %v4949
    %v4959 = vor.u32 %v4957, %v4958
    %v4960 = vshll.u32 2102212464, %v4948
    %v4961 = vshrl.u32 920167782, %v4949
    %v4962 = vor.u32 %v4960, %v4961
    %v4963 = vshll.u32 920167782, %v4948
    %v4964 = vshrl.u32 1326507024, %v4949
    %v4965 = vor.u32 %v4963, %v4964
    %vm4966 = vcmp.lt.s32.totalorder %v4947, 1
    %vm4967 = vcmp.lt.s32.totalorder %v4947, 2
    %vm4968 = vcmp.lt.s32.totalorder %v4947, 3
    %vm4969 = vcmp.lt.s32.totalorder %v4947, 4
    %v4970 = vsel %vm4966, %v4950, %v4953
    %v4971 = vsel %vm4969, %v4959, 2102212464
    %v4972 = vsel %vm4968, %v4956, %v4971
    %v4973 = vsel %vm4967, %v4970, %v4972
    %v4974 = vsel %vm4966, %v4953, %v4956
    %v4975 = vsel %vm4969, %v4962, 920167782
    %v4976 = vsel %vm4968, %v4959, %v4975
    %v4977 = vsel %vm4967, %v4974, %v4976
    %v4978 = vsel %vm4966, %v4956, %v4959
    %v4979 = vsel %vm4969, %v4965, 1326507024
    %v4980 = vsel %vm4968, %v4962, %v4979
    %v4981 = vsel %vm4967, %v4978, %v4980
    %v4982 = vshll.u32 %v4942, 8
    %v4983 = vmul.u32.u64.compose %v4982, %v4981
    %v4984 = vextract.low.u32 %v4983
    %v4985 = vextract.high.u32 %v4983
    %v4986 = vmul.u32.u64.compose %v4982, %v4977
    %v4987 = vextract.low.u32 %v4986
    %v4988 = vextract.high.u32 %v4986
    %v4989 = vmul.u32 %v4982, %v4973
    %v4990 = vadd.s32 %v4985, %v4987
    %vm4991 = vc.u32 %v4985, %v4987
    %v4992 = vadd.s32 %v4988, 1
    %v4993 = vsel %vm4991, %v4992, %v4988
    %v4994 = vadd.s32 %v4989, %v4993
    %v4995 = vadd.s32 %v4994, 536870912
    %v4996 = vshrl.u32 %v4995, 30
    %v4997 = vshll.u32 %v4996, 30
    %v4998 = vsub.s32 %v4994, %v4997
    %vm4999 = vcmp.lt.s32.totalorder %v4998, 0
    %v5000 = vsub.s32 0, %v4998
    %v5001 = vsel %vm4999, %v5000, %v4998
    %v5002 = vclz %v5001
    %v5003 = vsub.s32 %v5002, 2
    %vm5004 = vcmp.gt.s32.totalorder 0, %v5003
    %v5005 = vsel %vm5004, 0, %v5003
    %v5006 = vsub.s32 32, %v5005
    %v5007 = vshll.u32 %v4998, %v5005
    %v5008 = vshrl.u32 %v4990, %v5006
    %v5009 = vor.u32 %v5007, %v5008
    %v5010 = vsub.s32 4294967266, %v5005
    %v5011 = vadd.s32 %v5010, 127
    %v5012 = vshll.u32 %v5011, 23
    %v5013 = vor.u32 4788187, %v5012
    %v5014 = vand.u32 2147483647, %v5013
    %v5016 = vcvt.s32.f32 %v5009
    %v5017 = vmul.f32 %v5016, %v5014
    %v5018 = vxor.u32 %v5017, 2147483648
    %v5019 = vsel %vm4936, %v5018, %v5017
    %v5020 = vsub.s32 4, %v4996
    %v5021 = vsel %vm4936, %v5020, %v4996
    %v5022 = vsel %vm4935, %v4100, %v5019
    %v5023 = vsel %vm4935, 0, %v5021
    %v5024 = vcosq.f32.pop %v5022
    %v5025 = vsinq.f32.pop %v5022
    %vm5026 = vweird.f32 %v4100
    %v5027 = vadd.s32 %v5023, 3
    %v5028 = vand.u32 %v5027, 3
    %vm5029 = vcmp.lt.s32.totalorder %v5028, 2
    %vm5030 = vcmp.eq.s32.totalorder %v5028, 0
    %v5031 = vxor.u32 %v5025, 2147483648
    %v5032 = vsel %vm5030, %v5024, %v5031
    %vm5033 = vcmp.eq.s32.totalorder %v5028, 2
    %v5034 = vxor.u32 %v5024, 2147483648
    %v5035 = vsel %vm5033, %v5034, %v5025
    %v5036 = vsel %vm5029, %v5032, %v5035
    %v5037 = vsel %vm5026, nan, %v5036
    %v5038 = vand.u32 2147483647, %v4101
    %vm5039 = vcmp.le.f32.partialorder %v5038, 0.7853982
    %vm5040 = vcmp.lt.s32.totalorder %v4101, 0
    %v5041 = vand.u32 %v4101, 2139095040
    %v5042 = vshrl.u32 %v5041, 23
    %v5043 = vsub.s32 %v5042, 127
    %v5044 = vand.u32 2147483647, %v4101
    %v5045 = vand.u32 %v5044, 8388607
    %v5046 = vor.u32 %v5045, 8388608
    %v5047 = vsub.s32 0, %v5046
    %v5048 = vadd.s32 %v5043, 1
    %vm5049 = vcmp.gt.s32.totalorder %v5048, 0
    %v5050 = vsel %vm5049, %v5048, 0
    %v5051 = vshrl.u32 %v5050, 5
    %v5052 = vand.u32 %v5050, 31
    %v5053 = vsub.s32 32, %v5052
    %v5054 = vshrl.u32 683565275, %v5053
    %v5055 = vshll.u32 683565275, %v5052
    %v5056 = vshrl.u32 2475754826, %v5053
    %v5057 = vor.u32 %v5055, %v5056
    %v5058 = vshll.u32 2475754826, %v5052
    %v5059 = vshrl.u32 2131351028, %v5053
    %v5060 = vor.u32 %v5058, %v5059
    %v5061 = vshll.u32 2131351028, %v5052
    %v5062 = vshrl.u32 2102212464, %v5053
    %v5063 = vor.u32 %v5061, %v5062
    %v5064 = vshll.u32 2102212464, %v5052
    %v5065 = vshrl.u32 920167782, %v5053
    %v5066 = vor.u32 %v5064, %v5065
    %v5067 = vshll.u32 920167782, %v5052
    %v5068 = vshrl.u32 1326507024, %v5053
    %v5069 = vor.u32 %v5067, %v5068
    %vm5070 = vcmp.lt.s32.totalorder %v5051, 1
    %vm5071 = vcmp.lt.s32.totalorder %v5051, 2
    %vm5072 = vcmp.lt.s32.totalorder %v5051, 3
    %vm5073 = vcmp.lt.s32.totalorder %v5051, 4
    %v5074 = vsel %vm5070, %v5054, %v5057
    %v5075 = vsel %vm5073, %v5063, 2102212464
    %v5076 = vsel %vm5072, %v5060, %v5075
    %v5077 = vsel %vm5071, %v5074, %v5076
    %v5078 = vsel %vm5070, %v5057, %v5060
    %v5079 = vsel %vm5073, %v5066, 920167782
    %v5080 = vsel %vm5072, %v5063, %v5079
    %v5081 = vsel %vm5071, %v5078, %v5080
    %v5082 = vsel %vm5070, %v5060, %v5063
    %v5083 = vsel %vm5073, %v5069, 1326507024
    %v5084 = vsel %vm5072, %v5066, %v5083
    %v5085 = vsel %vm5071, %v5082, %v5084
    %v5086 = vshll.u32 %v5046, 8
    %v5087 = vmul.u32.u64.compose %v5086, %v5085
    %v5088 = vextract.low.u32 %v5087
    %v5089 = vextract.high.u32 %v5087
    %v5090 = vmul.u32.u64.compose %v5086, %v5081
    %v5091 = vextract.low.u32 %v5090
    %v5092 = vextract.high.u32 %v5090
    %v5093 = vmul.u32 %v5086, %v5077
    %v5094 = vadd.s32 %v5089, %v5091
    %vm5095 = vc.u32 %v5089, %v5091
    %v5096 = vadd.s32 %v5092, 1
    %v5097 = vsel %vm5095, %v5096, %v5092
    %v5098 = vadd.s32 %v5093, %v5097
    %v5099 = vadd.s32 %v5098, 536870912
    %v5100 = vshrl.u32 %v5099, 30
    %v5101 = vshll.u32 %v5100, 30
    %v5102 = vsub.s32 %v5098, %v5101
    %vm5103 = vcmp.lt.s32.totalorder %v5102, 0
    %v5104 = vsub.s32 0, %v5102
    %v5105 = vsel %vm5103, %v5104, %v5102
    %v5106 = vclz %v5105
    %v5107 = vsub.s32 %v5106, 2
    %vm5108 = vcmp.gt.s32.totalorder 0, %v5107
    %v5109 = vsel %vm5108, 0, %v5107
    %v5110 = vsub.s32 32, %v5109
    %v5111 = vshll.u32 %v5102, %v5109
    %v5112 = vshrl.u32 %v5094, %v5110
    %v5113 = vor.u32 %v5111, %v5112
    %v5114 = vsub.s32 4294967266, %v5109
    %v5115 = vadd.s32 %v5114, 127
    %v5116 = vshll.u32 %v5115, 23
    %v5117 = vor.u32 4788187, %v5116
    %v5118 = vand.u32 2147483647, %v5117
    %v5120 = vcvt.s32.f32 %v5113
    %v5121 = vmul.f32 %v5120, %v5118
    %v5122 = vxor.u32 %v5121, 2147483648
    %v5123 = vsel %vm5040, %v5122, %v5121
    %v5124 = vsub.s32 4, %v5100
    %v5125 = vsel %vm5040, %v5124, %v5100
    %v5126 = vsel %vm5039, %v4101, %v5123
    %v5127 = vsel %vm5039, 0, %v5125
    %v5128 = vcosq.f32.pop %v5126
    %v5129 = vsinq.f32.pop %v5126
    %vm5130 = vweird.f32 %v4101
    %v5131 = vadd.s32 %v5127, 3
    %v5132 = vand.u32 %v5131, 3
    %vm5133 = vcmp.lt.s32.totalorder %v5132, 2
    %vm5134 = vcmp.eq.s32.totalorder %v5132, 0
    %v5135 = vxor.u32 %v5129, 2147483648
    %v5136 = vsel %vm5134, %v5128, %v5135
    %vm5137 = vcmp.eq.s32.totalorder %v5132, 2
    %v5138 = vxor.u32 %v5128, 2147483648
    %v5139 = vsel %vm5137, %v5138, %v5129
    %v5140 = vsel %vm5133, %v5136, %v5139
    %v5141 = vsel %vm5130, nan, %v5140
    %5142 = vst [vmem:[#allocation5] sm:$0xff] %v4205
    %5143 = vst [vmem:[#allocation5 + $0x8] sm:$0xff] %v4309
    %5144 = vst [vmem:[#allocation5 + $0x10] sm:$0xff] %v4413
    %5145 = vst [vmem:[#allocation5 + $0x18] sm:$0xff] %v4517
    %5146 = vst [vmem:[#allocation5 + $0x20] sm:$0xff] %v4621
    %5147 = vst [vmem:[#allocation5 + $0x28] sm:$0xff] %v4725
    %5148 = vst [vmem:[#allocation5 + $0x30] sm:$0xff] %v4829
    %5149 = vst [vmem:[#allocation5 + $0x38] sm:$0xff] %v4933
    %5150 = vst [vmem:[#allocation5 + $0x40] sm:$0xff] %v5037
    %5151 = vst [vmem:[#allocation5 + $0x48] sm:$0xff] %v5141
    // Predicated region
    $region38: #{tpu_custom_call.1} parent=1 // pred_check
      _
    $region39: #{tpu_custom_call.1} parent=1 // pred_check_branch
      %5153 = sbr.rel (0) target = $region41
    $region40: #{tpu_custom_call.1} parent=1 // pred_region
      %s5155 = ssub.s32 1280, 1280
      %5156 = vsyncadd [#allocation4], %s5155
      %s5157 = sshll.u32 [#allocation5], 4
      %s5158 = int_to_ptr.vmem [resolvable:$true] %s5157
      %5163 = dma.vmem_to_hbm [thread:$0]  %s5158, 1280, %s8, [#allocation4], 128, 128, 8
    $region41: #{tpu_custom_call.1} parent=1 // pred_fallthru
      _
    // Predicated region
    $region42: #{tpu_custom_call.1} parent=1 // pred_check
      _
    $region43: #{tpu_custom_call.1} parent=1 // pred_check_branch
      %5165 = sbr.rel (0) target = $region45
    $region44: #{tpu_custom_call.1} parent=1 // pred_region
      %5166 = dma.done [#allocation4], 1280
    $region45: #{tpu_custom_call.1} parent=1 // pred_fallthru
      _
    %5167 = vsyncpa [#allocation3], 1
    %5168 = vsyncpa [#allocation4], 1

</llo_original>
